<compile_context>
chip_gen: v6e
topology: v6e:2x2x1
jax: 0.10.0
libtpu: 0.0.40
codegen_flags: <defaults>
</compile_context>

<pallas_src>
import jax
import jax.numpy as jnp
from jax import lax
from jax.experimental import pallas as pl
from jax.experimental.pallas import tpu as pltpu

# ---- hyperparameters (small but consistent with the module's __init__) ----
B = 2
N = 16                      # sequence length
DIM = 32                    # model dim
HEADS = 4
DIM_HEAD = 8
FF_MULT = 4
CONV_EXPANSION = 2
CONV_KERNEL = 7
MAX_POS_EMB = 512

T = B * N                                # total tokens
INNER = HEADS * DIM_HEAD                 # 32
FF_HIDDEN = DIM * FF_MULT                # 128
CONV_INNER = DIM * CONV_EXPANSION        # 64
PAD_L = CONV_KERNEL // 2                 # "same" padding (non-causal) -> (3, 3)
PAD_R = CONV_KERNEL // 2 - (CONV_KERNEL + 1) % 2
LN_EPS = 1e-5
BN_EPS = 1e-5
LANES = 128

# TODO(synk): hist_frame / look_ahead only build an attention mask in the original
# model; forward() here is the mask=None path, so no mask is applied.


def _layernorm(x, g, b):
    mean = jnp.mean(x, axis=-1, keepdims=True)
    xc = x - mean
    var = jnp.mean(xc * xc, axis=-1, keepdims=True)
    return xc * lax.rsqrt(var + LN_EPS) * g + b


def _swish(x):
    return x * jax.nn.sigmoid(x)


def _pack_block(entries, row_align, dtype):
    """Pack named 1D/2D params vertically into one (rows, 128) block.

    Returns (block, {name: (row_offset, rows, cols)}).  Matmul-weight row offsets are
    kept 16-aligned (bf16 sublane packing); the vector block packs one row per param.
    """
    parts, offs, r = [], {}, 0
    for name, a in entries:
        a = jnp.asarray(a, jnp.float32)
        if a.ndim == 1:
            a = a.reshape(1, -1)
        rows, cols = a.shape
        rpad = (-rows) % row_align
        a = jnp.pad(a, ((0, rpad), (0, LANES - cols)))
        offs[name] = (r, rows, cols)
        parts.append(a)
        r += rows + rpad
    tail = (-r) % 8
    if tail:
        parts.append(jnp.zeros((tail, LANES), jnp.float32))
    return jnp.concatenate(parts, axis=0).astype(dtype), offs


def _build_kernel(voffs, woffs, nb):
    """Kernel closure over static packing offsets and batches-per-block (trace-time)."""
    R = nb * N                                      # rows handled per grid step

    def vrow(vec_ref, name):
        r, rows, cols = voffs[name]
        return vec_ref[r:r + rows, :cols]           # (rows, cols) f32

    def wmat(w_ref, name):
        r, rows, cols = woffs[name]
        return w_ref[r:r + rows, :cols]             # (rows, cols) bf16

    def kernel(x_ref, vec_ref, w_ref, o_ref):
        f32 = jnp.float32
        bf16 = jnp.bfloat16

        def mm(a, wname):
            # bf16 MXU operands, f32 accumulation.
            return jnp.dot(a.astype(bf16), wmat(w_ref, wname),
                           preferred_element_type=f32)

        def feedforward(x, p):
            hid = _layernorm(x, vrow(vec_ref, p + '_ln_g'), vrow(vec_ref, p + '_ln_b'))
            hid = mm(hid, p + '_w1') + vrow(vec_ref, p + '_b1')
            hid = _swish(hid)
            # 0.5 Scale() is pre-folded into w2 / b2 at pack time.
            return mm(hid, p + '_w2') + vrow(vec_ref, p + '_b2')

        x = x_ref[...]                               # (R, DIM) f32

        # ---- x = 0.5 * FF1(LN(x)) + x   (0.5 folded into the weights)
        x = feedforward(x, 'ff1') + x

        # ---- x = Attn(LN(x)) + x  (fused qkv projection, Shaw relative bias)
        ln = _layernorm(x, vrow(vec_ref, 'at_ln_g'), vrow(vec_ref, 'at_ln_b'))
        qkv = mm(ln, 'at_wqkv')                      # (R, 3*INNER) f32, q pre-scaled
        qkv_bf = qkv.astype(bf16)                    # single hoisted cast
        rel2 = vrow(vec_ref, 'at_rel')               # (N, N*DIM_HEAD) f32, lane-dense
        t_tile = wmat(w_ref, 'at_ttile')             # (DIM_HEAD, N*DIM_HEAD) 0/1 bf16
        s_sel = wmat(w_ref, 'at_ssel')               # (N*DIM_HEAD, N)       0/1 bf16

        ao_parts = []
        for b in range(nb):
            r0 = b * N
            ao_b = jnp.zeros((N, DIM), f32)
            for hd in range(HEADS):
                c = hd * DIM_HEAD
                q_h = qkv_bf[r0:r0 + N, c:c + DIM_HEAD]
                k_h = qkv_bf[r0:r0 + N, INNER + c:INNER + c + DIM_HEAD]
                v_h = qkv_bf[r0:r0 + N, 2 * INNER + c:2 * INNER + c + DIM_HEAD]
                # content scores: q @ k^T (bf16 MXU, f32 acc); scale folded into q
                dots = lax.dot_general(q_h, k_h, (((1,), (1,)), ((), ())),
                                       preferred_element_type=f32)
                # Shaw rel-pos scores, lane-dense:
                #   q_tiled[n, r*Dh+d] = q[n, d];  pos[n, r] = sum_d q[n,d]*rel[n,r,d]
                q_tiled = jnp.dot(q_h, t_tile, preferred_element_type=f32)   # (N,128)
                pos = jnp.dot((q_tiled * rel2).astype(bf16), s_sel,
                              preferred_element_type=f32)                    # (N, N)
                logits = dots + pos
                m = jnp.max(logits, axis=-1, keepdims=True)
                e = jnp.exp(logits - m)
                inv = pl.reciprocal(jnp.sum(e, axis=-1, keepdims=True), approx=True)
                attn = (e * inv).astype(bf16)
                out_h = jnp.dot(attn, v_h, preferred_element_type=f32)       # (N, Dh)
                # output projection folded into the head loop (Wo pre-split per head)
                ao_b = ao_b + jnp.dot(out_h.astype(bf16),
                                      wmat(w_ref, 'at_wo%d' % hd),
                                      preferred_element_type=f32)
            ao_parts.append(ao_b)
        ao = ao_parts[0] if nb == 1 else jnp.concatenate(ao_parts, axis=0)
        x = ao + vrow(vec_ref, 'at_bo') + x

        # ---- x = ConvModule(x) + x   (BatchNorm folded into depthwise weights/bias)
        ln = _layernorm(x, vrow(vec_ref, 'cv_ln_g'), vrow(vec_ref, 'cv_ln_b'))
        y = mm(ln, 'cv_wp1') + vrow(vec_ref, 'cv_bp1')           # (R, 2*CONV_INNER)
        y = y[:, :CONV_INNER] * jax.nn.sigmoid(y[:, CONV_INNER:])  # GLU over channels
        # depthwise conv along the sequence via sublane rolls + per-tap validity masks
        dw = vrow(vec_ref, 'cv_dww')                              # (K, CONV_INNER)
        pos_in_seq = lax.broadcasted_iota(jnp.int32, (R, 1), 0) % N
        acc = y * dw[PAD_L:PAD_L + 1, :]                          # center tap (d = 0)
        for kk in range(CONV_KERNEL):
            if kk == PAD_L:
                continue
            d = kk - PAD_L                                        # tap offset, |d| <= 3
            rolled = pltpu.roll(y, shift=(-d) % R, axis=0)        # rolled[i] = y[i + d]
            valid = jnp.logical_and(pos_in_seq + d >= 0, pos_in_seq + d < N)
            acc = acc + jnp.where(valid, rolled, 0.0) * dw[kk:kk + 1, :]
        acc = _swish(acc + vrow(vec_ref, 'cv_dwb'))
        x = mm(acc, 'cv_wp2') + vrow(vec_ref, 'cv_bp2') + x

        # ---- x = 0.5 * FF2(LN(x)) + x   (0.5 folded into the weights)
        x = feedforward(x, 'ff2') + x

        # ---- post LayerNorm
        # TODO(synk): lane-dense (8,128) output slab skipped; it would need an extra
        # in-kernel shuffle at this layout, so the (R,32) store is kept.
        o_ref[...] = _layernorm(x, vrow(vec_ref, 'pn_g'), vrow(vec_ref, 'pn_b'))

    return kernel


def _batches_per_block():
    """One batch per grid step on v7x (2 TCs, megacore split); fused slab otherwise."""
    try:
        kind = jax.devices()[0].device_kind.lower()
    except Exception:
        kind = ""
    return 1 if ("v7" in kind or "tpu7" in kind) else B


def conformer_block(x, vec_block, w_block, voffs, woffs):
    """x: (B, N, DIM) f32 -> (B, N, DIM) f32."""
    nb = _batches_per_block()
    xf = x.reshape(T, DIM)
    kernel = _build_kernel(voffs, woffs, nb)
    vrows = vec_block.shape[0]
    wrows = w_block.shape[0]
    rows_per_step = nb * N
    out = pl.pallas_call(
        kernel,
        out_shape=jax.ShapeDtypeStruct((T, DIM), jnp.float32),
        grid_spec=pltpu.PrefetchScalarGridSpec(
            num_scalar_prefetch=0,
            grid=(T // rows_per_step,),
            in_specs=[
                pl.BlockSpec((rows_per_step, DIM), lambda i: (i, 0)),
                pl.BlockSpec((vrows, LANES), lambda i: (0, 0)),
                pl.BlockSpec((wrows, LANES), lambda i: (0, 0)),
            ],
            out_specs=pl.BlockSpec((rows_per_step, DIM), lambda i: (i, 0)),
        ),
        compiler_params=pltpu.CompilerParams(
            dimension_semantics=("parallel",)),
    )(xf, vec_block, w_block)
    return out.reshape(B, N, DIM)


if __name__ == "__main__":
    key = jax.random.PRNGKey(0)
    ks = jax.random.split(key, 20)

    def w(k, shape, scale=0.05):
        return jax.random.normal(k, shape, dtype=jnp.float32) * scale

    x = jax.random.normal(ks[0], (B, N, DIM), dtype=jnp.float32)

    ones = lambda *s: jnp.ones(s, jnp.float32)
    zeros = lambda *s: jnp.zeros(s, jnp.float32)

    # Shaw relative positional embedding, gathered outside the kernel (glue), packed
    # lane-dense as (N, N*DIM_HEAD).
    emb_table = w(ks[1], (2 * MAX_POS_EMB + 1, DIM_HEAD))
    seq = jnp.arange(N)
    dist = jnp.clip(seq[:, None] - seq[None, :], -MAX_POS_EMB, MAX_POS_EMB) + MAX_POS_EMB
    rel2 = emb_table[dist].reshape(N, N * DIM_HEAD)          # (16, 128)

    # ---- raw module parameters ----
    scale = DIM_HEAD ** -0.5
    wq = w(ks[4], (DIM, INNER))
    wkv = w(ks[5], (DIM, 2 * INNER))
    wo = w(ks[6], (INNER, DIM))
    dww = w(ks[8], (CONV_KERNEL, CONV_INNER))                # depthwise conv weight
    dwb = zeros(CONV_INNER)                                  # depthwise conv bias
    bn_g = ones(CONV_INNER)
    bn_b = zeros(CONV_INNER)
    bn_rm = w(ks[12], (CONV_INNER,), 0.01)                   # BN running mean
    bn_rv = 1.0 + jnp.abs(w(ks[13], (CONV_INNER,), 0.01))    # BN running var

    # fold eval-mode BatchNorm1d into the depthwise conv weights / bias
    bn_s = bn_g * lax.rsqrt(bn_rv + BN_EPS)
    dww_f = dww * bn_s[None, :]
    dwb_f = (dwb - bn_rm) * bn_s + bn_b

    # constant 0/1 matrices for the lane-dense rel-pos path (exact in bf16)
    t_tile = jnp.tile(jnp.eye(DIM_HEAD, dtype=jnp.float32), (1, N))      # (8, 128)
    s_sel = jnp.repeat(jnp.eye(N, dtype=jnp.float32), DIM_HEAD, axis=0)  # (128, 16)

    # ---- packed parameter blocks ----
    vec_entries = [
        ('at_rel', rel2),                          # 8-aligned offset 0, lane-dense
        ('cv_dww', dww_f),                         # (K, CONV_INNER), BN folded
        ('ff1_ln_g', ones(DIM)), ('ff1_ln_b', zeros(DIM)),
        ('ff1_b1', zeros(FF_HIDDEN)), ('ff1_b2', 0.5 * zeros(DIM)),   # 0.5 folded
        ('at_ln_g', ones(DIM)), ('at_ln_b', zeros(DIM)),
        ('at_bo', zeros(DIM)),
        ('cv_ln_g', ones(DIM)), ('cv_ln_b', zeros(DIM)),
        ('cv_bp1', zeros(2 * CONV_INNER)),
        ('cv_dwb', dwb_f),
        ('cv_bp2', zeros(DIM)),
        ('ff2_ln_g', ones(DIM)), ('ff2_ln_b', zeros(DIM)),
        ('ff2_b1', zeros(FF_HIDDEN)), ('ff2_b2', 0.5 * zeros(DIM)),   # 0.5 folded
        ('pn_g', ones(DIM)), ('pn_b', zeros(DIM)),
    ]
    vec_block, voffs = _pack_block(vec_entries, row_align=1, dtype=jnp.float32)

    w_entries = [
        ('ff1_w1', w(ks[2], (DIM, FF_HIDDEN))),
        ('ff1_w2', 0.5 * w(ks[3], (FF_HIDDEN, DIM))),                 # 0.5 folded
        ('at_wqkv', jnp.concatenate([wq * scale, wkv], axis=1)),      # scale folded in q
        ('at_wo0', wo[0 * DIM_HEAD:1 * DIM_HEAD]),                    # Wo pre-split/head
        ('at_wo1', wo[1 * DIM_HEAD:2 * DIM_HEAD]),
        ('at_wo2', wo[2 * DIM_HEAD:3 * DIM_HEAD]),
        ('at_wo3', wo[3 * DIM_HEAD:4 * DIM_HEAD]),
        ('at_ttile', t_tile),
        ('at_ssel', s_sel),
        ('cv_wp1', w(ks[7], (DIM, 2 * CONV_INNER))),
        ('cv_wp2', w(ks[9], (CONV_INNER, DIM))),
        ('ff2_w1', w(ks[10], (DIM, FF_HIDDEN))),
        ('ff2_w2', 0.5 * w(ks[11], (FF_HIDDEN, DIM))),                # 0.5 folded
    ]
    w_block, woffs = _pack_block(w_entries, row_align=16, dtype=jnp.bfloat16)

    out = conformer_block(x, vec_block, w_block, voffs, woffs)
    out = jax.block_until_ready(out)
    assert out.shape == (B, N, DIM)
    assert bool(jnp.all(jnp.isfinite(out)))
    print("KERNEL_OK")
</pallas_src>

<mosaic_0001>
module attributes {stable_mosaic.version = 11 : i64} {
  func.func @kernel(%arg0: i32, %arg1: memref<32x32xf32, #tpu.memory_space<vmem>>, %arg2: memref<48x128xf32, #tpu.memory_space<vmem>>, %arg3: memref<656x128xbf16, #tpu.memory_space<vmem>>, %arg4: memref<32x32xf32, #tpu.memory_space<vmem>>) attributes {dimension_semantics = [#tpu.dimension_semantics<parallel>], iteration_bounds = array<i64: 1>, scalar_prefetch = 0 : i64, scratch_operands = 0 : i64, tpu.core_type = #tpu.core_type<tc>, window_params = [{transform_indices = @transform_0, window_bounds = array<i64: 32, 32>}, {pipeline_mode = #tpu.pipeline_mode<synchronous>, transform_indices = @transform_1, window_bounds = array<i64: 48, 128>}, {pipeline_mode = #tpu.pipeline_mode<synchronous>, transform_indices = @transform_2, window_bounds = array<i64: 656, 128>}, {transform_indices = @transform_3, window_bounds = array<i64: 32, 32>}]} {
    %c0 = arith.constant 0 : index
    %c0_0 = arith.constant 0 : index
    %0 = vector.load %arg1[%c0, %c0_0] : memref<32x32xf32, #tpu.memory_space<vmem>>, vector<32x32xf32>
    %c23 = arith.constant 23 : index
    %c0_1 = arith.constant 0 : index
    %1 = vector.load %arg2[%c23, %c0_1] : memref<48x128xf32, #tpu.memory_space<vmem>>, vector<1x32xf32>
    %c24 = arith.constant 24 : index
    %c0_2 = arith.constant 0 : index
    %2 = vector.load %arg2[%c24, %c0_2] : memref<48x128xf32, #tpu.memory_space<vmem>>, vector<1x32xf32>
    %cst = arith.constant dense<0.000000e+00> : vector<32xf32>
    %3 = vector.multi_reduction <add>, %0, %cst [1] : vector<32x32xf32> to vector<32xf32>
    %4 = vector.shape_cast %3 : vector<32xf32> to vector<32x1xf32>
    %cst_3 = arith.constant 3.200000e+01 : f32
    %5 = vector.broadcast %cst_3 : f32 to vector<32x1xf32>
    %6 = arith.divf %4, %5 : vector<32x1xf32>
    %7 = vector.broadcast %6 : vector<32x1xf32> to vector<32x32xf32>
    %8 = arith.subf %0, %7 : vector<32x32xf32>
    %9 = arith.mulf %8, %8 : vector<32x32xf32>
    %cst_4 = arith.constant dense<0.000000e+00> : vector<32xf32>
    %10 = vector.multi_reduction <add>, %9, %cst_4 [1] : vector<32x32xf32> to vector<32xf32>
    %11 = vector.shape_cast %10 : vector<32xf32> to vector<32x1xf32>
    %cst_5 = arith.constant 3.200000e+01 : f32
    %12 = vector.broadcast %cst_5 : f32 to vector<32x1xf32>
    %13 = arith.divf %11, %12 : vector<32x1xf32>
    %cst_6 = arith.constant 9.99999974E-6 : f32
    %14 = vector.broadcast %cst_6 : f32 to vector<32x1xf32>
    %15 = arith.addf %13, %14 : vector<32x1xf32>
    %16 = math.rsqrt %15 : vector<32x1xf32>
    %17 = vector.broadcast %16 : vector<32x1xf32> to vector<32x32xf32>
    %18 = arith.mulf %8, %17 : vector<32x32xf32>
    %19 = vector.broadcast %1 : vector<1x32xf32> to vector<32x32xf32>
    %20 = arith.mulf %18, %19 : vector<32x32xf32>
    %21 = vector.broadcast %2 : vector<1x32xf32> to vector<32x32xf32>
    %22 = arith.addf %20, %21 : vector<32x32xf32>
    %23 = arith.truncf %22 : vector<32x32xf32> to vector<32x32xbf16>
    %c0_7 = arith.constant 0 : index
    %c0_8 = arith.constant 0 : index
    %24 = vector.load %arg3[%c0_7, %c0_8] : memref<656x128xbf16, #tpu.memory_space<vmem>>, vector<32x128xbf16>
    %cst_9 = arith.constant dense<0.000000e+00> : vector<32x128xf32>
    %25 = tpu.matmul %23, %24, %cst_9 {dimension_numbers = #tpu.dot_dimension_numbers<[1], [0], [0], [1], [0, 0, 1, 1], [], []>} : vector<32x32xbf16>, vector<32x128xbf16>, vector<32x128xf32> -> vector<32x128xf32>
    %c25 = arith.constant 25 : index
    %c0_10 = arith.constant 0 : index
    %26 = vector.load %arg2[%c25, %c0_10] : memref<48x128xf32, #tpu.memory_space<vmem>>, vector<1x128xf32>
    %27 = vector.broadcast %26 : vector<1x128xf32> to vector<32x128xf32>
    %28 = arith.addf %25, %27 : vector<32x128xf32>
    %29 = arith.negf %28 : vector<32x128xf32>
    %30 = math.exp %29 : vector<32x128xf32>
    %cst_11 = arith.constant 1.000000e+00 : f32
    %31 = vector.broadcast %cst_11 : f32 to vector<32x128xf32>
    %32 = arith.addf %31, %30 : vector<32x128xf32>
    %33 = arith.divf %31, %32 : vector<32x128xf32>
    %34 = arith.mulf %28, %33 : vector<32x128xf32>
    %35 = arith.truncf %34 : vector<32x128xf32> to vector<32x128xbf16>
    %c32 = arith.constant 32 : index
    %c0_12 = arith.constant 0 : index
    %36 = vector.load %arg3[%c32, %c0_12] : memref<656x128xbf16, #tpu.memory_space<vmem>>, vector<128x32xbf16>
    %cst_13 = arith.constant dense<0.000000e+00> : vector<32x32xf32>
    %37 = tpu.matmul %35, %36, %cst_13 {dimension_numbers = #tpu.dot_dimension_numbers<[1], [0], [0], [1], [0, 0, 1, 1], [], []>} : vector<32x128xbf16>, vector<128x32xbf16>, vector<32x32xf32> -> vector<32x32xf32>
    %c26 = arith.constant 26 : index
    %c0_14 = arith.constant 0 : index
    %38 = vector.load %arg2[%c26, %c0_14] : memref<48x128xf32, #tpu.memory_space<vmem>>, vector<1x32xf32>
    %39 = vector.broadcast %38 : vector<1x32xf32> to vector<32x32xf32>
    %40 = arith.addf %37, %39 : vector<32x32xf32>
    %41 = arith.addf %40, %0 : vector<32x32xf32>
    %c27 = arith.constant 27 : index
    %c0_15 = arith.constant 0 : index
    %42 = vector.load %arg2[%c27, %c0_15] : memref<48x128xf32, #tpu.memory_space<vmem>>, vector<1x32xf32>
    %c28 = arith.constant 28 : index
    %c0_16 = arith.constant 0 : index
    %43 = vector.load %arg2[%c28, %c0_16] : memref<48x128xf32, #tpu.memory_space<vmem>>, vector<1x32xf32>
    %cst_17 = arith.constant dense<0.000000e+00> : vector<32xf32>
    %44 = vector.multi_reduction <add>, %41, %cst_17 [1] : vector<32x32xf32> to vector<32xf32>
    %45 = vector.shape_cast %44 : vector<32xf32> to vector<32x1xf32>
    %cst_18 = arith.constant 3.200000e+01 : f32
    %46 = vector.broadcast %cst_18 : f32 to vector<32x1xf32>
    %47 = arith.divf %45, %46 : vector<32x1xf32>
    %48 = vector.broadcast %47 : vector<32x1xf32> to vector<32x32xf32>
    %49 = arith.subf %41, %48 : vector<32x32xf32>
    %50 = arith.mulf %49, %49 : vector<32x32xf32>
    %cst_19 = arith.constant dense<0.000000e+00> : vector<32xf32>
    %51 = vector.multi_reduction <add>, %50, %cst_19 [1] : vector<32x32xf32> to vector<32xf32>
    %52 = vector.shape_cast %51 : vector<32xf32> to vector<32x1xf32>
    %cst_20 = arith.constant 3.200000e+01 : f32
    %53 = vector.broadcast %cst_20 : f32 to vector<32x1xf32>
    %54 = arith.divf %52, %53 : vector<32x1xf32>
    %cst_21 = arith.constant 9.99999974E-6 : f32
    %55 = vector.broadcast %cst_21 : f32 to vector<32x1xf32>
    %56 = arith.addf %54, %55 : vector<32x1xf32>
    %57 = math.rsqrt %56 : vector<32x1xf32>
    %58 = vector.broadcast %57 : vector<32x1xf32> to vector<32x32xf32>
    %59 = arith.mulf %49, %58 : vector<32x32xf32>
    %60 = vector.broadcast %42 : vector<1x32xf32> to vector<32x32xf32>
    %61 = arith.mulf %59, %60 : vector<32x32xf32>
    %62 = vector.broadcast %43 : vector<1x32xf32> to vector<32x32xf32>
    %63 = arith.addf %61, %62 : vector<32x32xf32>
    %64 = arith.truncf %63 : vector<32x32xf32> to vector<32x32xbf16>
    %c160 = arith.constant 160 : index
    %c0_22 = arith.constant 0 : index
    %65 = vector.load %arg3[%c160, %c0_22] : memref<656x128xbf16, #tpu.memory_space<vmem>>, vector<32x96xbf16>
    %cst_23 = arith.constant dense<0.000000e+00> : vector<32x96xf32>
    %66 = tpu.matmul %64, %65, %cst_23 {dimension_numbers = #tpu.dot_dimension_numbers<[1], [0], [0], [1], [0, 0, 1, 1], [], []>} : vector<32x32xbf16>, vector<32x96xbf16>, vector<32x96xf32> -> vector<32x96xf32>
    %67 = arith.truncf %66 : vector<32x96xf32> to vector<32x96xbf16>
    %c0_24 = arith.constant 0 : index
    %c0_25 = arith.constant 0 : index
    %68 = vector.load %arg2[%c0_24, %c0_25] : memref<48x128xf32, #tpu.memory_space<vmem>>, vector<16x128xf32>
    %c256 = arith.constant 256 : index
    %c0_26 = arith.constant 0 : index
    %69 = vector.load %arg3[%c256, %c0_26] : memref<656x128xbf16, #tpu.memory_space<vmem>>, vector<8x128xbf16>
    %c272 = arith.constant 272 : index
    %c0_27 = arith.constant 0 : index
    %70 = vector.load %arg3[%c272, %c0_27] : memref<656x128xbf16, #tpu.memory_space<vmem>>, vector<128x16xbf16>
    %cst_28 = arith.constant 0.000000e+00 : f32
    %71 = vector.broadcast %cst_28 : f32 to vector<16x32xf32>
    %72 = vector.extract_strided_slice %67 {offsets = [0, 0], sizes = [16, 8], strides = [1, 1]} : vector<32x96xbf16> to vector<16x8xbf16>
    %73 = vector.extract_strided_slice %67 {offsets = [0, 32], sizes = [16, 8], strides = [1, 1]} : vector<32x96xbf16> to vector<16x8xbf16>
    %74 = vector.extract_strided_slice %67 {offsets = [0, 64], sizes = [16, 8], strides = [1, 1]} : vector<32x96xbf16> to vector<16x8xbf16>
    %cst_29 = arith.constant dense<0.000000e+00> : vector<16x16xf32>
    %75 = tpu.matmul %72, %73, %cst_29 {dimension_numbers = #tpu.dot_dimension_numbers<[1], [1], [0], [0], [0, 0, 1, 0], [], []>} : vector<16x8xbf16>, vector<16x8xbf16>, vector<16x16xf32> -> vector<16x16xf32>
    %cst_30 = arith.constant dense<0.000000e+00> : vector<16x128xf32>
    %76 = tpu.matmul %72, %69, %cst_30 {dimension_numbers = #tpu.dot_dimension_numbers<[1], [0], [0], [1], [0, 0, 1, 1], [], []>} : vector<16x8xbf16>, vector<8x128xbf16>, vector<16x128xf32> -> vector<16x128xf32>
    %77 = arith.mulf %76, %68 : vector<16x128xf32>
    %78 = arith.truncf %77 : vector<16x128xf32> to vector<16x128xbf16>
    %cst_31 = arith.constant dense<0.000000e+00> : vector<16x16xf32>
    %79 = tpu.matmul %78, %70, %cst_31 {dimension_numbers = #tpu.dot_dimension_numbers<[1], [0], [0], [1], [0, 0, 1, 1], [], []>} : vector<16x128xbf16>, vector<128x16xbf16>, vector<16x16xf32> -> vector<16x16xf32>
    %80 = arith.addf %75, %79 : vector<16x16xf32>
    %cst_32 = arith.constant dense<0xFF800000> : vector<16xf32>
    %81 = vector.multi_reduction <maximumf>, %80, %cst_32 [1] : vector<16x16xf32> to vector<16xf32>
    %82 = vector.shape_cast %81 : vector<16xf32> to vector<16x1xf32>
    %83 = vector.broadcast %82 : vector<16x1xf32> to vector<16x16xf32>
    %84 = arith.subf %80, %83 : vector<16x16xf32>
    %85 = math.exp %84 : vector<16x16xf32>
    %cst_33 = arith.constant dense<0.000000e+00> : vector<16xf32>
    %86 = vector.multi_reduction <add>, %85, %cst_33 [1] : vector<16x16xf32> to vector<16xf32>
    %87 = vector.shape_cast %86 : vector<16xf32> to vector<16x1xf32>
    %88 = tpu.reciprocal %87 {approx = true} : vector<16x1xf32> -> vector<16x1xf32>
    %89 = vector.broadcast %88 : vector<16x1xf32> to vector<16x16xf32>
    %90 = arith.mulf %85, %89 : vector<16x16xf32>
    %91 = arith.truncf %90 : vector<16x16xf32> to vector<16x16xbf16>
    %cst_34 = arith.constant dense<0.000000e+00> : vector<16x8xf32>
    %92 = tpu.matmul %91, %74, %cst_34 {dimension_numbers = #tpu.dot_dimension_numbers<[1], [0], [0], [1], [0, 0, 1, 1], [], []>} : vector<16x16xbf16>, vector<16x8xbf16>, vector<16x8xf32> -> vector<16x8xf32>
    %93 = arith.truncf %92 : vector<16x8xf32> to vector<16x8xbf16>
    %c192 = arith.constant 192 : index
    %c0_35 = arith.constant 0 : index
    %94 = vector.load %arg3[%c192, %c0_35] : memref<656x128xbf16, #tpu.memory_space<vmem>>, vector<8x32xbf16>
    %cst_36 = arith.constant dense<0.000000e+00> : vector<16x32xf32>
    %95 = tpu.matmul %93, %94, %cst_36 {dimension_numbers = #tpu.dot_dimension_numbers<[1], [0], [0], [1], [0, 0, 1, 1], [], []>} : vector<16x8xbf16>, vector<8x32xbf16>, vector<16x32xf32> -> vector<16x32xf32>
    %96 = arith.addf %71, %95 : vector<16x32xf32>
    %97 = vector.extract_strided_slice %67 {offsets = [0, 8], sizes = [16, 8], strides = [1, 1]} : vector<32x96xbf16> to vector<16x8xbf16>
    %98 = vector.extract_strided_slice %67 {offsets = [0, 40], sizes = [16, 8], strides = [1, 1]} : vector<32x96xbf16> to vector<16x8xbf16>
    %99 = vector.extract_strided_slice %67 {offsets = [0, 72], sizes = [16, 8], strides = [1, 1]} : vector<32x96xbf16> to vector<16x8xbf16>
    %cst_37 = arith.constant dense<0.000000e+00> : vector<16x16xf32>
    %100 = tpu.matmul %97, %98, %cst_37 {dimension_numbers = #tpu.dot_dimension_numbers<[1], [1], [0], [0], [0, 0, 1, 0], [], []>} : vector<16x8xbf16>, vector<16x8xbf16>, vector<16x16xf32> -> vector<16x16xf32>
    %cst_38 = arith.constant dense<0.000000e+00> : vector<16x128xf32>
    %101 = tpu.matmul %97, %69, %cst_38 {dimension_numbers = #tpu.dot_dimension_numbers<[1], [0], [0], [1], [0, 0, 1, 1], [], []>} : vector<16x8xbf16>, vector<8x128xbf16>, vector<16x128xf32> -> vector<16x128xf32>
    %102 = arith.mulf %101, %68 : vector<16x128xf32>
    %103 = arith.truncf %102 : vector<16x128xf32> to vector<16x128xbf16>
    %cst_39 = arith.constant dense<0.000000e+00> : vector<16x16xf32>
    %104 = tpu.matmul %103, %70, %cst_39 {dimension_numbers = #tpu.dot_dimension_numbers<[1], [0], [0], [1], [0, 0, 1, 1], [], []>} : vector<16x128xbf16>, vector<128x16xbf16>, vector<16x16xf32> -> vector<16x16xf32>
    %105 = arith.addf %100, %104 : vector<16x16xf32>
    %cst_40 = arith.constant dense<0xFF800000> : vector<16xf32>
    %106 = vector.multi_reduction <maximumf>, %105, %cst_40 [1] : vector<16x16xf32> to vector<16xf32>
    %107 = vector.shape_cast %106 : vector<16xf32> to vector<16x1xf32>
    %108 = vector.broadcast %107 : vector<16x1xf32> to vector<16x16xf32>
    %109 = arith.subf %105, %108 : vector<16x16xf32>
    %110 = math.exp %109 : vector<16x16xf32>
    %cst_41 = arith.constant dense<0.000000e+00> : vector<16xf32>
    %111 = vector.multi_reduction <add>, %110, %cst_41 [1] : vector<16x16xf32> to vector<16xf32>
    %112 = vector.shape_cast %111 : vector<16xf32> to vector<16x1xf32>
    %113 = tpu.reciprocal %112 {approx = true} : vector<16x1xf32> -> vector<16x1xf32>
    %114 = vector.broadcast %113 : vector<16x1xf32> to vector<16x16xf32>
    %115 = arith.mulf %110, %114 : vector<16x16xf32>
    %116 = arith.truncf %115 : vector<16x16xf32> to vector<16x16xbf16>
    %cst_42 = arith.constant dense<0.000000e+00> : vector<16x8xf32>
    %117 = tpu.matmul %116, %99, %cst_42 {dimension_numbers = #tpu.dot_dimension_numbers<[1], [0], [0], [1], [0, 0, 1, 1], [], []>} : vector<16x16xbf16>, vector<16x8xbf16>, vector<16x8xf32> -> vector<16x8xf32>
    %118 = arith.truncf %117 : vector<16x8xf32> to vector<16x8xbf16>
    %c208 = arith.constant 208 : index
    %c0_43 = arith.constant 0 : index
    %119 = vector.load %arg3[%c208, %c0_43] : memref<656x128xbf16, #tpu.memory_space<vmem>>, vector<8x32xbf16>
    %cst_44 = arith.constant dense<0.000000e+00> : vector<16x32xf32>
    %120 = tpu.matmul %118, %119, %cst_44 {dimension_numbers = #tpu.dot_dimension_numbers<[1], [0], [0], [1], [0, 0, 1, 1], [], []>} : vector<16x8xbf16>, vector<8x32xbf16>, vector<16x32xf32> -> vector<16x32xf32>
    %121 = arith.addf %96, %120 : vector<16x32xf32>
    %122 = vector.extract_strided_slice %67 {offsets = [0, 16], sizes = [16, 8], strides = [1, 1]} : vector<32x96xbf16> to vector<16x8xbf16>
    %123 = vector.extract_strided_slice %67 {offsets = [0, 48], sizes = [16, 8], strides = [1, 1]} : vector<32x96xbf16> to vector<16x8xbf16>
    %124 = vector.extract_strided_slice %67 {offsets = [0, 80], sizes = [16, 8], strides = [1, 1]} : vector<32x96xbf16> to vector<16x8xbf16>
    %cst_45 = arith.constant dense<0.000000e+00> : vector<16x16xf32>
    %125 = tpu.matmul %122, %123, %cst_45 {dimension_numbers = #tpu.dot_dimension_numbers<[1], [1], [0], [0], [0, 0, 1, 0], [], []>} : vector<16x8xbf16>, vector<16x8xbf16>, vector<16x16xf32> -> vector<16x16xf32>
    %cst_46 = arith.constant dense<0.000000e+00> : vector<16x128xf32>
    %126 = tpu.matmul %122, %69, %cst_46 {dimension_numbers = #tpu.dot_dimension_numbers<[1], [0], [0], [1], [0, 0, 1, 1], [], []>} : vector<16x8xbf16>, vector<8x128xbf16>, vector<16x128xf32> -> vector<16x128xf32>
    %127 = arith.mulf %126, %68 : vector<16x128xf32>
    %128 = arith.truncf %127 : vector<16x128xf32> to vector<16x128xbf16>
    %cst_47 = arith.constant dense<0.000000e+00> : vector<16x16xf32>
    %129 = tpu.matmul %128, %70, %cst_47 {dimension_numbers = #tpu.dot_dimension_numbers<[1], [0], [0], [1], [0, 0, 1, 1], [], []>} : vector<16x128xbf16>, vector<128x16xbf16>, vector<16x16xf32> -> vector<16x16xf32>
    %130 = arith.addf %125, %129 : vector<16x16xf32>
    %cst_48 = arith.constant dense<0xFF800000> : vector<16xf32>
    %131 = vector.multi_reduction <maximumf>, %130, %cst_48 [1] : vector<16x16xf32> to vector<16xf32>
    %132 = vector.shape_cast %131 : vector<16xf32> to vector<16x1xf32>
    %133 = vector.broadcast %132 : vector<16x1xf32> to vector<16x16xf32>
    %134 = arith.subf %130, %133 : vector<16x16xf32>
    %135 = math.exp %134 : vector<16x16xf32>
    %cst_49 = arith.constant dense<0.000000e+00> : vector<16xf32>
    %136 = vector.multi_reduction <add>, %135, %cst_49 [1] : vector<16x16xf32> to vector<16xf32>
    %137 = vector.shape_cast %136 : vector<16xf32> to vector<16x1xf32>
    %138 = tpu.reciprocal %137 {approx = true} : vector<16x1xf32> -> vector<16x1xf32>
    %139 = vector.broadcast %138 : vector<16x1xf32> to vector<16x16xf32>
    %140 = arith.mulf %135, %139 : vector<16x16xf32>
    %141 = arith.truncf %140 : vector<16x16xf32> to vector<16x16xbf16>
    %cst_50 = arith.constant dense<0.000000e+00> : vector<16x8xf32>
    %142 = tpu.matmul %141, %124, %cst_50 {dimension_numbers = #tpu.dot_dimension_numbers<[1], [0], [0], [1], [0, 0, 1, 1], [], []>} : vector<16x16xbf16>, vector<16x8xbf16>, vector<16x8xf32> -> vector<16x8xf32>
    %143 = arith.truncf %142 : vector<16x8xf32> to vector<16x8xbf16>
    %c224 = arith.constant 224 : index
    %c0_51 = arith.constant 0 : index
    %144 = vector.load %arg3[%c224, %c0_51] : memref<656x128xbf16, #tpu.memory_space<vmem>>, vector<8x32xbf16>
    %cst_52 = arith.constant dense<0.000000e+00> : vector<16x32xf32>
    %145 = tpu.matmul %143, %144, %cst_52 {dimension_numbers = #tpu.dot_dimension_numbers<[1], [0], [0], [1], [0, 0, 1, 1], [], []>} : vector<16x8xbf16>, vector<8x32xbf16>, vector<16x32xf32> -> vector<16x32xf32>
    %146 = arith.addf %121, %145 : vector<16x32xf32>
    %147 = vector.extract_strided_slice %67 {offsets = [0, 24], sizes = [16, 8], strides = [1, 1]} : vector<32x96xbf16> to vector<16x8xbf16>
    %148 = vector.extract_strided_slice %67 {offsets = [0, 56], sizes = [16, 8], strides = [1, 1]} : vector<32x96xbf16> to vector<16x8xbf16>
    %149 = vector.extract_strided_slice %67 {offsets = [0, 88], sizes = [16, 8], strides = [1, 1]} : vector<32x96xbf16> to vector<16x8xbf16>
    %cst_53 = arith.constant dense<0.000000e+00> : vector<16x16xf32>
    %150 = tpu.matmul %147, %148, %cst_53 {dimension_numbers = #tpu.dot_dimension_numbers<[1], [1], [0], [0], [0, 0, 1, 0], [], []>} : vector<16x8xbf16>, vector<16x8xbf16>, vector<16x16xf32> -> vector<16x16xf32>
    %cst_54 = arith.constant dense<0.000000e+00> : vector<16x128xf32>
    %151 = tpu.matmul %147, %69, %cst_54 {dimension_numbers = #tpu.dot_dimension_numbers<[1], [0], [0], [1], [0, 0, 1, 1], [], []>} : vector<16x8xbf16>, vector<8x128xbf16>, vector<16x128xf32> -> vector<16x128xf32>
    %152 = arith.mulf %151, %68 : vector<16x128xf32>
    %153 = arith.truncf %152 : vector<16x128xf32> to vector<16x128xbf16>
    %cst_55 = arith.constant dense<0.000000e+00> : vector<16x16xf32>
    %154 = tpu.matmul %153, %70, %cst_55 {dimension_numbers = #tpu.dot_dimension_numbers<[1], [0], [0], [1], [0, 0, 1, 1], [], []>} : vector<16x128xbf16>, vector<128x16xbf16>, vector<16x16xf32> -> vector<16x16xf32>
    %155 = arith.addf %150, %154 : vector<16x16xf32>
    %cst_56 = arith.constant dense<0xFF800000> : vector<16xf32>
    %156 = vector.multi_reduction <maximumf>, %155, %cst_56 [1] : vector<16x16xf32> to vector<16xf32>
    %157 = vector.shape_cast %156 : vector<16xf32> to vector<16x1xf32>
    %158 = vector.broadcast %157 : vector<16x1xf32> to vector<16x16xf32>
    %159 = arith.subf %155, %158 : vector<16x16xf32>
    %160 = math.exp %159 : vector<16x16xf32>
    %cst_57 = arith.constant dense<0.000000e+00> : vector<16xf32>
    %161 = vector.multi_reduction <add>, %160, %cst_57 [1] : vector<16x16xf32> to vector<16xf32>
    %162 = vector.shape_cast %161 : vector<16xf32> to vector<16x1xf32>
    %163 = tpu.reciprocal %162 {approx = true} : vector<16x1xf32> -> vector<16x1xf32>
    %164 = vector.broadcast %163 : vector<16x1xf32> to vector<16x16xf32>
    %165 = arith.mulf %160, %164 : vector<16x16xf32>
    %166 = arith.truncf %165 : vector<16x16xf32> to vector<16x16xbf16>
    %cst_58 = arith.constant dense<0.000000e+00> : vector<16x8xf32>
    %167 = tpu.matmul %166, %149, %cst_58 {dimension_numbers = #tpu.dot_dimension_numbers<[1], [0], [0], [1], [0, 0, 1, 1], [], []>} : vector<16x16xbf16>, vector<16x8xbf16>, vector<16x8xf32> -> vector<16x8xf32>
    %168 = arith.truncf %167 : vector<16x8xf32> to vector<16x8xbf16>
    %c240 = arith.constant 240 : index
    %c0_59 = arith.constant 0 : index
    %169 = vector.load %arg3[%c240, %c0_59] : memref<656x128xbf16, #tpu.memory_space<vmem>>, vector<8x32xbf16>
    %cst_60 = arith.constant dense<0.000000e+00> : vector<16x32xf32>
    %170 = tpu.matmul %168, %169, %cst_60 {dimension_numbers = #tpu.dot_dimension_numbers<[1], [0], [0], [1], [0, 0, 1, 1], [], []>} : vector<16x8xbf16>, vector<8x32xbf16>, vector<16x32xf32> -> vector<16x32xf32>
    %171 = arith.addf %146, %170 : vector<16x32xf32>
    %cst_61 = arith.constant 0.000000e+00 : f32
    %172 = vector.broadcast %cst_61 : f32 to vector<16x32xf32>
    %173 = vector.extract_strided_slice %67 {offsets = [16, 0], sizes = [16, 8], strides = [1, 1]} : vector<32x96xbf16> to vector<16x8xbf16>
    %174 = vector.extract_strided_slice %67 {offsets = [16, 32], sizes = [16, 8], strides = [1, 1]} : vector<32x96xbf16> to vector<16x8xbf16>
    %175 = vector.extract_strided_slice %67 {offsets = [16, 64], sizes = [16, 8], strides = [1, 1]} : vector<32x96xbf16> to vector<16x8xbf16>
    %cst_62 = arith.constant dense<0.000000e+00> : vector<16x16xf32>
    %176 = tpu.matmul %173, %174, %cst_62 {dimension_numbers = #tpu.dot_dimension_numbers<[1], [1], [0], [0], [0, 0, 1, 0], [], []>} : vector<16x8xbf16>, vector<16x8xbf16>, vector<16x16xf32> -> vector<16x16xf32>
    %cst_63 = arith.constant dense<0.000000e+00> : vector<16x128xf32>
    %177 = tpu.matmul %173, %69, %cst_63 {dimension_numbers = #tpu.dot_dimension_numbers<[1], [0], [0], [1], [0, 0, 1, 1], [], []>} : vector<16x8xbf16>, vector<8x128xbf16>, vector<16x128xf32> -> vector<16x128xf32>
    %178 = arith.mulf %177, %68 : vector<16x128xf32>
    %179 = arith.truncf %178 : vector<16x128xf32> to vector<16x128xbf16>
    %cst_64 = arith.constant dense<0.000000e+00> : vector<16x16xf32>
    %180 = tpu.matmul %179, %70, %cst_64 {dimension_numbers = #tpu.dot_dimension_numbers<[1], [0], [0], [1], [0, 0, 1, 1], [], []>} : vector<16x128xbf16>, vector<128x16xbf16>, vector<16x16xf32> -> vector<16x16xf32>
    %181 = arith.addf %176, %180 : vector<16x16xf32>
    %cst_65 = arith.constant dense<0xFF800000> : vector<16xf32>
    %182 = vector.multi_reduction <maximumf>, %181, %cst_65 [1] : vector<16x16xf32> to vector<16xf32>
    %183 = vector.shape_cast %182 : vector<16xf32> to vector<16x1xf32>
    %184 = vector.broadcast %183 : vector<16x1xf32> to vector<16x16xf32>
    %185 = arith.subf %181, %184 : vector<16x16xf32>
    %186 = math.exp %185 : vector<16x16xf32>
    %cst_66 = arith.constant dense<0.000000e+00> : vector<16xf32>
    %187 = vector.multi_reduction <add>, %186, %cst_66 [1] : vector<16x16xf32> to vector<16xf32>
    %188 = vector.shape_cast %187 : vector<16xf32> to vector<16x1xf32>
    %189 = tpu.reciprocal %188 {approx = true} : vector<16x1xf32> -> vector<16x1xf32>
    %190 = vector.broadcast %189 : vector<16x1xf32> to vector<16x16xf32>
    %191 = arith.mulf %186, %190 : vector<16x16xf32>
    %192 = arith.truncf %191 : vector<16x16xf32> to vector<16x16xbf16>
    %cst_67 = arith.constant dense<0.000000e+00> : vector<16x8xf32>
    %193 = tpu.matmul %192, %175, %cst_67 {dimension_numbers = #tpu.dot_dimension_numbers<[1], [0], [0], [1], [0, 0, 1, 1], [], []>} : vector<16x16xbf16>, vector<16x8xbf16>, vector<16x8xf32> -> vector<16x8xf32>
    %194 = arith.truncf %193 : vector<16x8xf32> to vector<16x8xbf16>
    %c192_68 = arith.constant 192 : index
    %c0_69 = arith.constant 0 : index
    %195 = vector.load %arg3[%c192_68, %c0_69] : memref<656x128xbf16, #tpu.memory_space<vmem>>, vector<8x32xbf16>
    %cst_70 = arith.constant dense<0.000000e+00> : vector<16x32xf32>
    %196 = tpu.matmul %194, %195, %cst_70 {dimension_numbers = #tpu.dot_dimension_numbers<[1], [0], [0], [1], [0, 0, 1, 1], [], []>} : vector<16x8xbf16>, vector<8x32xbf16>, vector<16x32xf32> -> vector<16x32xf32>
    %197 = arith.addf %172, %196 : vector<16x32xf32>
    %198 = vector.extract_strided_slice %67 {offsets = [16, 8], sizes = [16, 8], strides = [1, 1]} : vector<32x96xbf16> to vector<16x8xbf16>
    %199 = vector.extract_strided_slice %67 {offsets = [16, 40], sizes = [16, 8], strides = [1, 1]} : vector<32x96xbf16> to vector<16x8xbf16>
    %200 = vector.extract_strided_slice %67 {offsets = [16, 72], sizes = [16, 8], strides = [1, 1]} : vector<32x96xbf16> to vector<16x8xbf16>
    %cst_71 = arith.constant dense<0.000000e+00> : vector<16x16xf32>
    %201 = tpu.matmul %198, %199, %cst_71 {dimension_numbers = #tpu.dot_dimension_numbers<[1], [1], [0], [0], [0, 0, 1, 0], [], []>} : vector<16x8xbf16>, vector<16x8xbf16>, vector<16x16xf32> -> vector<16x16xf32>
    %cst_72 = arith.constant dense<0.000000e+00> : vector<16x128xf32>
    %202 = tpu.matmul %198, %69, %cst_72 {dimension_numbers = #tpu.dot_dimension_numbers<[1], [0], [0], [1], [0, 0, 1, 1], [], []>} : vector<16x8xbf16>, vector<8x128xbf16>, vector<16x128xf32> -> vector<16x128xf32>
    %203 = arith.mulf %202, %68 : vector<16x128xf32>
    %204 = arith.truncf %203 : vector<16x128xf32> to vector<16x128xbf16>
    %cst_73 = arith.constant dense<0.000000e+00> : vector<16x16xf32>
    %205 = tpu.matmul %204, %70, %cst_73 {dimension_numbers = #tpu.dot_dimension_numbers<[1], [0], [0], [1], [0, 0, 1, 1], [], []>} : vector<16x128xbf16>, vector<128x16xbf16>, vector<16x16xf32> -> vector<16x16xf32>
    %206 = arith.addf %201, %205 : vector<16x16xf32>
    %cst_74 = arith.constant dense<0xFF800000> : vector<16xf32>
    %207 = vector.multi_reduction <maximumf>, %206, %cst_74 [1] : vector<16x16xf32> to vector<16xf32>
    %208 = vector.shape_cast %207 : vector<16xf32> to vector<16x1xf32>
    %209 = vector.broadcast %208 : vector<16x1xf32> to vector<16x16xf32>
    %210 = arith.subf %206, %209 : vector<16x16xf32>
    %211 = math.exp %210 : vector<16x16xf32>
    %cst_75 = arith.constant dense<0.000000e+00> : vector<16xf32>
    %212 = vector.multi_reduction <add>, %211, %cst_75 [1] : vector<16x16xf32> to vector<16xf32>
    %213 = vector.shape_cast %212 : vector<16xf32> to vector<16x1xf32>
    %214 = tpu.reciprocal %213 {approx = true} : vector<16x1xf32> -> vector<16x1xf32>
    %215 = vector.broadcast %214 : vector<16x1xf32> to vector<16x16xf32>
    %216 = arith.mulf %211, %215 : vector<16x16xf32>
    %217 = arith.truncf %216 : vector<16x16xf32> to vector<16x16xbf16>
    %cst_76 = arith.constant dense<0.000000e+00> : vector<16x8xf32>
    %218 = tpu.matmul %217, %200, %cst_76 {dimension_numbers = #tpu.dot_dimension_numbers<[1], [0], [0], [1], [0, 0, 1, 1], [], []>} : vector<16x16xbf16>, vector<16x8xbf16>, vector<16x8xf32> -> vector<16x8xf32>
    %219 = arith.truncf %218 : vector<16x8xf32> to vector<16x8xbf16>
    %c208_77 = arith.constant 208 : index
    %c0_78 = arith.constant 0 : index
    %220 = vector.load %arg3[%c208_77, %c0_78] : memref<656x128xbf16, #tpu.memory_space<vmem>>, vector<8x32xbf16>
    %cst_79 = arith.constant dense<0.000000e+00> : vector<16x32xf32>
    %221 = tpu.matmul %219, %220, %cst_79 {dimension_numbers = #tpu.dot_dimension_numbers<[1], [0], [0], [1], [0, 0, 1, 1], [], []>} : vector<16x8xbf16>, vector<8x32xbf16>, vector<16x32xf32> -> vector<16x32xf32>
    %222 = arith.addf %197, %221 : vector<16x32xf32>
    %223 = vector.extract_strided_slice %67 {offsets = [16, 16], sizes = [16, 8], strides = [1, 1]} : vector<32x96xbf16> to vector<16x8xbf16>
    %224 = vector.extract_strided_slice %67 {offsets = [16, 48], sizes = [16, 8], strides = [1, 1]} : vector<32x96xbf16> to vector<16x8xbf16>
    %225 = vector.extract_strided_slice %67 {offsets = [16, 80], sizes = [16, 8], strides = [1, 1]} : vector<32x96xbf16> to vector<16x8xbf16>
    %cst_80 = arith.constant dense<0.000000e+00> : vector<16x16xf32>
    %226 = tpu.matmul %223, %224, %cst_80 {dimension_numbers = #tpu.dot_dimension_numbers<[1], [1], [0], [0], [0, 0, 1, 0], [], []>} : vector<16x8xbf16>, vector<16x8xbf16>, vector<16x16xf32> -> vector<16x16xf32>
    %cst_81 = arith.constant dense<0.000000e+00> : vector<16x128xf32>
    %227 = tpu.matmul %223, %69, %cst_81 {dimension_numbers = #tpu.dot_dimension_numbers<[1], [0], [0], [1], [0, 0, 1, 1], [], []>} : vector<16x8xbf16>, vector<8x128xbf16>, vector<16x128xf32> -> vector<16x128xf32>
    %228 = arith.mulf %227, %68 : vector<16x128xf32>
    %229 = arith.truncf %228 : vector<16x128xf32> to vector<16x128xbf16>
    %cst_82 = arith.constant dense<0.000000e+00> : vector<16x16xf32>
    %230 = tpu.matmul %229, %70, %cst_82 {dimension_numbers = #tpu.dot_dimension_numbers<[1], [0], [0], [1], [0, 0, 1, 1], [], []>} : vector<16x128xbf16>, vector<128x16xbf16>, vector<16x16xf32> -> vector<16x16xf32>
    %231 = arith.addf %226, %230 : vector<16x16xf32>
    %cst_83 = arith.constant dense<0xFF800000> : vector<16xf32>
    %232 = vector.multi_reduction <maximumf>, %231, %cst_83 [1] : vector<16x16xf32> to vector<16xf32>
    %233 = vector.shape_cast %232 : vector<16xf32> to vector<16x1xf32>
    %234 = vector.broadcast %233 : vector<16x1xf32> to vector<16x16xf32>
    %235 = arith.subf %231, %234 : vector<16x16xf32>
    %236 = math.exp %235 : vector<16x16xf32>
    %cst_84 = arith.constant dense<0.000000e+00> : vector<16xf32>
    %237 = vector.multi_reduction <add>, %236, %cst_84 [1] : vector<16x16xf32> to vector<16xf32>
    %238 = vector.shape_cast %237 : vector<16xf32> to vector<16x1xf32>
    %239 = tpu.reciprocal %238 {approx = true} : vector<16x1xf32> -> vector<16x1xf32>
    %240 = vector.broadcast %239 : vector<16x1xf32> to vector<16x16xf32>
    %241 = arith.mulf %236, %240 : vector<16x16xf32>
    %242 = arith.truncf %241 : vector<16x16xf32> to vector<16x16xbf16>
    %cst_85 = arith.constant dense<0.000000e+00> : vector<16x8xf32>
    %243 = tpu.matmul %242, %225, %cst_85 {dimension_numbers = #tpu.dot_dimension_numbers<[1], [0], [0], [1], [0, 0, 1, 1], [], []>} : vector<16x16xbf16>, vector<16x8xbf16>, vector<16x8xf32> -> vector<16x8xf32>
    %244 = arith.truncf %243 : vector<16x8xf32> to vector<16x8xbf16>
    %c224_86 = arith.constant 224 : index
    %c0_87 = arith.constant 0 : index
    %245 = vector.load %arg3[%c224_86, %c0_87] : memref<656x128xbf16, #tpu.memory_space<vmem>>, vector<8x32xbf16>
    %cst_88 = arith.constant dense<0.000000e+00> : vector<16x32xf32>
    %246 = tpu.matmul %244, %245, %cst_88 {dimension_numbers = #tpu.dot_dimension_numbers<[1], [0], [0], [1], [0, 0, 1, 1], [], []>} : vector<16x8xbf16>, vector<8x32xbf16>, vector<16x32xf32> -> vector<16x32xf32>
    %247 = arith.addf %222, %246 : vector<16x32xf32>
    %248 = vector.extract_strided_slice %67 {offsets = [16, 24], sizes = [16, 8], strides = [1, 1]} : vector<32x96xbf16> to vector<16x8xbf16>
    %249 = vector.extract_strided_slice %67 {offsets = [16, 56], sizes = [16, 8], strides = [1, 1]} : vector<32x96xbf16> to vector<16x8xbf16>
    %250 = vector.extract_strided_slice %67 {offsets = [16, 88], sizes = [16, 8], strides = [1, 1]} : vector<32x96xbf16> to vector<16x8xbf16>
    %cst_89 = arith.constant dense<0.000000e+00> : vector<16x16xf32>
    %251 = tpu.matmul %248, %249, %cst_89 {dimension_numbers = #tpu.dot_dimension_numbers<[1], [1], [0], [0], [0, 0, 1, 0], [], []>} : vector<16x8xbf16>, vector<16x8xbf16>, vector<16x16xf32> -> vector<16x16xf32>
    %cst_90 = arith.constant dense<0.000000e+00> : vector<16x128xf32>
    %252 = tpu.matmul %248, %69, %cst_90 {dimension_numbers = #tpu.dot_dimension_numbers<[1], [0], [0], [1], [0, 0, 1, 1], [], []>} : vector<16x8xbf16>, vector<8x128xbf16>, vector<16x128xf32> -> vector<16x128xf32>
    %253 = arith.mulf %252, %68 : vector<16x128xf32>
    %254 = arith.truncf %253 : vector<16x128xf32> to vector<16x128xbf16>
    %cst_91 = arith.constant dense<0.000000e+00> : vector<16x16xf32>
    %255 = tpu.matmul %254, %70, %cst_91 {dimension_numbers = #tpu.dot_dimension_numbers<[1], [0], [0], [1], [0, 0, 1, 1], [], []>} : vector<16x128xbf16>, vector<128x16xbf16>, vector<16x16xf32> -> vector<16x16xf32>
    %256 = arith.addf %251, %255 : vector<16x16xf32>
    %cst_92 = arith.constant dense<0xFF800000> : vector<16xf32>
    %257 = vector.multi_reduction <maximumf>, %256, %cst_92 [1] : vector<16x16xf32> to vector<16xf32>
    %258 = vector.shape_cast %257 : vector<16xf32> to vector<16x1xf32>
    %259 = vector.broadcast %258 : vector<16x1xf32> to vector<16x16xf32>
    %260 = arith.subf %256, %259 : vector<16x16xf32>
    %261 = math.exp %260 : vector<16x16xf32>
    %cst_93 = arith.constant dense<0.000000e+00> : vector<16xf32>
    %262 = vector.multi_reduction <add>, %261, %cst_93 [1] : vector<16x16xf32> to vector<16xf32>
    %263 = vector.shape_cast %262 : vector<16xf32> to vector<16x1xf32>
    %264 = tpu.reciprocal %263 {approx = true} : vector<16x1xf32> -> vector<16x1xf32>
    %265 = vector.broadcast %264 : vector<16x1xf32> to vector<16x16xf32>
    %266 = arith.mulf %261, %265 : vector<16x16xf32>
    %267 = arith.truncf %266 : vector<16x16xf32> to vector<16x16xbf16>
    %cst_94 = arith.constant dense<0.000000e+00> : vector<16x8xf32>
    %268 = tpu.matmul %267, %250, %cst_94 {dimension_numbers = #tpu.dot_dimension_numbers<[1], [0], [0], [1], [0, 0, 1, 1], [], []>} : vector<16x16xbf16>, vector<16x8xbf16>, vector<16x8xf32> -> vector<16x8xf32>
    %269 = arith.truncf %268 : vector<16x8xf32> to vector<16x8xbf16>
    %c240_95 = arith.constant 240 : index
    %c0_96 = arith.constant 0 : index
    %270 = vector.load %arg3[%c240_95, %c0_96] : memref<656x128xbf16, #tpu.memory_space<vmem>>, vector<8x32xbf16>
    %cst_97 = arith.constant dense<0.000000e+00> : vector<16x32xf32>
    %271 = tpu.matmul %269, %270, %cst_97 {dimension_numbers = #tpu.dot_dimension_numbers<[1], [0], [0], [1], [0, 0, 1, 1], [], []>} : vector<16x8xbf16>, vector<8x32xbf16>, vector<16x32xf32> -> vector<16x32xf32>
    %272 = arith.addf %247, %271 : vector<16x32xf32>
    %273 = tpu.concatenate %171, %272 in 0 : vector<16x32xf32>, vector<16x32xf32> -> vector<32x32xf32>
    %c29 = arith.constant 29 : index
    %c0_98 = arith.constant 0 : index
    %274 = vector.load %arg2[%c29, %c0_98] : memref<48x128xf32, #tpu.memory_space<vmem>>, vector<1x32xf32>
    %275 = vector.broadcast %274 : vector<1x32xf32> to vector<32x32xf32>
    %276 = arith.addf %273, %275 : vector<32x32xf32>
    %277 = arith.addf %276, %41 : vector<32x32xf32>
    %c30 = arith.constant 30 : index
    %c0_99 = arith.constant 0 : index
    %278 = vector.load %arg2[%c30, %c0_99] : memref<48x128xf32, #tpu.memory_space<vmem>>, vector<1x32xf32>
    %c31 = arith.constant 31 : index
    %c0_100 = arith.constant 0 : index
    %279 = vector.load %arg2[%c31, %c0_100] : memref<48x128xf32, #tpu.memory_space<vmem>>, vector<1x32xf32>
    %cst_101 = arith.constant dense<0.000000e+00> : vector<32xf32>
    %280 = vector.multi_reduction <add>, %277, %cst_101 [1] : vector<32x32xf32> to vector<32xf32>
    %281 = vector.shape_cast %280 : vector<32xf32> to vector<32x1xf32>
    %cst_102 = arith.constant 3.200000e+01 : f32
    %282 = vector.broadcast %cst_102 : f32 to vector<32x1xf32>
    %283 = arith.divf %281, %282 : vector<32x1xf32>
    %284 = vector.broadcast %283 : vector<32x1xf32> to vector<32x32xf32>
    %285 = arith.subf %277, %284 : vector<32x32xf32>
    %286 = arith.mulf %285, %285 : vector<32x32xf32>
    %cst_103 = arith.constant dense<0.000000e+00> : vector<32xf32>
    %287 = vector.multi_reduction <add>, %286, %cst_103 [1] : vector<32x32xf32> to vector<32xf32>
    %288 = vector.shape_cast %287 : vector<32xf32> to vector<32x1xf32>
    %cst_104 = arith.constant 3.200000e+01 : f32
    %289 = vector.broadcast %cst_104 : f32 to vector<32x1xf32>
    %290 = arith.divf %288, %289 : vector<32x1xf32>
    %cst_105 = arith.constant 9.99999974E-6 : f32
    %291 = vector.broadcast %cst_105 : f32 to vector<32x1xf32>
    %292 = arith.addf %290, %291 : vector<32x1xf32>
    %293 = math.rsqrt %292 : vector<32x1xf32>
    %294 = vector.broadcast %293 : vector<32x1xf32> to vector<32x32xf32>
    %295 = arith.mulf %285, %294 : vector<32x32xf32>
    %296 = vector.broadcast %278 : vector<1x32xf32> to vector<32x32xf32>
    %297 = arith.mulf %295, %296 : vector<32x32xf32>
    %298 = vector.broadcast %279 : vector<1x32xf32> to vector<32x32xf32>
    %299 = arith.addf %297, %298 : vector<32x32xf32>
    %300 = arith.truncf %299 : vector<32x32xf32> to vector<32x32xbf16>
    %c400 = arith.constant 400 : index
    %c0_106 = arith.constant 0 : index
    %301 = vector.load %arg3[%c400, %c0_106] : memref<656x128xbf16, #tpu.memory_space<vmem>>, vector<32x128xbf16>
    %cst_107 = arith.constant dense<0.000000e+00> : vector<32x128xf32>
    %302 = tpu.matmul %300, %301, %cst_107 {dimension_numbers = #tpu.dot_dimension_numbers<[1], [0], [0], [1], [0, 0, 1, 1], [], []>} : vector<32x32xbf16>, vector<32x128xbf16>, vector<32x128xf32> -> vector<32x128xf32>
    %c32_108 = arith.constant 32 : index
    %c0_109 = arith.constant 0 : index
    %303 = vector.load %arg2[%c32_108, %c0_109] : memref<48x128xf32, #tpu.memory_space<vmem>>, vector<1x128xf32>
    %304 = vector.broadcast %303 : vector<1x128xf32> to vector<32x128xf32>
    %305 = arith.addf %302, %304 : vector<32x128xf32>
    %306 = vector.extract_strided_slice %305 {offsets = [0, 0], sizes = [32, 64], strides = [1, 1]} : vector<32x128xf32> to vector<32x64xf32>
    %307 = vector.extract_strided_slice %305 {offsets = [0, 64], sizes = [32, 64], strides = [1, 1]} : vector<32x128xf32> to vector<32x64xf32>
    %308 = arith.negf %307 : vector<32x64xf32>
    %309 = math.exp %308 : vector<32x64xf32>
    %cst_110 = arith.constant 1.000000e+00 : f32
    %310 = vector.broadcast %cst_110 : f32 to vector<32x64xf32>
    %311 = arith.addf %310, %309 : vector<32x64xf32>
    %312 = arith.divf %310, %311 : vector<32x64xf32>
    %313 = arith.mulf %306, %312 : vector<32x64xf32>
    %c16 = arith.constant 16 : index
    %c0_111 = arith.constant 0 : index
    %314 = vector.load %arg2[%c16, %c0_111] : memref<48x128xf32, #tpu.memory_space<vmem>>, vector<7x64xf32>
    %315 = tpu.iota {dimensions = array<i32: 0>} : vector<32x1xi32>
    %c16_i32 = arith.constant 16 : i32
    %c0_i32 = arith.constant 0 : i32
    %316 = arith.cmpi eq, %c16_i32, %c0_i32 : i32
    %c1_i32 = arith.constant 1 : i32
    %317 = arith.select %316, %c1_i32, %c16_i32 : i32
    %318 = vector.broadcast %317 : i32 to vector<32x1xi32>
    %319 = arith.remsi %315, %318 : vector<32x1xi32>
    %c0_i32_112 = arith.constant 0 : i32
    %320 = vector.broadcast %c0_i32_112 : i32 to vector<32x1xi32>
    %321 = arith.cmpi ne, %319, %320 : vector<32x1xi32>
    %c0_i32_113 = arith.constant 0 : i32
    %322 = vector.broadcast %c0_i32_113 : i32 to vector<32x1xi32>
    %323 = arith.cmpi slt, %319, %322 : vector<32x1xi32>
    %c0_i32_114 = arith.constant 0 : i32
    %324 = arith.cmpi slt, %317, %c0_i32_114 : i32
    %325 = vector.broadcast %324 : i1 to vector<32x1xi1>
    %326 = vector.broadcast %325 : vector<32x1xi1> to vector<32x1xi1>
    %327 = arith.xori %323, %326 : vector<32x1xi1>
    %328 = arith.andi %327, %321 : vector<32x1xi1>
    %329 = vector.broadcast %317 : i32 to vector<32x1xi32>
    %330 = arith.addi %319, %329 : vector<32x1xi32>
    %331 = arith.select %328, %330, %319 : vector<32x1xi1>, vector<32x1xi32>
    %332 = vector.extract_strided_slice %314 {offsets = [3, 0], sizes = [1, 64], strides = [1, 1]} : vector<7x64xf32> to vector<1x64xf32>
    %333 = vector.broadcast %332 : vector<1x64xf32> to vector<32x64xf32>
    %334 = arith.mulf %313, %333 : vector<32x64xf32>
    %c3_i32 = arith.constant 3 : i32
    %335 = tpu.dynamic_rotate %313 by %c3_i32 dim 0 : vector<32x64xf32>, i32 -> vector<32x64xf32>
    %c-3_i32 = arith.constant -3 : i32
    %336 = vector.broadcast %c-3_i32 : i32 to vector<32x1xi32>
    %337 = arith.addi %331, %336 : vector<32x1xi32>
    %c0_i32_115 = arith.constant 0 : i32
    %338 = vector.broadcast %c0_i32_115 : i32 to vector<32x1xi32>
    %339 = arith.cmpi sge, %337, %338 : vector<32x1xi32>
    %c-3_i32_116 = arith.constant -3 : i32
    %340 = vector.broadcast %c-3_i32_116 : i32 to vector<32x1xi32>
    %341 = arith.addi %331, %340 : vector<32x1xi32>
    %c16_i32_117 = arith.constant 16 : i32
    %342 = vector.broadcast %c16_i32_117 : i32 to vector<32x1xi32>
    %343 = arith.cmpi slt, %341, %342 : vector<32x1xi32>
    %344 = arith.andi %339, %343 : vector<32x1xi1>
    %cst_118 = arith.constant 0.000000e+00 : f32
    %345 = vector.shape_cast %344 : vector<32x1xi1> to vector<32x1xi1>
    %346 = vector.broadcast %345 : vector<32x1xi1> to vector<32x64xi1>
    %347 = vector.broadcast %cst_118 : f32 to vector<32x64xf32>
    %348 = arith.select %346, %335, %347 : vector<32x64xi1>, vector<32x64xf32>
    %349 = vector.extract_strided_slice %314 {offsets = [0, 0], sizes = [1, 64], strides = [1, 1]} : vector<7x64xf32> to vector<1x64xf32>
    %350 = vector.broadcast %349 : vector<1x64xf32> to vector<32x64xf32>
    %351 = arith.mulf %348, %350 : vector<32x64xf32>
    %352 = arith.addf %334, %351 : vector<32x64xf32>
    %c2_i32 = arith.constant 2 : i32
    %353 = tpu.dynamic_rotate %313 by %c2_i32 dim 0 : vector<32x64xf32>, i32 -> vector<32x64xf32>
    %c-2_i32 = arith.constant -2 : i32
    %354 = vector.broadcast %c-2_i32 : i32 to vector<32x1xi32>
    %355 = arith.addi %331, %354 : vector<32x1xi32>
    %c0_i32_119 = arith.constant 0 : i32
    %356 = vector.broadcast %c0_i32_119 : i32 to vector<32x1xi32>
    %357 = arith.cmpi sge, %355, %356 : vector<32x1xi32>
    %c-2_i32_120 = arith.constant -2 : i32
    %358 = vector.broadcast %c-2_i32_120 : i32 to vector<32x1xi32>
    %359 = arith.addi %331, %358 : vector<32x1xi32>
    %c16_i32_121 = arith.constant 16 : i32
    %360 = vector.broadcast %c16_i32_121 : i32 to vector<32x1xi32>
    %361 = arith.cmpi slt, %359, %360 : vector<32x1xi32>
    %362 = arith.andi %357, %361 : vector<32x1xi1>
    %cst_122 = arith.constant 0.000000e+00 : f32
    %363 = vector.shape_cast %362 : vector<32x1xi1> to vector<32x1xi1>
    %364 = vector.broadcast %363 : vector<32x1xi1> to vector<32x64xi1>
    %365 = vector.broadcast %cst_122 : f32 to vector<32x64xf32>
    %366 = arith.select %364, %353, %365 : vector<32x64xi1>, vector<32x64xf32>
    %367 = vector.extract_strided_slice %314 {offsets = [1, 0], sizes = [1, 64], strides = [1, 1]} : vector<7x64xf32> to vector<1x64xf32>
    %368 = vector.broadcast %367 : vector<1x64xf32> to vector<32x64xf32>
    %369 = arith.mulf %366, %368 : vector<32x64xf32>
    %370 = arith.addf %352, %369 : vector<32x64xf32>
    %c1_i32_123 = arith.constant 1 : i32
    %371 = tpu.dynamic_rotate %313 by %c1_i32_123 dim 0 : vector<32x64xf32>, i32 -> vector<32x64xf32>
    %c-1_i32 = arith.constant -1 : i32
    %372 = vector.broadcast %c-1_i32 : i32 to vector<32x1xi32>
    %373 = arith.addi %331, %372 : vector<32x1xi32>
    %c0_i32_124 = arith.constant 0 : i32
    %374 = vector.broadcast %c0_i32_124 : i32 to vector<32x1xi32>
    %375 = arith.cmpi sge, %373, %374 : vector<32x1xi32>
    %c-1_i32_125 = arith.constant -1 : i32
    %376 = vector.broadcast %c-1_i32_125 : i32 to vector<32x1xi32>
    %377 = arith.addi %331, %376 : vector<32x1xi32>
    %c16_i32_126 = arith.constant 16 : i32
    %378 = vector.broadcast %c16_i32_126 : i32 to vector<32x1xi32>
    %379 = arith.cmpi slt, %377, %378 : vector<32x1xi32>
    %380 = arith.andi %375, %379 : vector<32x1xi1>
    %cst_127 = arith.constant 0.000000e+00 : f32
    %381 = vector.shape_cast %380 : vector<32x1xi1> to vector<32x1xi1>
    %382 = vector.broadcast %381 : vector<32x1xi1> to vector<32x64xi1>
    %383 = vector.broadcast %cst_127 : f32 to vector<32x64xf32>
    %384 = arith.select %382, %371, %383 : vector<32x64xi1>, vector<32x64xf32>
    %385 = vector.extract_strided_slice %314 {offsets = [2, 0], sizes = [1, 64], strides = [1, 1]} : vector<7x64xf32> to vector<1x64xf32>
    %386 = vector.broadcast %385 : vector<1x64xf32> to vector<32x64xf32>
    %387 = arith.mulf %384, %386 : vector<32x64xf32>
    %388 = arith.addf %370, %387 : vector<32x64xf32>
    %c31_i32 = arith.constant 31 : i32
    %389 = tpu.dynamic_rotate %313 by %c31_i32 dim 0 : vector<32x64xf32>, i32 -> vector<32x64xf32>
    %c1_i32_128 = arith.constant 1 : i32
    %390 = vector.broadcast %c1_i32_128 : i32 to vector<32x1xi32>
    %391 = arith.addi %331, %390 : vector<32x1xi32>
    %c0_i32_129 = arith.constant 0 : i32
    %392 = vector.broadcast %c0_i32_129 : i32 to vector<32x1xi32>
    %393 = arith.cmpi sge, %391, %392 : vector<32x1xi32>
    %c1_i32_130 = arith.constant 1 : i32
    %394 = vector.broadcast %c1_i32_130 : i32 to vector<32x1xi32>
    %395 = arith.addi %331, %394 : vector<32x1xi32>
    %c16_i32_131 = arith.constant 16 : i32
    %396 = vector.broadcast %c16_i32_131 : i32 to vector<32x1xi32>
    %397 = arith.cmpi slt, %395, %396 : vector<32x1xi32>
    %398 = arith.andi %393, %397 : vector<32x1xi1>
    %cst_132 = arith.constant 0.000000e+00 : f32
    %399 = vector.shape_cast %398 : vector<32x1xi1> to vector<32x1xi1>
    %400 = vector.broadcast %399 : vector<32x1xi1> to vector<32x64xi1>
    %401 = vector.broadcast %cst_132 : f32 to vector<32x64xf32>
    %402 = arith.select %400, %389, %401 : vector<32x64xi1>, vector<32x64xf32>
    %403 = vector.extract_strided_slice %314 {offsets = [4, 0], sizes = [1, 64], strides = [1, 1]} : vector<7x64xf32> to vector<1x64xf32>
    %404 = vector.broadcast %403 : vector<1x64xf32> to vector<32x64xf32>
    %405 = arith.mulf %402, %404 : vector<32x64xf32>
    %406 = arith.addf %388, %405 : vector<32x64xf32>
    %c30_i32 = arith.constant 30 : i32
    %407 = tpu.dynamic_rotate %313 by %c30_i32 dim 0 : vector<32x64xf32>, i32 -> vector<32x64xf32>
    %c2_i32_133 = arith.constant 2 : i32
    %408 = vector.broadcast %c2_i32_133 : i32 to vector<32x1xi32>
    %409 = arith.addi %331, %408 : vector<32x1xi32>
    %c0_i32_134 = arith.constant 0 : i32
    %410 = vector.broadcast %c0_i32_134 : i32 to vector<32x1xi32>
    %411 = arith.cmpi sge, %409, %410 : vector<32x1xi32>
    %c2_i32_135 = arith.constant 2 : i32
    %412 = vector.broadcast %c2_i32_135 : i32 to vector<32x1xi32>
    %413 = arith.addi %331, %412 : vector<32x1xi32>
    %c16_i32_136 = arith.constant 16 : i32
    %414 = vector.broadcast %c16_i32_136 : i32 to vector<32x1xi32>
    %415 = arith.cmpi slt, %413, %414 : vector<32x1xi32>
    %416 = arith.andi %411, %415 : vector<32x1xi1>
    %cst_137 = arith.constant 0.000000e+00 : f32
    %417 = vector.shape_cast %416 : vector<32x1xi1> to vector<32x1xi1>
    %418 = vector.broadcast %417 : vector<32x1xi1> to vector<32x64xi1>
    %419 = vector.broadcast %cst_137 : f32 to vector<32x64xf32>
    %420 = arith.select %418, %407, %419 : vector<32x64xi1>, vector<32x64xf32>
    %421 = vector.extract_strided_slice %314 {offsets = [5, 0], sizes = [1, 64], strides = [1, 1]} : vector<7x64xf32> to vector<1x64xf32>
    %422 = vector.broadcast %421 : vector<1x64xf32> to vector<32x64xf32>
    %423 = arith.mulf %420, %422 : vector<32x64xf32>
    %424 = arith.addf %406, %423 : vector<32x64xf32>
    %c29_i32 = arith.constant 29 : i32
    %425 = tpu.dynamic_rotate %313 by %c29_i32 dim 0 : vector<32x64xf32>, i32 -> vector<32x64xf32>
    %c3_i32_138 = arith.constant 3 : i32
    %426 = vector.broadcast %c3_i32_138 : i32 to vector<32x1xi32>
    %427 = arith.addi %331, %426 : vector<32x1xi32>
    %c0_i32_139 = arith.constant 0 : i32
    %428 = vector.broadcast %c0_i32_139 : i32 to vector<32x1xi32>
    %429 = arith.cmpi sge, %427, %428 : vector<32x1xi32>
    %c3_i32_140 = arith.constant 3 : i32
    %430 = vector.broadcast %c3_i32_140 : i32 to vector<32x1xi32>
    %431 = arith.addi %331, %430 : vector<32x1xi32>
    %c16_i32_141 = arith.constant 16 : i32
    %432 = vector.broadcast %c16_i32_141 : i32 to vector<32x1xi32>
    %433 = arith.cmpi slt, %431, %432 : vector<32x1xi32>
    %434 = arith.andi %429, %433 : vector<32x1xi1>
    %cst_142 = arith.constant 0.000000e+00 : f32
    %435 = vector.shape_cast %434 : vector<32x1xi1> to vector<32x1xi1>
    %436 = vector.broadcast %435 : vector<32x1xi1> to vector<32x64xi1>
    %437 = vector.broadcast %cst_142 : f32 to vector<32x64xf32>
    %438 = arith.select %436, %425, %437 : vector<32x64xi1>, vector<32x64xf32>
    %439 = vector.extract_strided_slice %314 {offsets = [6, 0], sizes = [1, 64], strides = [1, 1]} : vector<7x64xf32> to vector<1x64xf32>
    %440 = vector.broadcast %439 : vector<1x64xf32> to vector<32x64xf32>
    %441 = arith.mulf %438, %440 : vector<32x64xf32>
    %442 = arith.addf %424, %441 : vector<32x64xf32>
    %c33 = arith.constant 33 : index
    %c0_143 = arith.constant 0 : index
    %443 = vector.load %arg2[%c33, %c0_143] : memref<48x128xf32, #tpu.memory_space<vmem>>, vector<1x64xf32>
    %444 = vector.broadcast %443 : vector<1x64xf32> to vector<32x64xf32>
    %445 = arith.addf %442, %444 : vector<32x64xf32>
    %446 = arith.negf %445 : vector<32x64xf32>
    %447 = math.exp %446 : vector<32x64xf32>
    %cst_144 = arith.constant 1.000000e+00 : f32
    %448 = vector.broadcast %cst_144 : f32 to vector<32x64xf32>
    %449 = arith.addf %448, %447 : vector<32x64xf32>
    %450 = arith.divf %448, %449 : vector<32x64xf32>
    %451 = arith.mulf %445, %450 : vector<32x64xf32>
    %452 = arith.truncf %451 : vector<32x64xf32> to vector<32x64xbf16>
    %c432 = arith.constant 432 : index
    %c0_145 = arith.constant 0 : index
    %453 = vector.load %arg3[%c432, %c0_145] : memref<656x128xbf16, #tpu.memory_space<vmem>>, vector<64x32xbf16>
    %cst_146 = arith.constant dense<0.000000e+00> : vector<32x32xf32>
    %454 = tpu.matmul %452, %453, %cst_146 {dimension_numbers = #tpu.dot_dimension_numbers<[1], [0], [0], [1], [0, 0, 1, 1], [], []>} : vector<32x64xbf16>, vector<64x32xbf16>, vector<32x32xf32> -> vector<32x32xf32>
    %c34 = arith.constant 34 : index
    %c0_147 = arith.constant 0 : index
    %455 = vector.load %arg2[%c34, %c0_147] : memref<48x128xf32, #tpu.memory_space<vmem>>, vector<1x32xf32>
    %456 = vector.broadcast %455 : vector<1x32xf32> to vector<32x32xf32>
    %457 = arith.addf %454, %456 : vector<32x32xf32>
    %458 = arith.addf %457, %277 : vector<32x32xf32>
    %c35 = arith.constant 35 : index
    %c0_148 = arith.constant 0 : index
    %459 = vector.load %arg2[%c35, %c0_148] : memref<48x128xf32, #tpu.memory_space<vmem>>, vector<1x32xf32>
    %c36 = arith.constant 36 : index
    %c0_149 = arith.constant 0 : index
    %460 = vector.load %arg2[%c36, %c0_149] : memref<48x128xf32, #tpu.memory_space<vmem>>, vector<1x32xf32>
    %cst_150 = arith.constant dense<0.000000e+00> : vector<32xf32>
    %461 = vector.multi_reduction <add>, %458, %cst_150 [1] : vector<32x32xf32> to vector<32xf32>
    %462 = vector.shape_cast %461 : vector<32xf32> to vector<32x1xf32>
    %cst_151 = arith.constant 3.200000e+01 : f32
    %463 = vector.broadcast %cst_151 : f32 to vector<32x1xf32>
    %464 = arith.divf %462, %463 : vector<32x1xf32>
    %465 = vector.broadcast %464 : vector<32x1xf32> to vector<32x32xf32>
    %466 = arith.subf %458, %465 : vector<32x32xf32>
    %467 = arith.mulf %466, %466 : vector<32x32xf32>
    %cst_152 = arith.constant dense<0.000000e+00> : vector<32xf32>
    %468 = vector.multi_reduction <add>, %467, %cst_152 [1] : vector<32x32xf32> to vector<32xf32>
    %469 = vector.shape_cast %468 : vector<32xf32> to vector<32x1xf32>
    %cst_153 = arith.constant 3.200000e+01 : f32
    %470 = vector.broadcast %cst_153 : f32 to vector<32x1xf32>
    %471 = arith.divf %469, %470 : vector<32x1xf32>
    %cst_154 = arith.constant 9.99999974E-6 : f32
    %472 = vector.broadcast %cst_154 : f32 to vector<32x1xf32>
    %473 = arith.addf %471, %472 : vector<32x1xf32>
    %474 = math.rsqrt %473 : vector<32x1xf32>
    %475 = vector.broadcast %474 : vector<32x1xf32> to vector<32x32xf32>
    %476 = arith.mulf %466, %475 : vector<32x32xf32>
    %477 = vector.broadcast %459 : vector<1x32xf32> to vector<32x32xf32>
    %478 = arith.mulf %476, %477 : vector<32x32xf32>
    %479 = vector.broadcast %460 : vector<1x32xf32> to vector<32x32xf32>
    %480 = arith.addf %478, %479 : vector<32x32xf32>
    %481 = arith.truncf %480 : vector<32x32xf32> to vector<32x32xbf16>
    %c496 = arith.constant 496 : index
    %c0_155 = arith.constant 0 : index
    %482 = vector.load %arg3[%c496, %c0_155] : memref<656x128xbf16, #tpu.memory_space<vmem>>, vector<32x128xbf16>
    %cst_156 = arith.constant dense<0.000000e+00> : vector<32x128xf32>
    %483 = tpu.matmul %481, %482, %cst_156 {dimension_numbers = #tpu.dot_dimension_numbers<[1], [0], [0], [1], [0, 0, 1, 1], [], []>} : vector<32x32xbf16>, vector<32x128xbf16>, vector<32x128xf32> -> vector<32x128xf32>
    %c37 = arith.constant 37 : index
    %c0_157 = arith.constant 0 : index
    %484 = vector.load %arg2[%c37, %c0_157] : memref<48x128xf32, #tpu.memory_space<vmem>>, vector<1x128xf32>
    %485 = vector.broadcast %484 : vector<1x128xf32> to vector<32x128xf32>
    %486 = arith.addf %483, %485 : vector<32x128xf32>
    %487 = arith.negf %486 : vector<32x128xf32>
    %488 = math.exp %487 : vector<32x128xf32>
    %cst_158 = arith.constant 1.000000e+00 : f32
    %489 = vector.broadcast %cst_158 : f32 to vector<32x128xf32>
    %490 = arith.addf %489, %488 : vector<32x128xf32>
    %491 = arith.divf %489, %490 : vector<32x128xf32>
    %492 = arith.mulf %486, %491 : vector<32x128xf32>
    %493 = arith.truncf %492 : vector<32x128xf32> to vector<32x128xbf16>
    %c528 = arith.constant 528 : index
    %c0_159 = arith.constant 0 : index
    %494 = vector.load %arg3[%c528, %c0_159] : memref<656x128xbf16, #tpu.memory_space<vmem>>, vector<128x32xbf16>
    %cst_160 = arith.constant dense<0.000000e+00> : vector<32x32xf32>
    %495 = tpu.matmul %493, %494, %cst_160 {dimension_numbers = #tpu.dot_dimension_numbers<[1], [0], [0], [1], [0, 0, 1, 1], [], []>} : vector<32x128xbf16>, vector<128x32xbf16>, vector<32x32xf32> -> vector<32x32xf32>
    %c38 = arith.constant 38 : index
    %c0_161 = arith.constant 0 : index
    %496 = vector.load %arg2[%c38, %c0_161] : memref<48x128xf32, #tpu.memory_space<vmem>>, vector<1x32xf32>
    %497 = vector.broadcast %496 : vector<1x32xf32> to vector<32x32xf32>
    %498 = arith.addf %495, %497 : vector<32x32xf32>
    %499 = arith.addf %498, %458 : vector<32x32xf32>
    %c39 = arith.constant 39 : index
    %c0_162 = arith.constant 0 : index
    %500 = vector.load %arg2[%c39, %c0_162] : memref<48x128xf32, #tpu.memory_space<vmem>>, vector<1x32xf32>
    %c40 = arith.constant 40 : index
    %c0_163 = arith.constant 0 : index
    %501 = vector.load %arg2[%c40, %c0_163] : memref<48x128xf32, #tpu.memory_space<vmem>>, vector<1x32xf32>
    %cst_164 = arith.constant dense<0.000000e+00> : vector<32xf32>
    %502 = vector.multi_reduction <add>, %499, %cst_164 [1] : vector<32x32xf32> to vector<32xf32>
    %503 = vector.shape_cast %502 : vector<32xf32> to vector<32x1xf32>
    %cst_165 = arith.constant 3.200000e+01 : f32
    %504 = vector.broadcast %cst_165 : f32 to vector<32x1xf32>
    %505 = arith.divf %503, %504 : vector<32x1xf32>
    %506 = vector.broadcast %505 : vector<32x1xf32> to vector<32x32xf32>
    %507 = arith.subf %499, %506 : vector<32x32xf32>
    %508 = arith.mulf %507, %507 : vector<32x32xf32>
    %cst_166 = arith.constant dense<0.000000e+00> : vector<32xf32>
    %509 = vector.multi_reduction <add>, %508, %cst_166 [1] : vector<32x32xf32> to vector<32xf32>
    %510 = vector.shape_cast %509 : vector<32xf32> to vector<32x1xf32>
    %cst_167 = arith.constant 3.200000e+01 : f32
    %511 = vector.broadcast %cst_167 : f32 to vector<32x1xf32>
    %512 = arith.divf %510, %511 : vector<32x1xf32>
    %cst_168 = arith.constant 9.99999974E-6 : f32
    %513 = vector.broadcast %cst_168 : f32 to vector<32x1xf32>
    %514 = arith.addf %512, %513 : vector<32x1xf32>
    %515 = math.rsqrt %514 : vector<32x1xf32>
    %516 = vector.broadcast %515 : vector<32x1xf32> to vector<32x32xf32>
    %517 = arith.mulf %507, %516 : vector<32x32xf32>
    %518 = vector.broadcast %500 : vector<1x32xf32> to vector<32x32xf32>
    %519 = arith.mulf %517, %518 : vector<32x32xf32>
    %520 = vector.broadcast %501 : vector<1x32xf32> to vector<32x32xf32>
    %521 = arith.addf %519, %520 : vector<32x32xf32>
    %c0_169 = arith.constant 0 : index
    %c0_170 = arith.constant 0 : index
    %522 = vector.load %arg4[%c0_169, %c0_170] : memref<32x32xf32, #tpu.memory_space<vmem>>, vector<32x32xf32>
    tpu.vector_store %arg4[%c0_169, %c0_170], %521 {strides = array<i32>} : memref<32x32xf32, #tpu.memory_space<vmem>>, vector<32x32xf32>,
    return
  }
  func.func @transform_0(%arg0: i32) -> (i32, i32) {
    %c0_i32 = arith.constant 0 : i32
    %c0_i32_0 = arith.constant 0 : i32
    return %arg0, %c0_i32 : i32, i32
  }
  func.func @transform_1(%arg0: i32) -> (i32, i32) {
    %c0_i32 = arith.constant 0 : i32
    %c0_i32_0 = arith.constant 0 : i32
    %c0_i32_1 = arith.constant 0 : i32
    return %c0_i32, %c0_i32_0 : i32, i32
  }
  func.func @transform_2(%arg0: i32) -> (i32, i32) {
    %c0_i32 = arith.constant 0 : i32
    %c0_i32_0 = arith.constant 0 : i32
    %c0_i32_1 = arith.constant 0 : i32
    return %c0_i32, %c0_i32_0 : i32, i32
  }
  func.func @transform_3(%arg0: i32) -> (i32, i32) {
    %c0_i32 = arith.constant 0 : i32
    %c0_i32_0 = arith.constant 0 : i32
    return %arg0, %c0_i32 : i32, i32
  }
}

</mosaic_0001>

<llo_original>
// kernel: tpu_custom_call.1
$region0: #{tpu_custom_call.1}
  #allocation0 [shape = 'u32[]', space=smem, size = 0x4, offset = 0x4, fixed_abs, tag = 'smem constant byte address 0x4 - core index']
  #allocation1 [shape = 'u32[144,128]{1,0:T(1,128)}', space=vmem, size = 0x12000, scoped, tag = 'internal scratch']
  %s0 = inlined_call_operand.hbm [shape: f32[32,32], index: 0, kind: input, shape index: {}]
  %s1 = inlined_call_operand.hbm [shape: f32[48,128], index: 1, kind: input, shape index: {}]
  %s2 = inlined_call_operand.hbm [shape: bf16[656,128], index: 2, kind: input, shape index: {}]
  %s3 = inlined_call_operand.hbm [shape: f32[32,32], index: 3, kind: output, shape index: {}]
  %s4 = sld [smem:[#allocation0]]
  $region34: #{tpu_custom_call.1} parent=0
    _
  %s6 = ssub.s32 1, %s4
  %s7 = scalar_select 0, %s6, %s4
  $region1: #{tpu_custom_call.1} parent=0
    #allocation2 [shape = 'u8[16384]{0}', space=vmem, size = 0x4000, scoped, tag = 'input window, operand 0, single buffered']
    #allocation3 [shape = 's32[1]{0}', space=sflag, size = 0x4, scoped, tag = 'scoped memory for tpu_custom_call.1']
    #allocation4 [shape = 's32[1]{0}', space=sflag, size = 0x4, scoped, tag = 'scoped memory for tpu_custom_call.1']
    #allocation5 [shape = 'u8[24576]{0}', space=vmem, size = 0x6000, scoped, tag = 'input window, operand 1, single buffered']
    #allocation6 [shape = 's32[1]{0}', space=sflag, size = 0x4, scoped, tag = 'scoped memory for tpu_custom_call.1']
    #allocation7 [shape = 'u8[167936]{0}', space=vmem, size = 0x29000, scoped, tag = 'input window, operand 2, single buffered']
    #allocation8 [shape = 'u8[16384]{0}', space=vmem, size = 0x4000, scoped, tag = 'output window, operand 0, single buffered']
    %8 = vsyncpa [#allocation3], 0
    %9 = vsyncpa [#allocation6], 0
    %10 = vsyncpa [#allocation4], 0
    // Predicated region
    $region2: #{tpu_custom_call.1} parent=1 // pred_check
      _
    $region3: #{tpu_custom_call.1} parent=1 // pred_check_branch
      %12 = sbr.rel (0) target = $region5
    $region4: #{tpu_custom_call.1} parent=1 // pred_region
      %s14 = ssub.s32 512, 512
      %15 = vsyncadd [#allocation3], %s14
      %s16 = sshll.u32 [#allocation2], 4
      %s17 = int_to_ptr.vmem [resolvable:$true] %s16
      %22 = dma.hbm_to_vmem [thread:$0]  %s0, 512, %s17, [#allocation3], 128, 128, 8
    $region5: #{tpu_custom_call.1} parent=1 // pred_fallthru
      _
    // Predicated region
    $region6: #{tpu_custom_call.1} parent=1 // pred_check
      _
    $region7: #{tpu_custom_call.1} parent=1 // pred_check_branch
      %24 = sbr.rel (0) target = $region9
    $region8: #{tpu_custom_call.1} parent=1 // pred_region
      %s26 = ssub.s32 768, 768
      %27 = vsyncadd [#allocation6], %s26
      %s28 = sshll.u32 [#allocation5], 4
      %s29 = int_to_ptr.vmem [resolvable:$true] %s28
      %34 = dma.hbm_to_vmem [thread:$0]  %s1, 768, %s29, [#allocation6], 128, 128, 8
    $region9: #{tpu_custom_call.1} parent=1 // pred_fallthru
      _
    // Predicated region
    $region10: #{tpu_custom_call.1} parent=1 // pred_check
      _
    $region11: #{tpu_custom_call.1} parent=1 // pred_check_branch
      %36 = sbr.rel (0) target = $region13
    $region12: #{tpu_custom_call.1} parent=1 // pred_region
      %s38 = ssub.s32 5248, 5248
      %39 = vsyncadd [#allocation6], %s38
      %s40 = sshll.u32 [#allocation7], 4
      %s41 = int_to_ptr.vmem [resolvable:$true] %s40
      %46 = dma.hbm_to_vmem [thread:$0]  %s2, 5248, %s41, [#allocation6], 64, 64, 4
    $region13: #{tpu_custom_call.1} parent=1 // pred_fallthru
      _
    // Predicated region
    $region14: #{tpu_custom_call.1} parent=1 // pred_check
      _
    $region15: #{tpu_custom_call.1} parent=1 // pred_check_branch
      %48 = sbr.rel (0) target = $region17
    $region16: #{tpu_custom_call.1} parent=1 // pred_region
      %49 = dma.done [#allocation3], 512
    $region17: #{tpu_custom_call.1} parent=1 // pred_fallthru
      _
    // Predicated region
    $region18: #{tpu_custom_call.1} parent=1 // pred_check
      _
    $region19: #{tpu_custom_call.1} parent=1 // pred_check_branch
      %51 = sbr.rel (0) target = $region21
    $region20: #{tpu_custom_call.1} parent=1 // pred_region
      %52 = dma.done [#allocation6], 768
    $region21: #{tpu_custom_call.1} parent=1 // pred_fallthru
      _
    // Predicated region
    $region22: #{tpu_custom_call.1} parent=1 // pred_check
      _
    $region23: #{tpu_custom_call.1} parent=1 // pred_check_branch
      %54 = sbr.rel (0) target = $region25
    $region24: #{tpu_custom_call.1} parent=1 // pred_region
      %55 = dma.done [#allocation6], 5248
    $region25: #{tpu_custom_call.1} parent=1 // pred_fallthru
      _
    %v57 = vld [vmem:[#allocation2] sm:$0xff]
    %v58 = vld [vmem:[#allocation2 + $0x8] sm:$0xff]
    %v59 = vld [vmem:[#allocation2 + $0x10] sm:$0xff]
    %v60 = vld [vmem:[#allocation2 + $0x18] sm:$0xff]
    %v61 = vld [vmem:[#allocation5 + $0x17] sm:$0x1]
    %v62 = vld [vmem:[#allocation5 + $0x18] sm:$0x1]
    %vm63 = vcmask 261120
    %v64 = vsel %vm63, %v57, 0.0
    %65 = vadd.xlane.f32.xlu0 %v64
    %v66 = vpop.xlane.xlu0 %65
    %v67 = vsel %vm63, %v58, 0.0
    %68 = vadd.xlane.f32.xlu0 %v67
    %v69 = vpop.xlane.xlu0 %68
    %v70 = vsel %vm63, %v59, 0.0
    %71 = vadd.xlane.f32.xlu0 %v70
    %v72 = vpop.xlane.xlu0 %71
    %v73 = vsel %vm63, %v60, 0.0
    %74 = vadd.xlane.f32.xlu0 %v73
    %v75 = vpop.xlane.xlu0 %74
    %v76 = vrcp.pop 32.0
    %v77 = vmul.f32 %v66, %v76
    %v78 = vmul.f32 %v69, %v76
    %v79 = vmul.f32 %v72, %v76
    %v80 = vmul.f32 %v75, %v76
    %v81 = vsub.f32 %v57, %v77
    %v82 = vsub.f32 %v58, %v78
    %v83 = vsub.f32 %v59, %v79
    %v84 = vsub.f32 %v60, %v80
    %v85 = vmul.f32 %v81, %v81
    %v86 = vmul.f32 %v82, %v82
    %v87 = vmul.f32 %v83, %v83
    %v88 = vmul.f32 %v84, %v84
    %v89 = vsel %vm63, %v85, 0.0
    %90 = vadd.xlane.f32.xlu0 %v89
    %v91 = vpop.xlane.xlu0 %90
    %v92 = vsel %vm63, %v86, 0.0
    %93 = vadd.xlane.f32.xlu0 %v92
    %v94 = vpop.xlane.xlu0 %93
    %v95 = vsel %vm63, %v87, 0.0
    %96 = vadd.xlane.f32.xlu0 %v95
    %v97 = vpop.xlane.xlu0 %96
    %v98 = vsel %vm63, %v88, 0.0
    %99 = vadd.xlane.f32.xlu0 %v98
    %v100 = vpop.xlane.xlu0 %99
    %v101 = vmul.f32 %v91, %v76
    %v102 = vmul.f32 %v94, %v76
    %v103 = vmul.f32 %v97, %v76
    %v104 = vmul.f32 %v100, %v76
    %v105 = vadd.f32 %v101, 1e-05
    %v106 = vadd.f32 %v102, 1e-05
    %v107 = vadd.f32 %v103, 1e-05
    %v108 = vadd.f32 %v104, 1e-05
    %v109 = vrsqrt.pop %v105
    %v110 = vrsqrt.pop %v106
    %v111 = vrsqrt.pop %v107
    %v112 = vrsqrt.pop %v108
    %v113 = vmul.f32 %v81, %v109
    %v114 = vmul.f32 %v82, %v110
    %v115 = vmul.f32 %v83, %v111
    %v116 = vmul.f32 %v84, %v112
    %v117 = vlaneseq
    %v118 = vshrl.u32 %v117, 7
    %v119 = vsub.s32 0, %v118
    %v120 = vrot.slane %v61, %v119
    %v121 = vmul.f32 %v113, %v120
    %v122 = vmul.f32 %v114, %v120
    %v123 = vmul.f32 %v115, %v120
    %v124 = vmul.f32 %v116, %v120
    %v125 = vlaneseq
    %v126 = vshrl.u32 %v125, 7
    %v127 = vsub.s32 0, %v126
    %v128 = vrot.slane %v62, %v127
    %v129 = vadd.f32 %v121, %v128
    %v130 = vadd.f32 %v122, %v128
    %v131 = vadd.f32 %v123, %v128
    %v132 = vadd.f32 %v124, %v128
    %v133 = vpack.c.bf16 %v130, %v129
    %v134 = vpack.c.bf16 %v132, %v131
    %v135 = vld [vmem:[#allocation7] sm:$0xf]
    %v136 = vld [vmem:[#allocation7 + $0x4] sm:$0xf]
    %v137 = vld [vmem:[#allocation7 + $0x8] sm:$0xf]
    %v138 = vld [vmem:[#allocation7 + $0xc] sm:$0xf]
    %v139 = vld [vmem:[#allocation5 + $0x19] sm:$0x1]
    %v140 = vlaneseq
    %v141 = vshrl.u32 %v140, 7
    %v142 = vsub.s32 0, %v141
    %v143 = vrot.slane %v139, %v142
    %v148 = vunpack.c.l.b16 %v135
    %v149 = vunpack.c.l.b16 %v136
    %v150 = vunpack.c.l.b16 %v137
    %v151 = vunpack.c.l.b16 %v138
    %v152 = vpack.c.b16 %v149, %v148
    %v153 = vpack.c.b16 %v151, %v150
    %v157 = vsel %vm63, %v133, 0
    %v160 = vsel %vm63, %v134, 0
    %162 = vmatprep.subr.bf16.mxu0 0
    %163 = vmatpush1.bf16.msra.mxu0 0
    %164 = vmatprep.subr.bf16.mxu0 0
    %165 = vmatpush1.bf16.msra.mxu0 0
    %166 = vmatprep.subr.bf16.mxu0 0
    %167 = vmatpush1.bf16.msra.mxu0 0
    %168 = vmatprep.subr.bf16.mxu0 0
    %169 = vmatpush1.bf16.msra.mxu0 0
    %170 = vmatprep.subr.bf16.mxu0 0
    %171 = vmatpush1.bf16.msra.mxu0 0
    %172 = vmatprep.subr.bf16.mxu0 0
    %173 = vmatpush1.bf16.msra.mxu0 0
    %174 = vmatprep.subr.bf16.mxu0 0
    %175 = vmatpush1.bf16.msra.mxu0 %v153
    %176 = vmatprep.subr.bf16.mxu0 0
    %177 = vmatpush1.bf16.msra.mxu0 %v152
    %178 = vmatprep.subr.bf16.mxu0 0
    %179 = vmatpush2.bf16.msra.mxu0 0
    %180 = vmatprep.subr.bf16.mxu0 0
    %181 = vmatpush2.bf16.msra.mxu0 0
    %182 = vmatprep.subr.bf16.mxu0 0
    %183 = vmatpush2.bf16.msra.mxu0 0
    %184 = vmatprep.subr.bf16.mxu0 0
    %185 = vmatpush2.bf16.msra.mxu0 0
    %186 = vmatprep.subr.bf16.mxu0 0
    %187 = vmatpush2.bf16.msra.mxu0 0
    %188 = vmatprep.subr.bf16.mxu0 0
    %189 = vmatpush2.bf16.msra.mxu0 0
    %190 = vmatprep.subr.bf16.mxu0 0
    %191 = vmatpush2.bf16.msra.mxu0 0
    %192 = vmatprep.subr.bf16.mxu0 0
    %193 = vmatpush2.bf16.msra.mxu0 0
    %194 = vmatprep.mubr.bf16.mxu0 0
    %195 = vmatmul.mubr.bf16.gmra.mxu0 %v157
    %v196 = vpop.f32.mrf.mxu0
    %v197 = vadd.f32 %v143, %v196
    %v198 = vpop.f32.mrf.mxu0
    %v199 = vpop.f32.mrf.mxu0
    %v200 = vadd.f32 %v143, %v199
    %v201 = vpop.f32.mrf.mxu0
    %202 = vmatprep.mubr.bf16.mxu0 0
    %203 = vmatmul.mubr.bf16.gmra.mxu0 %v160
    %v204 = vpop.f32.mrf.mxu0
    %v205 = vadd.f32 %v143, %v204
    %v206 = vpop.f32.mrf.mxu0
    %v207 = vpop.f32.mrf.mxu0
    %v208 = vadd.f32 %v143, %v207
    %v209 = vpop.f32.mrf.mxu0
    %210 = vdwg.mxu0
    %v211 = vxor.u32 %v197, 2147483648
    %v212 = vxor.u32 %v200, 2147483648
    %v213 = vxor.u32 %v205, 2147483648
    %v214 = vxor.u32 %v208, 2147483648
    %v215 = vmul.f32 %v211, 1.442695
    %v216 = vpow.pop %v215
    %v217 = vmul.f32 %v212, 1.442695
    %v218 = vpow.pop %v217
    %v219 = vmul.f32 %v213, 1.442695
    %v220 = vpow.pop %v219
    %v221 = vmul.f32 %v214, 1.442695
    %v222 = vpow.pop %v221
    %v223 = vadd.f32 %v216, 1.0
    %v224 = vadd.f32 %v218, 1.0
    %v225 = vadd.f32 %v220, 1.0
    %v226 = vadd.f32 %v222, 1.0
    %v227 = vrcp.pop %v223
    %v228 = vmul.f32 1.0, %v227
    %v229 = vrcp.pop %v224
    %v230 = vmul.f32 1.0, %v229
    %v231 = vrcp.pop %v225
    %v232 = vmul.f32 1.0, %v231
    %v233 = vrcp.pop %v226
    %v234 = vmul.f32 1.0, %v233
    %v235 = vmul.f32 %v197, %v228
    %v236 = vmul.f32 %v200, %v230
    %v237 = vmul.f32 %v205, %v232
    %v238 = vmul.f32 %v208, %v234
    %v239 = vpack.c.bf16 %v236, %v235
    %v240 = vpack.c.bf16 %v238, %v237
    %v241 = vld [vmem:[#allocation7 + $0x10] sm:$0xf]
    %v242 = vld [vmem:[#allocation7 + $0x14] sm:$0xf]
    %v243 = vld [vmem:[#allocation7 + $0x18] sm:$0xf]
    %v244 = vld [vmem:[#allocation7 + $0x1c] sm:$0xf]
    %v245 = vld [vmem:[#allocation7 + $0x20] sm:$0xf]
    %v246 = vld [vmem:[#allocation7 + $0x24] sm:$0xf]
    %v247 = vld [vmem:[#allocation7 + $0x28] sm:$0xf]
    %v248 = vld [vmem:[#allocation7 + $0x2c] sm:$0xf]
    %v249 = vld [vmem:[#allocation7 + $0x30] sm:$0xf]
    %v250 = vld [vmem:[#allocation7 + $0x34] sm:$0xf]
    %v251 = vld [vmem:[#allocation7 + $0x38] sm:$0xf]
    %v252 = vld [vmem:[#allocation7 + $0x3c] sm:$0xf]
    %v253 = vld [vmem:[#allocation7 + $0x40] sm:$0xf]
    %v254 = vld [vmem:[#allocation7 + $0x44] sm:$0xf]
    %v255 = vld [vmem:[#allocation7 + $0x48] sm:$0xf]
    %v256 = vld [vmem:[#allocation7 + $0x4c] sm:$0xf]
    %v257 = vld [vmem:[#allocation5 + $0x1a] sm:$0x1]
    %v258 = vlaneseq
    %v259 = vshrl.u32 %v258, 7
    %v260 = vsub.s32 0, %v259
    %v261 = vrot.slane %v257, %v260
    %v278 = vunpack.c.l.b16 %v241
    %v279 = vunpack.c.l.b16 %v242
    %v280 = vunpack.c.l.b16 %v243
    %v281 = vunpack.c.l.b16 %v244
    %v282 = vunpack.c.l.b16 %v245
    %v283 = vunpack.c.l.b16 %v246
    %v284 = vunpack.c.l.b16 %v247
    %v285 = vunpack.c.l.b16 %v248
    %v286 = vunpack.c.l.b16 %v249
    %v287 = vunpack.c.l.b16 %v250
    %v288 = vunpack.c.l.b16 %v251
    %v289 = vunpack.c.l.b16 %v252
    %v290 = vunpack.c.l.b16 %v253
    %v291 = vunpack.c.l.b16 %v254
    %v292 = vunpack.c.l.b16 %v255
    %v293 = vunpack.c.l.b16 %v256
    %v294 = vpack.c.b16 %v279, %v278
    %v295 = vpack.c.b16 %v281, %v280
    %v296 = vpack.c.b16 %v283, %v282
    %v297 = vpack.c.b16 %v285, %v284
    %v298 = vpack.c.b16 %v287, %v286
    %v299 = vpack.c.b16 %v289, %v288
    %v300 = vpack.c.b16 %v291, %v290
    %v301 = vpack.c.b16 %v293, %v292
    %310 = vmatprep.subr.bf16.mxu0 0
    %311 = vmatpush1.bf16.msra.mxu0 %v301
    %312 = vmatprep.subr.bf16.mxu0 0
    %313 = vmatpush1.bf16.msra.mxu0 %v300
    %314 = vmatprep.subr.bf16.mxu0 0
    %315 = vmatpush1.bf16.msra.mxu0 %v299
    %316 = vmatprep.subr.bf16.mxu0 0
    %317 = vmatpush1.bf16.msra.mxu0 %v298
    %318 = vmatprep.subr.bf16.mxu0 0
    %319 = vmatpush1.bf16.msra.mxu0 %v297
    %320 = vmatprep.subr.bf16.mxu0 0
    %321 = vmatpush1.bf16.msra.mxu0 %v296
    %322 = vmatprep.subr.bf16.mxu0 0
    %323 = vmatpush1.bf16.msra.mxu0 %v295
    %324 = vmatprep.subr.bf16.mxu0 0
    %325 = vmatpush1.bf16.msra.mxu0 %v294
    %326 = vmatprep.subr.bf16.mxu0 0
    %327 = vmatpush2.bf16.msra.mxu0 0
    %328 = vmatprep.subr.bf16.mxu0 0
    %329 = vmatpush2.bf16.msra.mxu0 0
    %330 = vmatprep.subr.bf16.mxu0 0
    %331 = vmatpush2.bf16.msra.mxu0 0
    %332 = vmatprep.subr.bf16.mxu0 0
    %333 = vmatpush2.bf16.msra.mxu0 0
    %334 = vmatprep.subr.bf16.mxu0 0
    %335 = vmatpush2.bf16.msra.mxu0 0
    %336 = vmatprep.subr.bf16.mxu0 0
    %337 = vmatpush2.bf16.msra.mxu0 0
    %338 = vmatprep.subr.bf16.mxu0 0
    %339 = vmatpush2.bf16.msra.mxu0 0
    %340 = vmatprep.subr.bf16.mxu0 0
    %341 = vmatpush2.bf16.msra.mxu0 0
    %342 = vmatprep.mubr.bf16.mxu0 0
    %343 = vmatmul.mubr.bf16.gmra.mxu0 %v239
    %v344 = vpop.f32.mrf.mxu0
    %v345 = vadd.f32 %v261, %v344
    %v346 = vpop.f32.mrf.mxu0
    %v347 = vpop.f32.mrf.mxu0
    %v348 = vadd.f32 %v261, %v347
    %v349 = vpop.f32.mrf.mxu0
    %350 = vmatprep.mubr.bf16.mxu0 0
    %351 = vmatmul.mubr.bf16.gmra.mxu0 %v240
    %v352 = vpop.f32.mrf.mxu0
    %v353 = vadd.f32 %v261, %v352
    %v354 = vpop.f32.mrf.mxu0
    %v355 = vpop.f32.mrf.mxu0
    %v356 = vadd.f32 %v261, %v355
    %v357 = vpop.f32.mrf.mxu0
    %358 = vdwg.mxu0
    %v359 = vadd.f32 %v345, %v57
    %v360 = vadd.f32 %v348, %v58
    %v361 = vadd.f32 %v353, %v59
    %v362 = vadd.f32 %v356, %v60
    %v363 = vld [vmem:[#allocation5 + $0x1b] sm:$0x1]
    %v364 = vld [vmem:[#allocation5 + $0x1c] sm:$0x1]
    %v365 = vsel %vm63, %v359, 0.0
    %366 = vadd.xlane.f32.xlu0 %v365
    %v367 = vpop.xlane.xlu0 %366
    %v368 = vsel %vm63, %v360, 0.0
    %369 = vadd.xlane.f32.xlu0 %v368
    %v370 = vpop.xlane.xlu0 %369
    %v371 = vsel %vm63, %v361, 0.0
    %372 = vadd.xlane.f32.xlu0 %v371
    %v373 = vpop.xlane.xlu0 %372
    %v374 = vsel %vm63, %v362, 0.0
    %375 = vadd.xlane.f32.xlu0 %v374
    %v376 = vpop.xlane.xlu0 %375
    %v377 = vmul.f32 %v367, %v76
    %v378 = vmul.f32 %v370, %v76
    %v379 = vmul.f32 %v373, %v76
    %v380 = vmul.f32 %v376, %v76
    %v381 = vsub.f32 %v359, %v377
    %v382 = vsub.f32 %v360, %v378
    %v383 = vsub.f32 %v361, %v379
    %v384 = vsub.f32 %v362, %v380
    %v385 = vmul.f32 %v381, %v381
    %v386 = vmul.f32 %v382, %v382
    %v387 = vmul.f32 %v383, %v383
    %v388 = vmul.f32 %v384, %v384
    %v389 = vsel %vm63, %v385, 0.0
    %390 = vadd.xlane.f32.xlu0 %v389
    %v391 = vpop.xlane.xlu0 %390
    %v392 = vsel %vm63, %v386, 0.0
    %393 = vadd.xlane.f32.xlu0 %v392
    %v394 = vpop.xlane.xlu0 %393
    %v395 = vsel %vm63, %v387, 0.0
    %396 = vadd.xlane.f32.xlu0 %v395
    %v397 = vpop.xlane.xlu0 %396
    %v398 = vsel %vm63, %v388, 0.0
    %399 = vadd.xlane.f32.xlu0 %v398
    %v400 = vpop.xlane.xlu0 %399
    %v401 = vmul.f32 %v391, %v76
    %v402 = vmul.f32 %v394, %v76
    %v403 = vmul.f32 %v397, %v76
    %v404 = vmul.f32 %v400, %v76
    %v405 = vadd.f32 %v401, 1e-05
    %v406 = vadd.f32 %v402, 1e-05
    %v407 = vadd.f32 %v403, 1e-05
    %v408 = vadd.f32 %v404, 1e-05
    %v409 = vrsqrt.pop %v405
    %v410 = vrsqrt.pop %v406
    %v411 = vrsqrt.pop %v407
    %v412 = vrsqrt.pop %v408
    %v413 = vmul.f32 %v381, %v409
    %v414 = vmul.f32 %v382, %v410
    %v415 = vmul.f32 %v383, %v411
    %v416 = vmul.f32 %v384, %v412
    %v417 = vlaneseq
    %v418 = vshrl.u32 %v417, 7
    %v419 = vsub.s32 0, %v418
    %v420 = vrot.slane %v363, %v419
    %v421 = vmul.f32 %v413, %v420
    %v422 = vmul.f32 %v414, %v420
    %v423 = vmul.f32 %v415, %v420
    %v424 = vmul.f32 %v416, %v420
    %v425 = vlaneseq
    %v426 = vshrl.u32 %v425, 7
    %v427 = vsub.s32 0, %v426
    %v428 = vrot.slane %v364, %v427
    %v429 = vadd.f32 %v421, %v428
    %v430 = vadd.f32 %v422, %v428
    %v431 = vadd.f32 %v423, %v428
    %v432 = vadd.f32 %v424, %v428
    %v433 = vpack.c.bf16 %v430, %v429
    %v434 = vpack.c.bf16 %v432, %v431
    %v435 = vld [vmem:[#allocation7 + $0x50] sm:$0xf]
    %v436 = vld [vmem:[#allocation7 + $0x54] sm:$0xf]
    %v437 = vld [vmem:[#allocation7 + $0x58] sm:$0xf]
    %v438 = vld [vmem:[#allocation7 + $0x5c] sm:$0xf]
    %v443 = vunpack.c.l.b16 %v435
    %v444 = vunpack.c.l.b16 %v436
    %v445 = vunpack.c.l.b16 %v437
    %v446 = vunpack.c.l.b16 %v438
    %v447 = vpack.c.b16 %v444, %v443
    %v448 = vpack.c.b16 %v446, %v445
    %v452 = vsel %vm63, %v433, 0
    %v455 = vsel %vm63, %v434, 0
    %457 = vmatprep.subr.bf16.mxu0 0
    %458 = vmatpush1.bf16.msra.mxu0 0
    %459 = vmatprep.subr.bf16.mxu0 0
    %460 = vmatpush1.bf16.msra.mxu0 0
    %461 = vmatprep.subr.bf16.mxu0 0
    %462 = vmatpush1.bf16.msra.mxu0 0
    %463 = vmatprep.subr.bf16.mxu0 0
    %464 = vmatpush1.bf16.msra.mxu0 0
    %465 = vmatprep.subr.bf16.mxu0 0
    %466 = vmatpush1.bf16.msra.mxu0 0
    %467 = vmatprep.subr.bf16.mxu0 0
    %468 = vmatpush1.bf16.msra.mxu0 0
    %469 = vmatprep.subr.bf16.mxu0 0
    %470 = vmatpush1.bf16.msra.mxu0 %v448
    %471 = vmatprep.subr.bf16.mxu0 0
    %472 = vmatpush1.bf16.msra.mxu0 %v447
    %473 = vmatprep.subr.bf16.mxu0 0
    %474 = vmatpush2.bf16.msra.mxu0 0
    %475 = vmatprep.subr.bf16.mxu0 0
    %476 = vmatpush2.bf16.msra.mxu0 0
    %477 = vmatprep.subr.bf16.mxu0 0
    %478 = vmatpush2.bf16.msra.mxu0 0
    %479 = vmatprep.subr.bf16.mxu0 0
    %480 = vmatpush2.bf16.msra.mxu0 0
    %481 = vmatprep.subr.bf16.mxu0 0
    %482 = vmatpush2.bf16.msra.mxu0 0
    %483 = vmatprep.subr.bf16.mxu0 0
    %484 = vmatpush2.bf16.msra.mxu0 0
    %485 = vmatprep.subr.bf16.mxu0 0
    %486 = vmatpush2.bf16.msra.mxu0 0
    %487 = vmatprep.subr.bf16.mxu0 0
    %488 = vmatpush2.bf16.msra.mxu0 0
    %489 = vmatprep.mubr.bf16.mxu0 0
    %490 = vmatmul.mubr.bf16.gmra.mxu0 %v452
    %v491 = vpop.f32.mrf.mxu0
    %v492 = vadd.f32 0.0, %v491
    %v493 = vpop.f32.mrf.mxu0
    %v494 = vpop.f32.mrf.mxu0
    %v495 = vadd.f32 0.0, %v494
    %v496 = vpop.f32.mrf.mxu0
    %497 = vmatprep.mubr.bf16.mxu0 0
    %498 = vmatmul.mubr.bf16.gmra.mxu0 %v455
    %v499 = vpop.f32.mrf.mxu0
    %v500 = vadd.f32 0.0, %v499
    %v501 = vpop.f32.mrf.mxu0
    %v502 = vpop.f32.mrf.mxu0
    %v503 = vadd.f32 0.0, %v502
    %v504 = vpop.f32.mrf.mxu0
    %505 = vdwg.mxu0
    %v506 = vpack.c.bf16 %v495, %v492
    %v507 = vpack.c.bf16 %v503, %v500
    %v508 = vld [vmem:[#allocation5] sm:$0xff]
    %v509 = vld [vmem:[#allocation5 + $0x8] sm:$0xff]
    %v510 = vld [vmem:[#allocation7 + $0x80] sm:$0xf]
    %v511 = vld [vmem:[#allocation7 + $0x88] sm:$0xf]
    %v512 = vld [vmem:[#allocation7 + $0x8c] sm:$0xf]
    %v513 = vld [vmem:[#allocation7 + $0x90] sm:$0xf]
    %v514 = vld [vmem:[#allocation7 + $0x94] sm:$0xf]
    %v515 = vld [vmem:[#allocation7 + $0x98] sm:$0xf]
    %v516 = vld [vmem:[#allocation7 + $0x9c] sm:$0xf]
    %v517 = vld [vmem:[#allocation7 + $0xa0] sm:$0xf]
    %v518 = vld [vmem:[#allocation7 + $0xa4] sm:$0xf]
    %v519 = vld [vmem:[#allocation7 + $0xa8] sm:$0xf]
    %v520 = vld [vmem:[#allocation7 + $0xac] sm:$0xf]
    %v521 = vld [vmem:[#allocation7 + $0xb0] sm:$0xf]
    %v522 = vld [vmem:[#allocation7 + $0xb4] sm:$0xf]
    %v523 = vld [vmem:[#allocation7 + $0xb8] sm:$0xf]
    %v524 = vld [vmem:[#allocation7 + $0xbc] sm:$0xf]
    %v525 = vld [vmem:[#allocation7 + $0xc0] sm:$0xf]
    %v526 = vld [vmem:[#allocation7 + $0xc4] sm:$0xf]
    %vm527 = vcmask 64512
    %v529 = vsel %vm527, %v506, 0
    %vm531 = vcmask 1043456
    %v533 = vsel %vm531, %v510, 0
    %535 = vmatprep.subr.bf16.mxu0 0
    %536 = vmatpush1.bf16.msra.mxu0 0
    %537 = vmatprep.subr.bf16.mxu0 0
    %538 = vmatpush1.bf16.msra.mxu0 0
    %539 = vmatprep.subr.bf16.mxu0 0
    %540 = vmatpush1.bf16.msra.mxu0 0
    %541 = vmatprep.subr.bf16.mxu0 0
    %542 = vmatpush1.bf16.msra.mxu0 0
    %543 = vmatprep.subr.bf16.mxu0 0
    %544 = vmatpush1.bf16.msra.mxu0 0
    %545 = vmatprep.subr.bf16.mxu0 0
    %546 = vmatpush1.bf16.msra.mxu0 0
    %547 = vmatprep.subr.bf16.mxu0 0
    %548 = vmatpush1.bf16.msra.mxu0 0
    %549 = vmatprep.subr.bf16.mxu0 0
    %550 = vmatpush1.bf16.msra.mxu0 %v533
    %551 = vmatprep.subr.bf16.mxu0 0
    %552 = vmatpush2.bf16.msra.mxu0 0
    %553 = vmatprep.subr.bf16.mxu0 0
    %554 = vmatpush2.bf16.msra.mxu0 0
    %555 = vmatprep.subr.bf16.mxu0 0
    %556 = vmatpush2.bf16.msra.mxu0 0
    %557 = vmatprep.subr.bf16.mxu0 0
    %558 = vmatpush2.bf16.msra.mxu0 0
    %559 = vmatprep.subr.bf16.mxu0 0
    %560 = vmatpush2.bf16.msra.mxu0 0
    %561 = vmatprep.subr.bf16.mxu0 0
    %562 = vmatpush2.bf16.msra.mxu0 0
    %563 = vmatprep.subr.bf16.mxu0 0
    %564 = vmatpush2.bf16.msra.mxu0 0
    %565 = vmatprep.subr.bf16.mxu0 0
    %566 = vmatpush2.bf16.msra.mxu0 0
    %567 = vmatprep.mubr.bf16.mxu0 0
    %568 = vmatmul.mubr.bf16.gmra.mxu0 %v529
    %v569 = vpop.f32.mrf.mxu0
    %v570 = vadd.f32 0.0, %v569
    %v571 = vpop.f32.mrf.mxu0
    %v572 = vpop.f32.mrf.mxu0
    %v573 = vadd.f32 0.0, %v572
    %v574 = vpop.f32.mrf.mxu0
    %575 = vdwg.mxu0
    %v576 = vmul.f32 %v570, %v508
    %v577 = vmul.f32 %v573, %v509
    %v578 = vpack.c.bf16 %v577, %v576
    %v595 = vunpack.c.l.b16 %v511
    %v596 = vunpack.c.l.b16 %v512
    %v597 = vunpack.c.l.b16 %v513
    %v598 = vunpack.c.l.b16 %v514
    %v599 = vunpack.c.l.b16 %v515
    %v600 = vunpack.c.l.b16 %v516
    %v601 = vunpack.c.l.b16 %v517
    %v602 = vunpack.c.l.b16 %v518
    %v603 = vunpack.c.l.b16 %v519
    %v604 = vunpack.c.l.b16 %v520
    %v605 = vunpack.c.l.b16 %v521
    %v606 = vunpack.c.l.b16 %v522
    %v607 = vunpack.c.l.b16 %v523
    %v608 = vunpack.c.l.b16 %v524
    %v609 = vunpack.c.l.b16 %v525
    %v610 = vunpack.c.l.b16 %v526
    %v611 = vpack.c.b16 %v596, %v595
    %v612 = vpack.c.b16 %v598, %v597
    %v613 = vpack.c.b16 %v600, %v599
    %v614 = vpack.c.b16 %v602, %v601
    %v615 = vpack.c.b16 %v604, %v603
    %v616 = vpack.c.b16 %v606, %v605
    %v617 = vpack.c.b16 %v608, %v607
    %v618 = vpack.c.b16 %v610, %v609
    %627 = vmatprep.subr.bf16.mxu0 0
    %628 = vmatpush1.bf16.msra.mxu0 %v618
    %629 = vmatprep.subr.bf16.mxu0 0
    %630 = vmatpush1.bf16.msra.mxu0 %v617
    %631 = vmatprep.subr.bf16.mxu0 0
    %632 = vmatpush1.bf16.msra.mxu0 %v616
    %633 = vmatprep.subr.bf16.mxu0 0
    %634 = vmatpush1.bf16.msra.mxu0 %v615
    %635 = vmatprep.subr.bf16.mxu0 0
    %636 = vmatpush1.bf16.msra.mxu0 %v614
    %637 = vmatprep.subr.bf16.mxu0 0
    %638 = vmatpush1.bf16.msra.mxu0 %v613
    %639 = vmatprep.subr.bf16.mxu0 0
    %640 = vmatpush1.bf16.msra.mxu0 %v612
    %641 = vmatprep.subr.bf16.mxu0 0
    %642 = vmatpush1.bf16.msra.mxu0 %v611
    %643 = vmatprep.subr.bf16.mxu0 0
    %644 = vmatpush2.bf16.msra.mxu0 0
    %645 = vmatprep.subr.bf16.mxu0 0
    %646 = vmatpush2.bf16.msra.mxu0 0
    %647 = vmatprep.subr.bf16.mxu0 0
    %648 = vmatpush2.bf16.msra.mxu0 0
    %649 = vmatprep.subr.bf16.mxu0 0
    %650 = vmatpush2.bf16.msra.mxu0 0
    %651 = vmatprep.subr.bf16.mxu0 0
    %652 = vmatpush2.bf16.msra.mxu0 0
    %653 = vmatprep.subr.bf16.mxu0 0
    %654 = vmatpush2.bf16.msra.mxu0 0
    %655 = vmatprep.subr.bf16.mxu0 0
    %656 = vmatpush2.bf16.msra.mxu0 0
    %657 = vmatprep.subr.bf16.mxu0 0
    %658 = vmatpush2.bf16.msra.mxu0 0
    %659 = vmatprep.mubr.bf16.mxu0 0
    %660 = vmatmul.mubr.bf16.gmra.mxu0 %v578
    %v661 = vpop.f32.mrf.mxu0
    %v662 = vadd.f32 0.0, %v661
    %v663 = vpop.f32.mrf.mxu0
    %v664 = vpop.f32.mrf.mxu0
    %v665 = vadd.f32 0.0, %v664
    %v666 = vpop.f32.mrf.mxu0
    %667 = vdwg.mxu0
    %669 = vrot.lane.b32.xlu0 %v506, 96
    %v670 = vpop.permute.xlu0 %669
    %v672 = vsel %vm527, %v670, 0
    %674 = vmatprep.subr.bf16.mxu0 0
    %675 = vmatpush1.bf16.xpose.msra.mxu0 0
    %676 = vmatprep.subr.bf16.mxu0 0
    %677 = vmatpush1.bf16.xpose.msra.mxu0 0
    %678 = vmatprep.subr.bf16.mxu0 0
    %679 = vmatpush1.bf16.xpose.msra.mxu0 0
    %680 = vmatprep.subr.bf16.mxu0 0
    %681 = vmatpush1.bf16.xpose.msra.mxu0 0
    %682 = vmatprep.subr.bf16.mxu0 0
    %683 = vmatpush1.bf16.xpose.msra.mxu0 0
    %684 = vmatprep.subr.bf16.mxu0 0
    %685 = vmatpush1.bf16.xpose.msra.mxu0 0
    %686 = vmatprep.subr.bf16.mxu0 0
    %687 = vmatpush1.bf16.xpose.msra.mxu0 0
    %688 = vmatprep.subr.bf16.mxu0 0
    %689 = vmatpush1.bf16.xpose.msra.mxu0 %v672
    %690 = vmatprep.subr.bf16.mxu0 0
    %691 = vmatpush2.bf16.xpose.msra.mxu0 0
    %692 = vmatprep.subr.bf16.mxu0 0
    %693 = vmatpush2.bf16.xpose.msra.mxu0 0
    %694 = vmatprep.subr.bf16.mxu0 0
    %695 = vmatpush2.bf16.xpose.msra.mxu0 0
    %696 = vmatprep.subr.bf16.mxu0 0
    %697 = vmatpush2.bf16.xpose.msra.mxu0 0
    %698 = vmatprep.subr.bf16.mxu0 0
    %699 = vmatpush2.bf16.xpose.msra.mxu0 0
    %700 = vmatprep.subr.bf16.mxu0 0
    %701 = vmatpush2.bf16.xpose.msra.mxu0 0
    %702 = vmatprep.subr.bf16.mxu0 0
    %703 = vmatpush2.bf16.xpose.msra.mxu0 0
    %704 = vmatprep.subr.bf16.mxu0 0
    %705 = vmatpush2.bf16.xpose.msra.mxu0 0
    %706 = vmatprep.mubr.bf16.mxu0 0
    %707 = vmatmul.mubr.bf16.gmra.mxu0 %v529
    %v708 = vpop.f32.mrf.mxu0
    %v709 = vadd.f32 %v662, %v708
    %v710 = vpop.f32.mrf.mxu0
    %v711 = vpop.f32.mrf.mxu0
    %v712 = vadd.f32 %v665, %v711
    %v713 = vpop.f32.mrf.mxu0
    %714 = vdwg.mxu0
    %vm715 = vcmask 130048
    %v716 = vsel %vm715, %v709, -inf
    %717 = vmax.xlane.f32.xlu0 %v716
    %v718 = vpop.xlane.xlu0 %717
    %v719 = vsel %vm715, %v712, -inf
    %720 = vmax.xlane.f32.xlu0 %v719
    %v721 = vpop.xlane.xlu0 %720
    %v722 = vsub.f32 %v709, %v718
    %v723 = vsub.f32 %v712, %v721
    %v724 = vmul.f32 %v722, 1.442695
    %v725 = vpow.pop %v724
    %v726 = vmul.f32 %v723, 1.442695
    %v727 = vpow.pop %v726
    %v728 = vsel %vm715, %v725, 0.0
    %729 = vadd.xlane.f32.xlu0 %v728
    %v730 = vpop.xlane.xlu0 %729
    %v731 = vsel %vm715, %v727, 0.0
    %732 = vadd.xlane.f32.xlu0 %v731
    %v733 = vpop.xlane.xlu0 %732
    %v734 = vrcp.pop %v730
    %v735 = vrcp.pop %v733
    %v736 = vmul.f32 %v725, %v734
    %v737 = vmul.f32 %v727, %v735
    %v738 = vpack.c.bf16 %v737, %v736
    %739 = vrot.lane.b32.xlu0 %v506, 64
    %v740 = vpop.permute.xlu0 %739
    %v743 = vsel %vm715, %v738, 0
    %745 = vmatprep.subr.bf16.mxu0 0
    %746 = vmatpush1.bf16.msra.mxu0 0
    %747 = vmatprep.subr.bf16.mxu0 0
    %748 = vmatpush1.bf16.msra.mxu0 0
    %749 = vmatprep.subr.bf16.mxu0 0
    %750 = vmatpush1.bf16.msra.mxu0 0
    %751 = vmatprep.subr.bf16.mxu0 0
    %752 = vmatpush1.bf16.msra.mxu0 0
    %753 = vmatprep.subr.bf16.mxu0 0
    %754 = vmatpush1.bf16.msra.mxu0 0
    %755 = vmatprep.subr.bf16.mxu0 0
    %756 = vmatpush1.bf16.msra.mxu0 0
    %757 = vmatprep.subr.bf16.mxu0 0
    %758 = vmatpush1.bf16.msra.mxu0 0
    %759 = vmatprep.subr.bf16.mxu0 0
    %760 = vmatpush1.bf16.msra.mxu0 %v740
    %761 = vmatprep.subr.bf16.mxu0 0
    %762 = vmatpush2.bf16.msra.mxu0 0
    %763 = vmatprep.subr.bf16.mxu0 0
    %764 = vmatpush2.bf16.msra.mxu0 0
    %765 = vmatprep.subr.bf16.mxu0 0
    %766 = vmatpush2.bf16.msra.mxu0 0
    %767 = vmatprep.subr.bf16.mxu0 0
    %768 = vmatpush2.bf16.msra.mxu0 0
    %769 = vmatprep.subr.bf16.mxu0 0
    %770 = vmatpush2.bf16.msra.mxu0 0
    %771 = vmatprep.subr.bf16.mxu0 0
    %772 = vmatpush2.bf16.msra.mxu0 0
    %773 = vmatprep.subr.bf16.mxu0 0
    %774 = vmatpush2.bf16.msra.mxu0 0
    %775 = vmatprep.subr.bf16.mxu0 0
    %776 = vmatpush2.bf16.msra.mxu0 0
    %777 = vmatprep.mubr.bf16.mxu0 0
    %778 = vmatmul.mubr.bf16.gmra.mxu0 %v743
    %v779 = vpop.f32.mrf.mxu0
    %v780 = vadd.f32 0.0, %v779
    %v781 = vpop.f32.mrf.mxu0
    %v782 = vpop.f32.mrf.mxu0
    %v783 = vadd.f32 0.0, %v782
    %v784 = vpop.f32.mrf.mxu0
    %785 = vdwg.mxu0
    %v786 = vpack.c.bf16 %v783, %v780
    %v787 = vld [vmem:[#allocation7 + $0x60] sm:$0xf]
    %788 = vrot.lane.b32.xlu0 %v506, 120
    %v789 = vpop.permute.xlu0 %788
    %v791 = vsel %vm527, %v789, 0
    %793 = vmatprep.subr.bf16.mxu0 0
    %794 = vmatpush1.bf16.msra.mxu0 0
    %795 = vmatprep.subr.bf16.mxu0 0
    %796 = vmatpush1.bf16.msra.mxu0 0
    %797 = vmatprep.subr.bf16.mxu0 0
    %798 = vmatpush1.bf16.msra.mxu0 0
    %799 = vmatprep.subr.bf16.mxu0 0
    %800 = vmatpush1.bf16.msra.mxu0 0
    %801 = vmatprep.subr.bf16.mxu0 0
    %802 = vmatpush1.bf16.msra.mxu0 0
    %803 = vmatprep.subr.bf16.mxu0 0
    %804 = vmatpush1.bf16.msra.mxu0 0
    %805 = vmatprep.subr.bf16.mxu0 0
    %806 = vmatpush1.bf16.msra.mxu0 0
    %807 = vmatprep.subr.bf16.mxu0 0
    %808 = vmatpush1.bf16.msra.mxu0 %v533
    %809 = vmatprep.subr.bf16.mxu0 0
    %810 = vmatpush2.bf16.msra.mxu0 0
    %811 = vmatprep.subr.bf16.mxu0 0
    %812 = vmatpush2.bf16.msra.mxu0 0
    %813 = vmatprep.subr.bf16.mxu0 0
    %814 = vmatpush2.bf16.msra.mxu0 0
    %815 = vmatprep.subr.bf16.mxu0 0
    %816 = vmatpush2.bf16.msra.mxu0 0
    %817 = vmatprep.subr.bf16.mxu0 0
    %818 = vmatpush2.bf16.msra.mxu0 0
    %819 = vmatprep.subr.bf16.mxu0 0
    %820 = vmatpush2.bf16.msra.mxu0 0
    %821 = vmatprep.subr.bf16.mxu0 0
    %822 = vmatpush2.bf16.msra.mxu0 0
    %823 = vmatprep.subr.bf16.mxu0 0
    %824 = vmatpush2.bf16.msra.mxu0 0
    %825 = vmatprep.mubr.bf16.mxu0 0
    %826 = vmatmul.mubr.bf16.gmra.mxu0 %v791
    %v827 = vpop.f32.mrf.mxu0
    %v828 = vadd.f32 0.0, %v827
    %v829 = vpop.f32.mrf.mxu0
    %v830 = vpop.f32.mrf.mxu0
    %v831 = vadd.f32 0.0, %v830
    %v832 = vpop.f32.mrf.mxu0
    %833 = vdwg.mxu0
    %v834 = vmul.f32 %v828, %v508
    %v835 = vmul.f32 %v831, %v509
    %v836 = vpack.c.bf16 %v835, %v834
    %837 = vmatprep.subr.bf16.mxu0 0
    %838 = vmatpush1.bf16.msra.mxu0 %v618
    %839 = vmatprep.subr.bf16.mxu0 0
    %840 = vmatpush1.bf16.msra.mxu0 %v617
    %841 = vmatprep.subr.bf16.mxu0 0
    %842 = vmatpush1.bf16.msra.mxu0 %v616
    %843 = vmatprep.subr.bf16.mxu0 0
    %844 = vmatpush1.bf16.msra.mxu0 %v615
    %845 = vmatprep.subr.bf16.mxu0 0
    %846 = vmatpush1.bf16.msra.mxu0 %v614
    %847 = vmatprep.subr.bf16.mxu0 0
    %848 = vmatpush1.bf16.msra.mxu0 %v613
    %849 = vmatprep.subr.bf16.mxu0 0
    %850 = vmatpush1.bf16.msra.mxu0 %v612
    %851 = vmatprep.subr.bf16.mxu0 0
    %852 = vmatpush1.bf16.msra.mxu0 %v611
    %853 = vmatprep.subr.bf16.mxu0 0
    %854 = vmatpush2.bf16.msra.mxu0 0
    %855 = vmatprep.subr.bf16.mxu0 0
    %856 = vmatpush2.bf16.msra.mxu0 0
    %857 = vmatprep.subr.bf16.mxu0 0
    %858 = vmatpush2.bf16.msra.mxu0 0
    %859 = vmatprep.subr.bf16.mxu0 0
    %860 = vmatpush2.bf16.msra.mxu0 0
    %861 = vmatprep.subr.bf16.mxu0 0
    %862 = vmatpush2.bf16.msra.mxu0 0
    %863 = vmatprep.subr.bf16.mxu0 0
    %864 = vmatpush2.bf16.msra.mxu0 0
    %865 = vmatprep.subr.bf16.mxu0 0
    %866 = vmatpush2.bf16.msra.mxu0 0
    %867 = vmatprep.subr.bf16.mxu0 0
    %868 = vmatpush2.bf16.msra.mxu0 0
    %869 = vmatprep.mubr.bf16.mxu0 0
    %870 = vmatmul.mubr.bf16.gmra.mxu0 %v836
    %v871 = vpop.f32.mrf.mxu0
    %v872 = vadd.f32 0.0, %v871
    %v873 = vpop.f32.mrf.mxu0
    %v874 = vpop.f32.mrf.mxu0
    %v875 = vadd.f32 0.0, %v874
    %v876 = vpop.f32.mrf.mxu0
    %877 = vdwg.mxu0
    %878 = vrot.lane.b32.xlu0 %v506, 88
    %v879 = vpop.permute.xlu0 %878
    %v881 = vsel %vm527, %v879, 0
    %883 = vmatprep.subr.bf16.mxu0 0
    %884 = vmatpush1.bf16.xpose.msra.mxu0 0
    %885 = vmatprep.subr.bf16.mxu0 0
    %886 = vmatpush1.bf16.xpose.msra.mxu0 0
    %887 = vmatprep.subr.bf16.mxu0 0
    %888 = vmatpush1.bf16.xpose.msra.mxu0 0
    %889 = vmatprep.subr.bf16.mxu0 0
    %890 = vmatpush1.bf16.xpose.msra.mxu0 0
    %891 = vmatprep.subr.bf16.mxu0 0
    %892 = vmatpush1.bf16.xpose.msra.mxu0 0
    %893 = vmatprep.subr.bf16.mxu0 0
    %894 = vmatpush1.bf16.xpose.msra.mxu0 0
    %895 = vmatprep.subr.bf16.mxu0 0
    %896 = vmatpush1.bf16.xpose.msra.mxu0 0
    %897 = vmatprep.subr.bf16.mxu0 0
    %898 = vmatpush1.bf16.xpose.msra.mxu0 %v881
    %899 = vmatprep.subr.bf16.mxu0 0
    %900 = vmatpush2.bf16.xpose.msra.mxu0 0
    %901 = vmatprep.subr.bf16.mxu0 0
    %902 = vmatpush2.bf16.xpose.msra.mxu0 0
    %903 = vmatprep.subr.bf16.mxu0 0
    %904 = vmatpush2.bf16.xpose.msra.mxu0 0
    %905 = vmatprep.subr.bf16.mxu0 0
    %906 = vmatpush2.bf16.xpose.msra.mxu0 0
    %907 = vmatprep.subr.bf16.mxu0 0
    %908 = vmatpush2.bf16.xpose.msra.mxu0 0
    %909 = vmatprep.subr.bf16.mxu0 0
    %910 = vmatpush2.bf16.xpose.msra.mxu0 0
    %911 = vmatprep.subr.bf16.mxu0 0
    %912 = vmatpush2.bf16.xpose.msra.mxu0 0
    %913 = vmatprep.subr.bf16.mxu0 0
    %914 = vmatpush2.bf16.xpose.msra.mxu0 0
    %915 = vmatprep.mubr.bf16.mxu0 0
    %916 = vmatmul.mubr.bf16.gmra.mxu0 %v791
    %v917 = vpop.f32.mrf.mxu0
    %v918 = vadd.f32 %v872, %v917
    %v919 = vpop.f32.mrf.mxu0
    %v920 = vpop.f32.mrf.mxu0
    %v921 = vadd.f32 %v875, %v920
    %v922 = vpop.f32.mrf.mxu0
    %923 = vdwg.mxu0
    %v924 = vsel %vm715, %v918, -inf
    %925 = vmax.xlane.f32.xlu0 %v924
    %v926 = vpop.xlane.xlu0 %925
    %v927 = vsel %vm715, %v921, -inf
    %928 = vmax.xlane.f32.xlu0 %v927
    %v929 = vpop.xlane.xlu0 %928
    %v930 = vsub.f32 %v918, %v926
    %v931 = vsub.f32 %v921, %v929
    %v932 = vmul.f32 %v930, 1.442695
    %v933 = vpow.pop %v932
    %v934 = vmul.f32 %v931, 1.442695
    %v935 = vpow.pop %v934
    %v936 = vsel %vm715, %v933, 0.0
    %937 = vadd.xlane.f32.xlu0 %v936
    %v938 = vpop.xlane.xlu0 %937
    %v939 = vsel %vm715, %v935, 0.0
    %940 = vadd.xlane.f32.xlu0 %v939
    %v941 = vpop.xlane.xlu0 %940
    %v942 = vrcp.pop %v938
    %v943 = vrcp.pop %v941
    %v944 = vmul.f32 %v933, %v942
    %v945 = vmul.f32 %v935, %v943
    %v946 = vpack.c.bf16 %v945, %v944
    %947 = vrot.lane.b32.xlu0 %v506, 56
    %v948 = vpop.permute.xlu0 %947
    %v951 = vsel %vm715, %v946, 0
    %953 = vmatprep.subr.bf16.mxu0 0
    %954 = vmatpush1.bf16.msra.mxu0 0
    %955 = vmatprep.subr.bf16.mxu0 0
    %956 = vmatpush1.bf16.msra.mxu0 0
    %957 = vmatprep.subr.bf16.mxu0 0
    %958 = vmatpush1.bf16.msra.mxu0 0
    %959 = vmatprep.subr.bf16.mxu0 0
    %960 = vmatpush1.bf16.msra.mxu0 0
    %961 = vmatprep.subr.bf16.mxu0 0
    %962 = vmatpush1.bf16.msra.mxu0 0
    %963 = vmatprep.subr.bf16.mxu0 0
    %964 = vmatpush1.bf16.msra.mxu0 0
    %965 = vmatprep.subr.bf16.mxu0 0
    %966 = vmatpush1.bf16.msra.mxu0 0
    %967 = vmatprep.subr.bf16.mxu0 0
    %968 = vmatpush1.bf16.msra.mxu0 %v948
    %969 = vmatprep.subr.bf16.mxu0 0
    %970 = vmatpush2.bf16.msra.mxu0 0
    %971 = vmatprep.subr.bf16.mxu0 0
    %972 = vmatpush2.bf16.msra.mxu0 0
    %973 = vmatprep.subr.bf16.mxu0 0
    %974 = vmatpush2.bf16.msra.mxu0 0
    %975 = vmatprep.subr.bf16.mxu0 0
    %976 = vmatpush2.bf16.msra.mxu0 0
    %977 = vmatprep.subr.bf16.mxu0 0
    %978 = vmatpush2.bf16.msra.mxu0 0
    %979 = vmatprep.subr.bf16.mxu0 0
    %980 = vmatpush2.bf16.msra.mxu0 0
    %981 = vmatprep.subr.bf16.mxu0 0
    %982 = vmatpush2.bf16.msra.mxu0 0
    %983 = vmatprep.subr.bf16.mxu0 0
    %984 = vmatpush2.bf16.msra.mxu0 0
    %985 = vmatprep.mubr.bf16.mxu0 0
    %986 = vmatmul.mubr.bf16.gmra.mxu0 %v951
    %v987 = vpop.f32.mrf.mxu0
    %v988 = vadd.f32 0.0, %v987
    %v989 = vpop.f32.mrf.mxu0
    %v990 = vpop.f32.mrf.mxu0
    %v991 = vadd.f32 0.0, %v990
    %v992 = vpop.f32.mrf.mxu0
    %993 = vdwg.mxu0
    %v994 = vpack.c.bf16 %v991, %v988
    %v995 = vld [vmem:[#allocation7 + $0x68] sm:$0xf]
    %v997 = vsel %vm527, %v994, 0
    %v1000 = vsel %vm531, %v995, 0
    %1002 = vmatprep.subr.bf16.mxu0 0
    %1003 = vmatpush1.bf16.msra.mxu0 0
    %1004 = vmatprep.subr.bf16.mxu0 0
    %1005 = vmatpush1.bf16.msra.mxu0 0
    %1006 = vmatprep.subr.bf16.mxu0 0
    %1007 = vmatpush1.bf16.msra.mxu0 0
    %1008 = vmatprep.subr.bf16.mxu0 0
    %1009 = vmatpush1.bf16.msra.mxu0 0
    %1010 = vmatprep.subr.bf16.mxu0 0
    %1011 = vmatpush1.bf16.msra.mxu0 0
    %1012 = vmatprep.subr.bf16.mxu0 0
    %1013 = vmatpush1.bf16.msra.mxu0 0
    %1014 = vmatprep.subr.bf16.mxu0 0
    %1015 = vmatpush1.bf16.msra.mxu0 0
    %1016 = vmatprep.subr.bf16.mxu0 0
    %1017 = vmatpush1.bf16.msra.mxu0 %v1000
    %1018 = vmatprep.subr.bf16.mxu0 0
    %1019 = vmatpush2.bf16.msra.mxu0 0
    %1020 = vmatprep.subr.bf16.mxu0 0
    %1021 = vmatpush2.bf16.msra.mxu0 0
    %1022 = vmatprep.subr.bf16.mxu0 0
    %1023 = vmatpush2.bf16.msra.mxu0 0
    %1024 = vmatprep.subr.bf16.mxu0 0
    %1025 = vmatpush2.bf16.msra.mxu0 0
    %1026 = vmatprep.subr.bf16.mxu0 0
    %1027 = vmatpush2.bf16.msra.mxu0 0
    %1028 = vmatprep.subr.bf16.mxu0 0
    %1029 = vmatpush2.bf16.msra.mxu0 0
    %1030 = vmatprep.subr.bf16.mxu0 0
    %1031 = vmatpush2.bf16.msra.mxu0 0
    %1032 = vmatprep.subr.bf16.mxu0 0
    %1033 = vmatpush2.bf16.msra.mxu0 0
    %1034 = vmatprep.mubr.bf16.mxu0 0
    %1035 = vmatmul.mubr.bf16.gmra.mxu0 %v997
    %v1036 = vpop.f32.mrf.mxu0
    %v1037 = vadd.f32 0.0, %v1036
    %v1038 = vpop.f32.mrf.mxu0
    %v1039 = vpop.f32.mrf.mxu0
    %v1040 = vadd.f32 0.0, %v1039
    %v1041 = vpop.f32.mrf.mxu0
    %1042 = vdwg.mxu0
    %v1044 = vsel %vm527, %v786, 0
    %v1047 = vsel %vm531, %v787, 0
    %1049 = vmatprep.subr.bf16.mxu0 0
    %1050 = vmatpush1.bf16.msra.mxu0 0
    %1051 = vmatprep.subr.bf16.mxu0 0
    %1052 = vmatpush1.bf16.msra.mxu0 0
    %1053 = vmatprep.subr.bf16.mxu0 0
    %1054 = vmatpush1.bf16.msra.mxu0 0
    %1055 = vmatprep.subr.bf16.mxu0 0
    %1056 = vmatpush1.bf16.msra.mxu0 0
    %1057 = vmatprep.subr.bf16.mxu0 0
    %1058 = vmatpush1.bf16.msra.mxu0 0
    %1059 = vmatprep.subr.bf16.mxu0 0
    %1060 = vmatpush1.bf16.msra.mxu0 0
    %1061 = vmatprep.subr.bf16.mxu0 0
    %1062 = vmatpush1.bf16.msra.mxu0 0
    %1063 = vmatprep.subr.bf16.mxu0 0
    %1064 = vmatpush1.bf16.msra.mxu0 %v1047
    %1065 = vmatprep.subr.bf16.mxu0 0
    %1066 = vmatpush2.bf16.msra.mxu0 0
    %1067 = vmatprep.subr.bf16.mxu0 0
    %1068 = vmatpush2.bf16.msra.mxu0 0
    %1069 = vmatprep.subr.bf16.mxu0 0
    %1070 = vmatpush2.bf16.msra.mxu0 0
    %1071 = vmatprep.subr.bf16.mxu0 0
    %1072 = vmatpush2.bf16.msra.mxu0 0
    %1073 = vmatprep.subr.bf16.mxu0 0
    %1074 = vmatpush2.bf16.msra.mxu0 0
    %1075 = vmatprep.subr.bf16.mxu0 0
    %1076 = vmatpush2.bf16.msra.mxu0 0
    %1077 = vmatprep.subr.bf16.mxu0 0
    %1078 = vmatpush2.bf16.msra.mxu0 0
    %1079 = vmatprep.subr.bf16.mxu0 0
    %1080 = vmatpush2.bf16.msra.mxu0 0
    %1081 = vmatprep.mubr.bf16.mxu0 0
    %1082 = vmatmul.mubr.bf16.gmra.mxu0 %v1044
    %v1083 = vpop.f32.mrf.mxu0
    %v1084 = vadd.f32 %v1037, %v1083
    %v1085 = vpop.f32.mrf.mxu0
    %v1086 = vpop.f32.mrf.mxu0
    %v1087 = vadd.f32 %v1040, %v1086
    %v1088 = vpop.f32.mrf.mxu0
    %1089 = vdwg.mxu0
    %1090 = vrot.lane.b32.xlu0 %v506, 112
    %v1091 = vpop.permute.xlu0 %1090
    %v1093 = vsel %vm527, %v1091, 0
    %1095 = vmatprep.subr.bf16.mxu0 0
    %1096 = vmatpush1.bf16.msra.mxu0 0
    %1097 = vmatprep.subr.bf16.mxu0 0
    %1098 = vmatpush1.bf16.msra.mxu0 0
    %1099 = vmatprep.subr.bf16.mxu0 0
    %1100 = vmatpush1.bf16.msra.mxu0 0
    %1101 = vmatprep.subr.bf16.mxu0 0
    %1102 = vmatpush1.bf16.msra.mxu0 0
    %1103 = vmatprep.subr.bf16.mxu0 0
    %1104 = vmatpush1.bf16.msra.mxu0 0
    %1105 = vmatprep.subr.bf16.mxu0 0
    %1106 = vmatpush1.bf16.msra.mxu0 0
    %1107 = vmatprep.subr.bf16.mxu0 0
    %1108 = vmatpush1.bf16.msra.mxu0 0
    %1109 = vmatprep.subr.bf16.mxu0 0
    %1110 = vmatpush1.bf16.msra.mxu0 %v533
    %1111 = vmatprep.subr.bf16.mxu0 0
    %1112 = vmatpush2.bf16.msra.mxu0 0
    %1113 = vmatprep.subr.bf16.mxu0 0
    %1114 = vmatpush2.bf16.msra.mxu0 0
    %1115 = vmatprep.subr.bf16.mxu0 0
    %1116 = vmatpush2.bf16.msra.mxu0 0
    %1117 = vmatprep.subr.bf16.mxu0 0
    %1118 = vmatpush2.bf16.msra.mxu0 0
    %1119 = vmatprep.subr.bf16.mxu0 0
    %1120 = vmatpush2.bf16.msra.mxu0 0
    %1121 = vmatprep.subr.bf16.mxu0 0
    %1122 = vmatpush2.bf16.msra.mxu0 0
    %1123 = vmatprep.subr.bf16.mxu0 0
    %1124 = vmatpush2.bf16.msra.mxu0 0
    %1125 = vmatprep.subr.bf16.mxu0 0
    %1126 = vmatpush2.bf16.msra.mxu0 0
    %1127 = vmatprep.mubr.bf16.mxu0 0
    %1128 = vmatmul.mubr.bf16.gmra.mxu0 %v1093
    %v1129 = vpop.f32.mrf.mxu0
    %v1130 = vadd.f32 0.0, %v1129
    %v1131 = vpop.f32.mrf.mxu0
    %v1132 = vpop.f32.mrf.mxu0
    %v1133 = vadd.f32 0.0, %v1132
    %v1134 = vpop.f32.mrf.mxu0
    %1135 = vdwg.mxu0
    %v1136 = vmul.f32 %v1130, %v508
    %v1137 = vmul.f32 %v1133, %v509
    %v1138 = vpack.c.bf16 %v1137, %v1136
    %1139 = vmatprep.subr.bf16.mxu0 0
    %1140 = vmatpush1.bf16.msra.mxu0 %v618
    %1141 = vmatprep.subr.bf16.mxu0 0
    %1142 = vmatpush1.bf16.msra.mxu0 %v617
    %1143 = vmatprep.subr.bf16.mxu0 0
    %1144 = vmatpush1.bf16.msra.mxu0 %v616
    %1145 = vmatprep.subr.bf16.mxu0 0
    %1146 = vmatpush1.bf16.msra.mxu0 %v615
    %1147 = vmatprep.subr.bf16.mxu0 0
    %1148 = vmatpush1.bf16.msra.mxu0 %v614
    %1149 = vmatprep.subr.bf16.mxu0 0
    %1150 = vmatpush1.bf16.msra.mxu0 %v613
    %1151 = vmatprep.subr.bf16.mxu0 0
    %1152 = vmatpush1.bf16.msra.mxu0 %v612
    %1153 = vmatprep.subr.bf16.mxu0 0
    %1154 = vmatpush1.bf16.msra.mxu0 %v611
    %1155 = vmatprep.subr.bf16.mxu0 0
    %1156 = vmatpush2.bf16.msra.mxu0 0
    %1157 = vmatprep.subr.bf16.mxu0 0
    %1158 = vmatpush2.bf16.msra.mxu0 0
    %1159 = vmatprep.subr.bf16.mxu0 0
    %1160 = vmatpush2.bf16.msra.mxu0 0
    %1161 = vmatprep.subr.bf16.mxu0 0
    %1162 = vmatpush2.bf16.msra.mxu0 0
    %1163 = vmatprep.subr.bf16.mxu0 0
    %1164 = vmatpush2.bf16.msra.mxu0 0
    %1165 = vmatprep.subr.bf16.mxu0 0
    %1166 = vmatpush2.bf16.msra.mxu0 0
    %1167 = vmatprep.subr.bf16.mxu0 0
    %1168 = vmatpush2.bf16.msra.mxu0 0
    %1169 = vmatprep.subr.bf16.mxu0 0
    %1170 = vmatpush2.bf16.msra.mxu0 0
    %1171 = vmatprep.mubr.bf16.mxu0 0
    %1172 = vmatmul.mubr.bf16.gmra.mxu0 %v1138
    %v1173 = vpop.f32.mrf.mxu0
    %v1174 = vadd.f32 0.0, %v1173
    %v1175 = vpop.f32.mrf.mxu0
    %v1176 = vpop.f32.mrf.mxu0
    %v1177 = vadd.f32 0.0, %v1176
    %v1178 = vpop.f32.mrf.mxu0
    %1179 = vdwg.mxu0
    %1180 = vrot.lane.b32.xlu0 %v506, 80
    %v1181 = vpop.permute.xlu0 %1180
    %v1183 = vsel %vm527, %v1181, 0
    %1185 = vmatprep.subr.bf16.mxu0 0
    %1186 = vmatpush1.bf16.xpose.msra.mxu0 0
    %1187 = vmatprep.subr.bf16.mxu0 0
    %1188 = vmatpush1.bf16.xpose.msra.mxu0 0
    %1189 = vmatprep.subr.bf16.mxu0 0
    %1190 = vmatpush1.bf16.xpose.msra.mxu0 0
    %1191 = vmatprep.subr.bf16.mxu0 0
    %1192 = vmatpush1.bf16.xpose.msra.mxu0 0
    %1193 = vmatprep.subr.bf16.mxu0 0
    %1194 = vmatpush1.bf16.xpose.msra.mxu0 0
    %1195 = vmatprep.subr.bf16.mxu0 0
    %1196 = vmatpush1.bf16.xpose.msra.mxu0 0
    %1197 = vmatprep.subr.bf16.mxu0 0
    %1198 = vmatpush1.bf16.xpose.msra.mxu0 0
    %1199 = vmatprep.subr.bf16.mxu0 0
    %1200 = vmatpush1.bf16.xpose.msra.mxu0 %v1183
    %1201 = vmatprep.subr.bf16.mxu0 0
    %1202 = vmatpush2.bf16.xpose.msra.mxu0 0
    %1203 = vmatprep.subr.bf16.mxu0 0
    %1204 = vmatpush2.bf16.xpose.msra.mxu0 0
    %1205 = vmatprep.subr.bf16.mxu0 0
    %1206 = vmatpush2.bf16.xpose.msra.mxu0 0
    %1207 = vmatprep.subr.bf16.mxu0 0
    %1208 = vmatpush2.bf16.xpose.msra.mxu0 0
    %1209 = vmatprep.subr.bf16.mxu0 0
    %1210 = vmatpush2.bf16.xpose.msra.mxu0 0
    %1211 = vmatprep.subr.bf16.mxu0 0
    %1212 = vmatpush2.bf16.xpose.msra.mxu0 0
    %1213 = vmatprep.subr.bf16.mxu0 0
    %1214 = vmatpush2.bf16.xpose.msra.mxu0 0
    %1215 = vmatprep.subr.bf16.mxu0 0
    %1216 = vmatpush2.bf16.xpose.msra.mxu0 0
    %1217 = vmatprep.mubr.bf16.mxu0 0
    %1218 = vmatmul.mubr.bf16.gmra.mxu0 %v1093
    %v1219 = vpop.f32.mrf.mxu0
    %v1220 = vadd.f32 %v1174, %v1219
    %v1221 = vpop.f32.mrf.mxu0
    %v1222 = vpop.f32.mrf.mxu0
    %v1223 = vadd.f32 %v1177, %v1222
    %v1224 = vpop.f32.mrf.mxu0
    %1225 = vdwg.mxu0
    %v1226 = vsel %vm715, %v1220, -inf
    %1227 = vmax.xlane.f32.xlu0 %v1226
    %v1228 = vpop.xlane.xlu0 %1227
    %v1229 = vsel %vm715, %v1223, -inf
    %1230 = vmax.xlane.f32.xlu0 %v1229
    %v1231 = vpop.xlane.xlu0 %1230
    %v1232 = vsub.f32 %v1220, %v1228
    %v1233 = vsub.f32 %v1223, %v1231
    %v1234 = vmul.f32 %v1232, 1.442695
    %v1235 = vpow.pop %v1234
    %v1236 = vmul.f32 %v1233, 1.442695
    %v1237 = vpow.pop %v1236
    %v1238 = vsel %vm715, %v1235, 0.0
    %1239 = vadd.xlane.f32.xlu0 %v1238
    %v1240 = vpop.xlane.xlu0 %1239
    %v1241 = vsel %vm715, %v1237, 0.0
    %1242 = vadd.xlane.f32.xlu0 %v1241
    %v1243 = vpop.xlane.xlu0 %1242
    %v1244 = vrcp.pop %v1240
    %v1245 = vrcp.pop %v1243
    %v1246 = vmul.f32 %v1235, %v1244
    %v1247 = vmul.f32 %v1237, %v1245
    %v1248 = vpack.c.bf16 %v1247, %v1246
    %1249 = vrot.lane.b32.xlu0 %v506, 48
    %v1250 = vpop.permute.xlu0 %1249
    %v1253 = vsel %vm715, %v1248, 0
    %1255 = vmatprep.subr.bf16.mxu0 0
    %1256 = vmatpush1.bf16.msra.mxu0 0
    %1257 = vmatprep.subr.bf16.mxu0 0
    %1258 = vmatpush1.bf16.msra.mxu0 0
    %1259 = vmatprep.subr.bf16.mxu0 0
    %1260 = vmatpush1.bf16.msra.mxu0 0
    %1261 = vmatprep.subr.bf16.mxu0 0
    %1262 = vmatpush1.bf16.msra.mxu0 0
    %1263 = vmatprep.subr.bf16.mxu0 0
    %1264 = vmatpush1.bf16.msra.mxu0 0
    %1265 = vmatprep.subr.bf16.mxu0 0
    %1266 = vmatpush1.bf16.msra.mxu0 0
    %1267 = vmatprep.subr.bf16.mxu0 0
    %1268 = vmatpush1.bf16.msra.mxu0 0
    %1269 = vmatprep.subr.bf16.mxu0 0
    %1270 = vmatpush1.bf16.msra.mxu0 %v1250
    %1271 = vmatprep.subr.bf16.mxu0 0
    %1272 = vmatpush2.bf16.msra.mxu0 0
    %1273 = vmatprep.subr.bf16.mxu0 0
    %1274 = vmatpush2.bf16.msra.mxu0 0
    %1275 = vmatprep.subr.bf16.mxu0 0
    %1276 = vmatpush2.bf16.msra.mxu0 0
    %1277 = vmatprep.subr.bf16.mxu0 0
    %1278 = vmatpush2.bf16.msra.mxu0 0
    %1279 = vmatprep.subr.bf16.mxu0 0
    %1280 = vmatpush2.bf16.msra.mxu0 0
    %1281 = vmatprep.subr.bf16.mxu0 0
    %1282 = vmatpush2.bf16.msra.mxu0 0
    %1283 = vmatprep.subr.bf16.mxu0 0
    %1284 = vmatpush2.bf16.msra.mxu0 0
    %1285 = vmatprep.subr.bf16.mxu0 0
    %1286 = vmatpush2.bf16.msra.mxu0 0
    %1287 = vmatprep.mubr.bf16.mxu0 0
    %1288 = vmatmul.mubr.bf16.gmra.mxu0 %v1253
    %v1289 = vpop.f32.mrf.mxu0
    %v1290 = vadd.f32 0.0, %v1289
    %v1291 = vpop.f32.mrf.mxu0
    %v1292 = vpop.f32.mrf.mxu0
    %v1293 = vadd.f32 0.0, %v1292
    %v1294 = vpop.f32.mrf.mxu0
    %1295 = vdwg.mxu0
    %v1296 = vpack.c.bf16 %v1293, %v1290
    %v1297 = vld [vmem:[#allocation7 + $0x70] sm:$0xf]
    %v1299 = vsel %vm527, %v1296, 0
    %v1302 = vsel %vm531, %v1297, 0
    %1304 = vmatprep.subr.bf16.mxu0 0
    %1305 = vmatpush1.bf16.msra.mxu0 0
    %1306 = vmatprep.subr.bf16.mxu0 0
    %1307 = vmatpush1.bf16.msra.mxu0 0
    %1308 = vmatprep.subr.bf16.mxu0 0
    %1309 = vmatpush1.bf16.msra.mxu0 0
    %1310 = vmatprep.subr.bf16.mxu0 0
    %1311 = vmatpush1.bf16.msra.mxu0 0
    %1312 = vmatprep.subr.bf16.mxu0 0
    %1313 = vmatpush1.bf16.msra.mxu0 0
    %1314 = vmatprep.subr.bf16.mxu0 0
    %1315 = vmatpush1.bf16.msra.mxu0 0
    %1316 = vmatprep.subr.bf16.mxu0 0
    %1317 = vmatpush1.bf16.msra.mxu0 0
    %1318 = vmatprep.subr.bf16.mxu0 0
    %1319 = vmatpush1.bf16.msra.mxu0 %v1302
    %1320 = vmatprep.subr.bf16.mxu0 0
    %1321 = vmatpush2.bf16.msra.mxu0 0
    %1322 = vmatprep.subr.bf16.mxu0 0
    %1323 = vmatpush2.bf16.msra.mxu0 0
    %1324 = vmatprep.subr.bf16.mxu0 0
    %1325 = vmatpush2.bf16.msra.mxu0 0
    %1326 = vmatprep.subr.bf16.mxu0 0
    %1327 = vmatpush2.bf16.msra.mxu0 0
    %1328 = vmatprep.subr.bf16.mxu0 0
    %1329 = vmatpush2.bf16.msra.mxu0 0
    %1330 = vmatprep.subr.bf16.mxu0 0
    %1331 = vmatpush2.bf16.msra.mxu0 0
    %1332 = vmatprep.subr.bf16.mxu0 0
    %1333 = vmatpush2.bf16.msra.mxu0 0
    %1334 = vmatprep.subr.bf16.mxu0 0
    %1335 = vmatpush2.bf16.msra.mxu0 0
    %1336 = vmatprep.mubr.bf16.mxu0 0
    %1337 = vmatmul.mubr.bf16.gmra.mxu0 %v1299
    %v1338 = vpop.f32.mrf.mxu0
    %v1339 = vadd.f32 0.0, %v1338
    %v1340 = vpop.f32.mrf.mxu0
    %v1341 = vpop.f32.mrf.mxu0
    %v1342 = vadd.f32 0.0, %v1341
    %v1343 = vpop.f32.mrf.mxu0
    %1344 = vdwg.mxu0
    %v1345 = vadd.f32 %v1084, %v1339
    %v1346 = vadd.f32 %v1087, %v1342
    %1347 = vrot.lane.b32.xlu0 %v506, 104
    %v1348 = vpop.permute.xlu0 %1347
    %v1350 = vsel %vm527, %v1348, 0
    %1352 = vmatprep.subr.bf16.mxu0 0
    %1353 = vmatpush1.bf16.msra.mxu0 0
    %1354 = vmatprep.subr.bf16.mxu0 0
    %1355 = vmatpush1.bf16.msra.mxu0 0
    %1356 = vmatprep.subr.bf16.mxu0 0
    %1357 = vmatpush1.bf16.msra.mxu0 0
    %1358 = vmatprep.subr.bf16.mxu0 0
    %1359 = vmatpush1.bf16.msra.mxu0 0
    %1360 = vmatprep.subr.bf16.mxu0 0
    %1361 = vmatpush1.bf16.msra.mxu0 0
    %1362 = vmatprep.subr.bf16.mxu0 0
    %1363 = vmatpush1.bf16.msra.mxu0 0
    %1364 = vmatprep.subr.bf16.mxu0 0
    %1365 = vmatpush1.bf16.msra.mxu0 0
    %1366 = vmatprep.subr.bf16.mxu0 0
    %1367 = vmatpush1.bf16.msra.mxu0 %v533
    %1368 = vmatprep.subr.bf16.mxu0 0
    %1369 = vmatpush2.bf16.msra.mxu0 0
    %1370 = vmatprep.subr.bf16.mxu0 0
    %1371 = vmatpush2.bf16.msra.mxu0 0
    %1372 = vmatprep.subr.bf16.mxu0 0
    %1373 = vmatpush2.bf16.msra.mxu0 0
    %1374 = vmatprep.subr.bf16.mxu0 0
    %1375 = vmatpush2.bf16.msra.mxu0 0
    %1376 = vmatprep.subr.bf16.mxu0 0
    %1377 = vmatpush2.bf16.msra.mxu0 0
    %1378 = vmatprep.subr.bf16.mxu0 0
    %1379 = vmatpush2.bf16.msra.mxu0 0
    %1380 = vmatprep.subr.bf16.mxu0 0
    %1381 = vmatpush2.bf16.msra.mxu0 0
    %1382 = vmatprep.subr.bf16.mxu0 0
    %1383 = vmatpush2.bf16.msra.mxu0 0
    %1384 = vmatprep.mubr.bf16.mxu0 0
    %1385 = vmatmul.mubr.bf16.gmra.mxu0 %v1350
    %v1386 = vpop.f32.mrf.mxu0
    %v1387 = vadd.f32 0.0, %v1386
    %v1388 = vpop.f32.mrf.mxu0
    %v1389 = vpop.f32.mrf.mxu0
    %v1390 = vadd.f32 0.0, %v1389
    %v1391 = vpop.f32.mrf.mxu0
    %1392 = vdwg.mxu0
    %v1393 = vmul.f32 %v1387, %v508
    %v1394 = vmul.f32 %v1390, %v509
    %v1395 = vpack.c.bf16 %v1394, %v1393
    %1396 = vmatprep.subr.bf16.mxu0 0
    %1397 = vmatpush1.bf16.msra.mxu0 %v618
    %1398 = vmatprep.subr.bf16.mxu0 0
    %1399 = vmatpush1.bf16.msra.mxu0 %v617
    %1400 = vmatprep.subr.bf16.mxu0 0
    %1401 = vmatpush1.bf16.msra.mxu0 %v616
    %1402 = vmatprep.subr.bf16.mxu0 0
    %1403 = vmatpush1.bf16.msra.mxu0 %v615
    %1404 = vmatprep.subr.bf16.mxu0 0
    %1405 = vmatpush1.bf16.msra.mxu0 %v614
    %1406 = vmatprep.subr.bf16.mxu0 0
    %1407 = vmatpush1.bf16.msra.mxu0 %v613
    %1408 = vmatprep.subr.bf16.mxu0 0
    %1409 = vmatpush1.bf16.msra.mxu0 %v612
    %1410 = vmatprep.subr.bf16.mxu0 0
    %1411 = vmatpush1.bf16.msra.mxu0 %v611
    %1412 = vmatprep.subr.bf16.mxu0 0
    %1413 = vmatpush2.bf16.msra.mxu0 0
    %1414 = vmatprep.subr.bf16.mxu0 0
    %1415 = vmatpush2.bf16.msra.mxu0 0
    %1416 = vmatprep.subr.bf16.mxu0 0
    %1417 = vmatpush2.bf16.msra.mxu0 0
    %1418 = vmatprep.subr.bf16.mxu0 0
    %1419 = vmatpush2.bf16.msra.mxu0 0
    %1420 = vmatprep.subr.bf16.mxu0 0
    %1421 = vmatpush2.bf16.msra.mxu0 0
    %1422 = vmatprep.subr.bf16.mxu0 0
    %1423 = vmatpush2.bf16.msra.mxu0 0
    %1424 = vmatprep.subr.bf16.mxu0 0
    %1425 = vmatpush2.bf16.msra.mxu0 0
    %1426 = vmatprep.subr.bf16.mxu0 0
    %1427 = vmatpush2.bf16.msra.mxu0 0
    %1428 = vmatprep.mubr.bf16.mxu0 0
    %1429 = vmatmul.mubr.bf16.gmra.mxu0 %v1395
    %v1430 = vpop.f32.mrf.mxu0
    %v1431 = vadd.f32 0.0, %v1430
    %v1432 = vpop.f32.mrf.mxu0
    %v1433 = vpop.f32.mrf.mxu0
    %v1434 = vadd.f32 0.0, %v1433
    %v1435 = vpop.f32.mrf.mxu0
    %1436 = vdwg.mxu0
    %1437 = vrot.lane.b32.xlu0 %v506, 72
    %v1438 = vpop.permute.xlu0 %1437
    %v1440 = vsel %vm527, %v1438, 0
    %1442 = vmatprep.subr.bf16.mxu0 0
    %1443 = vmatpush1.bf16.xpose.msra.mxu0 0
    %1444 = vmatprep.subr.bf16.mxu0 0
    %1445 = vmatpush1.bf16.xpose.msra.mxu0 0
    %1446 = vmatprep.subr.bf16.mxu0 0
    %1447 = vmatpush1.bf16.xpose.msra.mxu0 0
    %1448 = vmatprep.subr.bf16.mxu0 0
    %1449 = vmatpush1.bf16.xpose.msra.mxu0 0
    %1450 = vmatprep.subr.bf16.mxu0 0
    %1451 = vmatpush1.bf16.xpose.msra.mxu0 0
    %1452 = vmatprep.subr.bf16.mxu0 0
    %1453 = vmatpush1.bf16.xpose.msra.mxu0 0
    %1454 = vmatprep.subr.bf16.mxu0 0
    %1455 = vmatpush1.bf16.xpose.msra.mxu0 0
    %1456 = vmatprep.subr.bf16.mxu0 0
    %1457 = vmatpush1.bf16.xpose.msra.mxu0 %v1440
    %1458 = vmatprep.subr.bf16.mxu0 0
    %1459 = vmatpush2.bf16.xpose.msra.mxu0 0
    %1460 = vmatprep.subr.bf16.mxu0 0
    %1461 = vmatpush2.bf16.xpose.msra.mxu0 0
    %1462 = vmatprep.subr.bf16.mxu0 0
    %1463 = vmatpush2.bf16.xpose.msra.mxu0 0
    %1464 = vmatprep.subr.bf16.mxu0 0
    %1465 = vmatpush2.bf16.xpose.msra.mxu0 0
    %1466 = vmatprep.subr.bf16.mxu0 0
    %1467 = vmatpush2.bf16.xpose.msra.mxu0 0
    %1468 = vmatprep.subr.bf16.mxu0 0
    %1469 = vmatpush2.bf16.xpose.msra.mxu0 0
    %1470 = vmatprep.subr.bf16.mxu0 0
    %1471 = vmatpush2.bf16.xpose.msra.mxu0 0
    %1472 = vmatprep.subr.bf16.mxu0 0
    %1473 = vmatpush2.bf16.xpose.msra.mxu0 0
    %1474 = vmatprep.mubr.bf16.mxu0 0
    %1475 = vmatmul.mubr.bf16.gmra.mxu0 %v1350
    %v1476 = vpop.f32.mrf.mxu0
    %v1477 = vadd.f32 %v1431, %v1476
    %v1478 = vpop.f32.mrf.mxu0
    %v1479 = vpop.f32.mrf.mxu0
    %v1480 = vadd.f32 %v1434, %v1479
    %v1481 = vpop.f32.mrf.mxu0
    %1482 = vdwg.mxu0
    %v1483 = vsel %vm715, %v1477, -inf
    %1484 = vmax.xlane.f32.xlu0 %v1483
    %v1485 = vpop.xlane.xlu0 %1484
    %v1486 = vsel %vm715, %v1480, -inf
    %1487 = vmax.xlane.f32.xlu0 %v1486
    %v1488 = vpop.xlane.xlu0 %1487
    %v1489 = vsub.f32 %v1477, %v1485
    %v1490 = vsub.f32 %v1480, %v1488
    %v1491 = vmul.f32 %v1489, 1.442695
    %v1492 = vpow.pop %v1491
    %v1493 = vmul.f32 %v1490, 1.442695
    %v1494 = vpow.pop %v1493
    %v1495 = vsel %vm715, %v1492, 0.0
    %1496 = vadd.xlane.f32.xlu0 %v1495
    %v1497 = vpop.xlane.xlu0 %1496
    %v1498 = vsel %vm715, %v1494, 0.0
    %1499 = vadd.xlane.f32.xlu0 %v1498
    %v1500 = vpop.xlane.xlu0 %1499
    %v1501 = vrcp.pop %v1497
    %v1502 = vrcp.pop %v1500
    %v1503 = vmul.f32 %v1492, %v1501
    %v1504 = vmul.f32 %v1494, %v1502
    %v1505 = vpack.c.bf16 %v1504, %v1503
    %1506 = vrot.lane.b32.xlu0 %v506, 40
    %v1507 = vpop.permute.xlu0 %1506
    %v1510 = vsel %vm715, %v1505, 0
    %1512 = vmatprep.subr.bf16.mxu0 0
    %1513 = vmatpush1.bf16.msra.mxu0 0
    %1514 = vmatprep.subr.bf16.mxu0 0
    %1515 = vmatpush1.bf16.msra.mxu0 0
    %1516 = vmatprep.subr.bf16.mxu0 0
    %1517 = vmatpush1.bf16.msra.mxu0 0
    %1518 = vmatprep.subr.bf16.mxu0 0
    %1519 = vmatpush1.bf16.msra.mxu0 0
    %1520 = vmatprep.subr.bf16.mxu0 0
    %1521 = vmatpush1.bf16.msra.mxu0 0
    %1522 = vmatprep.subr.bf16.mxu0 0
    %1523 = vmatpush1.bf16.msra.mxu0 0
    %1524 = vmatprep.subr.bf16.mxu0 0
    %1525 = vmatpush1.bf16.msra.mxu0 0
    %1526 = vmatprep.subr.bf16.mxu0 0
    %1527 = vmatpush1.bf16.msra.mxu0 %v1507
    %1528 = vmatprep.subr.bf16.mxu0 0
    %1529 = vmatpush2.bf16.msra.mxu0 0
    %1530 = vmatprep.subr.bf16.mxu0 0
    %1531 = vmatpush2.bf16.msra.mxu0 0
    %1532 = vmatprep.subr.bf16.mxu0 0
    %1533 = vmatpush2.bf16.msra.mxu0 0
    %1534 = vmatprep.subr.bf16.mxu0 0
    %1535 = vmatpush2.bf16.msra.mxu0 0
    %1536 = vmatprep.subr.bf16.mxu0 0
    %1537 = vmatpush2.bf16.msra.mxu0 0
    %1538 = vmatprep.subr.bf16.mxu0 0
    %1539 = vmatpush2.bf16.msra.mxu0 0
    %1540 = vmatprep.subr.bf16.mxu0 0
    %1541 = vmatpush2.bf16.msra.mxu0 0
    %1542 = vmatprep.subr.bf16.mxu0 0
    %1543 = vmatpush2.bf16.msra.mxu0 0
    %1544 = vmatprep.mubr.bf16.mxu0 0
    %1545 = vmatmul.mubr.bf16.gmra.mxu0 %v1510
    %v1546 = vpop.f32.mrf.mxu0
    %v1547 = vadd.f32 0.0, %v1546
    %v1548 = vpop.f32.mrf.mxu0
    %v1549 = vpop.f32.mrf.mxu0
    %v1550 = vadd.f32 0.0, %v1549
    %v1551 = vpop.f32.mrf.mxu0
    %1552 = vdwg.mxu0
    %v1553 = vpack.c.bf16 %v1550, %v1547
    %v1554 = vld [vmem:[#allocation7 + $0x78] sm:$0xf]
    %v1556 = vsel %vm527, %v1553, 0
    %v1559 = vsel %vm531, %v1554, 0
    %1561 = vmatprep.subr.bf16.mxu0 0
    %1562 = vmatpush1.bf16.msra.mxu0 0
    %1563 = vmatprep.subr.bf16.mxu0 0
    %1564 = vmatpush1.bf16.msra.mxu0 0
    %1565 = vmatprep.subr.bf16.mxu0 0
    %1566 = vmatpush1.bf16.msra.mxu0 0
    %1567 = vmatprep.subr.bf16.mxu0 0
    %1568 = vmatpush1.bf16.msra.mxu0 0
    %1569 = vmatprep.subr.bf16.mxu0 0
    %1570 = vmatpush1.bf16.msra.mxu0 0
    %1571 = vmatprep.subr.bf16.mxu0 0
    %1572 = vmatpush1.bf16.msra.mxu0 0
    %1573 = vmatprep.subr.bf16.mxu0 0
    %1574 = vmatpush1.bf16.msra.mxu0 0
    %1575 = vmatprep.subr.bf16.mxu0 0
    %1576 = vmatpush1.bf16.msra.mxu0 %v1559
    %1577 = vmatprep.subr.bf16.mxu0 0
    %1578 = vmatpush2.bf16.msra.mxu0 0
    %1579 = vmatprep.subr.bf16.mxu0 0
    %1580 = vmatpush2.bf16.msra.mxu0 0
    %1581 = vmatprep.subr.bf16.mxu0 0
    %1582 = vmatpush2.bf16.msra.mxu0 0
    %1583 = vmatprep.subr.bf16.mxu0 0
    %1584 = vmatpush2.bf16.msra.mxu0 0
    %1585 = vmatprep.subr.bf16.mxu0 0
    %1586 = vmatpush2.bf16.msra.mxu0 0
    %1587 = vmatprep.subr.bf16.mxu0 0
    %1588 = vmatpush2.bf16.msra.mxu0 0
    %1589 = vmatprep.subr.bf16.mxu0 0
    %1590 = vmatpush2.bf16.msra.mxu0 0
    %1591 = vmatprep.subr.bf16.mxu0 0
    %1592 = vmatpush2.bf16.msra.mxu0 0
    %1593 = vmatprep.mubr.bf16.mxu0 0
    %1594 = vmatmul.mubr.bf16.gmra.mxu0 %v1556
    %v1595 = vpop.f32.mrf.mxu0
    %v1596 = vadd.f32 0.0, %v1595
    %v1597 = vpop.f32.mrf.mxu0
    %v1598 = vpop.f32.mrf.mxu0
    %v1599 = vadd.f32 0.0, %v1598
    %v1600 = vpop.f32.mrf.mxu0
    %1601 = vdwg.mxu0
    %v1602 = vadd.f32 %v1345, %v1596
    %v1603 = vadd.f32 %v1346, %v1599
    %v1605 = vsel %vm527, %v507, 0
    %1607 = vmatprep.subr.bf16.mxu0 0
    %1608 = vmatpush1.bf16.msra.mxu0 0
    %1609 = vmatprep.subr.bf16.mxu0 0
    %1610 = vmatpush1.bf16.msra.mxu0 0
    %1611 = vmatprep.subr.bf16.mxu0 0
    %1612 = vmatpush1.bf16.msra.mxu0 0
    %1613 = vmatprep.subr.bf16.mxu0 0
    %1614 = vmatpush1.bf16.msra.mxu0 0
    %1615 = vmatprep.subr.bf16.mxu0 0
    %1616 = vmatpush1.bf16.msra.mxu0 0
    %1617 = vmatprep.subr.bf16.mxu0 0
    %1618 = vmatpush1.bf16.msra.mxu0 0
    %1619 = vmatprep.subr.bf16.mxu0 0
    %1620 = vmatpush1.bf16.msra.mxu0 0
    %1621 = vmatprep.subr.bf16.mxu0 0
    %1622 = vmatpush1.bf16.msra.mxu0 %v533
    %1623 = vmatprep.subr.bf16.mxu0 0
    %1624 = vmatpush2.bf16.msra.mxu0 0
    %1625 = vmatprep.subr.bf16.mxu0 0
    %1626 = vmatpush2.bf16.msra.mxu0 0
    %1627 = vmatprep.subr.bf16.mxu0 0
    %1628 = vmatpush2.bf16.msra.mxu0 0
    %1629 = vmatprep.subr.bf16.mxu0 0
    %1630 = vmatpush2.bf16.msra.mxu0 0
    %1631 = vmatprep.subr.bf16.mxu0 0
    %1632 = vmatpush2.bf16.msra.mxu0 0
    %1633 = vmatprep.subr.bf16.mxu0 0
    %1634 = vmatpush2.bf16.msra.mxu0 0
    %1635 = vmatprep.subr.bf16.mxu0 0
    %1636 = vmatpush2.bf16.msra.mxu0 0
    %1637 = vmatprep.subr.bf16.mxu0 0
    %1638 = vmatpush2.bf16.msra.mxu0 0
    %1639 = vmatprep.mubr.bf16.mxu0 0
    %1640 = vmatmul.mubr.bf16.gmra.mxu0 %v1605
    %v1641 = vpop.f32.mrf.mxu0
    %v1642 = vadd.f32 0.0, %v1641
    %v1643 = vpop.f32.mrf.mxu0
    %v1644 = vpop.f32.mrf.mxu0
    %v1645 = vadd.f32 0.0, %v1644
    %v1646 = vpop.f32.mrf.mxu0
    %1647 = vdwg.mxu0
    %v1648 = vmul.f32 %v1642, %v508
    %v1649 = vmul.f32 %v1645, %v509
    %v1650 = vpack.c.bf16 %v1649, %v1648
    %1651 = vmatprep.subr.bf16.mxu0 0
    %1652 = vmatpush1.bf16.msra.mxu0 %v618
    %1653 = vmatprep.subr.bf16.mxu0 0
    %1654 = vmatpush1.bf16.msra.mxu0 %v617
    %1655 = vmatprep.subr.bf16.mxu0 0
    %1656 = vmatpush1.bf16.msra.mxu0 %v616
    %1657 = vmatprep.subr.bf16.mxu0 0
    %1658 = vmatpush1.bf16.msra.mxu0 %v615
    %1659 = vmatprep.subr.bf16.mxu0 0
    %1660 = vmatpush1.bf16.msra.mxu0 %v614
    %1661 = vmatprep.subr.bf16.mxu0 0
    %1662 = vmatpush1.bf16.msra.mxu0 %v613
    %1663 = vmatprep.subr.bf16.mxu0 0
    %1664 = vmatpush1.bf16.msra.mxu0 %v612
    %1665 = vmatprep.subr.bf16.mxu0 0
    %1666 = vmatpush1.bf16.msra.mxu0 %v611
    %1667 = vmatprep.subr.bf16.mxu0 0
    %1668 = vmatpush2.bf16.msra.mxu0 0
    %1669 = vmatprep.subr.bf16.mxu0 0
    %1670 = vmatpush2.bf16.msra.mxu0 0
    %1671 = vmatprep.subr.bf16.mxu0 0
    %1672 = vmatpush2.bf16.msra.mxu0 0
    %1673 = vmatprep.subr.bf16.mxu0 0
    %1674 = vmatpush2.bf16.msra.mxu0 0
    %1675 = vmatprep.subr.bf16.mxu0 0
    %1676 = vmatpush2.bf16.msra.mxu0 0
    %1677 = vmatprep.subr.bf16.mxu0 0
    %1678 = vmatpush2.bf16.msra.mxu0 0
    %1679 = vmatprep.subr.bf16.mxu0 0
    %1680 = vmatpush2.bf16.msra.mxu0 0
    %1681 = vmatprep.subr.bf16.mxu0 0
    %1682 = vmatpush2.bf16.msra.mxu0 0
    %1683 = vmatprep.mubr.bf16.mxu0 0
    %1684 = vmatmul.mubr.bf16.gmra.mxu0 %v1650
    %v1685 = vpop.f32.mrf.mxu0
    %v1686 = vadd.f32 0.0, %v1685
    %v1687 = vpop.f32.mrf.mxu0
    %v1688 = vpop.f32.mrf.mxu0
    %v1689 = vadd.f32 0.0, %v1688
    %v1690 = vpop.f32.mrf.mxu0
    %1691 = vdwg.mxu0
    %1693 = vrot.lane.b32.xlu0 %v507, 96
    %v1694 = vpop.permute.xlu0 %1693
    %v1696 = vsel %vm527, %v1694, 0
    %1698 = vmatprep.subr.bf16.mxu0 0
    %1699 = vmatpush1.bf16.xpose.msra.mxu0 0
    %1700 = vmatprep.subr.bf16.mxu0 0
    %1701 = vmatpush1.bf16.xpose.msra.mxu0 0
    %1702 = vmatprep.subr.bf16.mxu0 0
    %1703 = vmatpush1.bf16.xpose.msra.mxu0 0
    %1704 = vmatprep.subr.bf16.mxu0 0
    %1705 = vmatpush1.bf16.xpose.msra.mxu0 0
    %1706 = vmatprep.subr.bf16.mxu0 0
    %1707 = vmatpush1.bf16.xpose.msra.mxu0 0
    %1708 = vmatprep.subr.bf16.mxu0 0
    %1709 = vmatpush1.bf16.xpose.msra.mxu0 0
    %1710 = vmatprep.subr.bf16.mxu0 0
    %1711 = vmatpush1.bf16.xpose.msra.mxu0 0
    %1712 = vmatprep.subr.bf16.mxu0 0
    %1713 = vmatpush1.bf16.xpose.msra.mxu0 %v1696
    %1714 = vmatprep.subr.bf16.mxu0 0
    %1715 = vmatpush2.bf16.xpose.msra.mxu0 0
    %1716 = vmatprep.subr.bf16.mxu0 0
    %1717 = vmatpush2.bf16.xpose.msra.mxu0 0
    %1718 = vmatprep.subr.bf16.mxu0 0
    %1719 = vmatpush2.bf16.xpose.msra.mxu0 0
    %1720 = vmatprep.subr.bf16.mxu0 0
    %1721 = vmatpush2.bf16.xpose.msra.mxu0 0
    %1722 = vmatprep.subr.bf16.mxu0 0
    %1723 = vmatpush2.bf16.xpose.msra.mxu0 0
    %1724 = vmatprep.subr.bf16.mxu0 0
    %1725 = vmatpush2.bf16.xpose.msra.mxu0 0
    %1726 = vmatprep.subr.bf16.mxu0 0
    %1727 = vmatpush2.bf16.xpose.msra.mxu0 0
    %1728 = vmatprep.subr.bf16.mxu0 0
    %1729 = vmatpush2.bf16.xpose.msra.mxu0 0
    %1730 = vmatprep.mubr.bf16.mxu0 0
    %1731 = vmatmul.mubr.bf16.gmra.mxu0 %v1605
    %v1732 = vpop.f32.mrf.mxu0
    %v1733 = vadd.f32 %v1686, %v1732
    %v1734 = vpop.f32.mrf.mxu0
    %v1735 = vpop.f32.mrf.mxu0
    %v1736 = vadd.f32 %v1689, %v1735
    %v1737 = vpop.f32.mrf.mxu0
    %1738 = vdwg.mxu0
    %v1739 = vsel %vm715, %v1733, -inf
    %1740 = vmax.xlane.f32.xlu0 %v1739
    %v1741 = vpop.xlane.xlu0 %1740
    %v1742 = vsel %vm715, %v1736, -inf
    %1743 = vmax.xlane.f32.xlu0 %v1742
    %v1744 = vpop.xlane.xlu0 %1743
    %v1745 = vsub.f32 %v1733, %v1741
    %v1746 = vsub.f32 %v1736, %v1744
    %v1747 = vmul.f32 %v1745, 1.442695
    %v1748 = vpow.pop %v1747
    %v1749 = vmul.f32 %v1746, 1.442695
    %v1750 = vpow.pop %v1749
    %v1751 = vsel %vm715, %v1748, 0.0
    %1752 = vadd.xlane.f32.xlu0 %v1751
    %v1753 = vpop.xlane.xlu0 %1752
    %v1754 = vsel %vm715, %v1750, 0.0
    %1755 = vadd.xlane.f32.xlu0 %v1754
    %v1756 = vpop.xlane.xlu0 %1755
    %v1757 = vrcp.pop %v1753
    %v1758 = vrcp.pop %v1756
    %v1759 = vmul.f32 %v1748, %v1757
    %v1760 = vmul.f32 %v1750, %v1758
    %v1761 = vpack.c.bf16 %v1760, %v1759
    %1762 = vrot.lane.b32.xlu0 %v507, 64
    %v1763 = vpop.permute.xlu0 %1762
    %v1766 = vsel %vm715, %v1761, 0
    %1768 = vmatprep.subr.bf16.mxu0 0
    %1769 = vmatpush1.bf16.msra.mxu0 0
    %1770 = vmatprep.subr.bf16.mxu0 0
    %1771 = vmatpush1.bf16.msra.mxu0 0
    %1772 = vmatprep.subr.bf16.mxu0 0
    %1773 = vmatpush1.bf16.msra.mxu0 0
    %1774 = vmatprep.subr.bf16.mxu0 0
    %1775 = vmatpush1.bf16.msra.mxu0 0
    %1776 = vmatprep.subr.bf16.mxu0 0
    %1777 = vmatpush1.bf16.msra.mxu0 0
    %1778 = vmatprep.subr.bf16.mxu0 0
    %1779 = vmatpush1.bf16.msra.mxu0 0
    %1780 = vmatprep.subr.bf16.mxu0 0
    %1781 = vmatpush1.bf16.msra.mxu0 0
    %1782 = vmatprep.subr.bf16.mxu0 0
    %1783 = vmatpush1.bf16.msra.mxu0 %v1763
    %1784 = vmatprep.subr.bf16.mxu0 0
    %1785 = vmatpush2.bf16.msra.mxu0 0
    %1786 = vmatprep.subr.bf16.mxu0 0
    %1787 = vmatpush2.bf16.msra.mxu0 0
    %1788 = vmatprep.subr.bf16.mxu0 0
    %1789 = vmatpush2.bf16.msra.mxu0 0
    %1790 = vmatprep.subr.bf16.mxu0 0
    %1791 = vmatpush2.bf16.msra.mxu0 0
    %1792 = vmatprep.subr.bf16.mxu0 0
    %1793 = vmatpush2.bf16.msra.mxu0 0
    %1794 = vmatprep.subr.bf16.mxu0 0
    %1795 = vmatpush2.bf16.msra.mxu0 0
    %1796 = vmatprep.subr.bf16.mxu0 0
    %1797 = vmatpush2.bf16.msra.mxu0 0
    %1798 = vmatprep.subr.bf16.mxu0 0
    %1799 = vmatpush2.bf16.msra.mxu0 0
    %1800 = vmatprep.mubr.bf16.mxu0 0
    %1801 = vmatmul.mubr.bf16.gmra.mxu0 %v1766
    %v1802 = vpop.f32.mrf.mxu0
    %v1803 = vadd.f32 0.0, %v1802
    %v1804 = vpop.f32.mrf.mxu0
    %v1805 = vpop.f32.mrf.mxu0
    %v1806 = vadd.f32 0.0, %v1805
    %v1807 = vpop.f32.mrf.mxu0
    %1808 = vdwg.mxu0
    %v1809 = vpack.c.bf16 %v1806, %v1803
    %1810 = vrot.lane.b32.xlu0 %v507, 120
    %v1811 = vpop.permute.xlu0 %1810
    %v1813 = vsel %vm527, %v1811, 0
    %1815 = vmatprep.subr.bf16.mxu0 0
    %1816 = vmatpush1.bf16.msra.mxu0 0
    %1817 = vmatprep.subr.bf16.mxu0 0
    %1818 = vmatpush1.bf16.msra.mxu0 0
    %1819 = vmatprep.subr.bf16.mxu0 0
    %1820 = vmatpush1.bf16.msra.mxu0 0
    %1821 = vmatprep.subr.bf16.mxu0 0
    %1822 = vmatpush1.bf16.msra.mxu0 0
    %1823 = vmatprep.subr.bf16.mxu0 0
    %1824 = vmatpush1.bf16.msra.mxu0 0
    %1825 = vmatprep.subr.bf16.mxu0 0
    %1826 = vmatpush1.bf16.msra.mxu0 0
    %1827 = vmatprep.subr.bf16.mxu0 0
    %1828 = vmatpush1.bf16.msra.mxu0 0
    %1829 = vmatprep.subr.bf16.mxu0 0
    %1830 = vmatpush1.bf16.msra.mxu0 %v533
    %1831 = vmatprep.subr.bf16.mxu0 0
    %1832 = vmatpush2.bf16.msra.mxu0 0
    %1833 = vmatprep.subr.bf16.mxu0 0
    %1834 = vmatpush2.bf16.msra.mxu0 0
    %1835 = vmatprep.subr.bf16.mxu0 0
    %1836 = vmatpush2.bf16.msra.mxu0 0
    %1837 = vmatprep.subr.bf16.mxu0 0
    %1838 = vmatpush2.bf16.msra.mxu0 0
    %1839 = vmatprep.subr.bf16.mxu0 0
    %1840 = vmatpush2.bf16.msra.mxu0 0
    %1841 = vmatprep.subr.bf16.mxu0 0
    %1842 = vmatpush2.bf16.msra.mxu0 0
    %1843 = vmatprep.subr.bf16.mxu0 0
    %1844 = vmatpush2.bf16.msra.mxu0 0
    %1845 = vmatprep.subr.bf16.mxu0 0
    %1846 = vmatpush2.bf16.msra.mxu0 0
    %1847 = vmatprep.mubr.bf16.mxu0 0
    %1848 = vmatmul.mubr.bf16.gmra.mxu0 %v1813
    %v1849 = vpop.f32.mrf.mxu0
    %v1850 = vadd.f32 0.0, %v1849
    %v1851 = vpop.f32.mrf.mxu0
    %v1852 = vpop.f32.mrf.mxu0
    %v1853 = vadd.f32 0.0, %v1852
    %v1854 = vpop.f32.mrf.mxu0
    %1855 = vdwg.mxu0
    %v1856 = vmul.f32 %v1850, %v508
    %v1857 = vmul.f32 %v1853, %v509
    %v1858 = vpack.c.bf16 %v1857, %v1856
    %1859 = vmatprep.subr.bf16.mxu0 0
    %1860 = vmatpush1.bf16.msra.mxu0 %v618
    %1861 = vmatprep.subr.bf16.mxu0 0
    %1862 = vmatpush1.bf16.msra.mxu0 %v617
    %1863 = vmatprep.subr.bf16.mxu0 0
    %1864 = vmatpush1.bf16.msra.mxu0 %v616
    %1865 = vmatprep.subr.bf16.mxu0 0
    %1866 = vmatpush1.bf16.msra.mxu0 %v615
    %1867 = vmatprep.subr.bf16.mxu0 0
    %1868 = vmatpush1.bf16.msra.mxu0 %v614
    %1869 = vmatprep.subr.bf16.mxu0 0
    %1870 = vmatpush1.bf16.msra.mxu0 %v613
    %1871 = vmatprep.subr.bf16.mxu0 0
    %1872 = vmatpush1.bf16.msra.mxu0 %v612
    %1873 = vmatprep.subr.bf16.mxu0 0
    %1874 = vmatpush1.bf16.msra.mxu0 %v611
    %1875 = vmatprep.subr.bf16.mxu0 0
    %1876 = vmatpush2.bf16.msra.mxu0 0
    %1877 = vmatprep.subr.bf16.mxu0 0
    %1878 = vmatpush2.bf16.msra.mxu0 0
    %1879 = vmatprep.subr.bf16.mxu0 0
    %1880 = vmatpush2.bf16.msra.mxu0 0
    %1881 = vmatprep.subr.bf16.mxu0 0
    %1882 = vmatpush2.bf16.msra.mxu0 0
    %1883 = vmatprep.subr.bf16.mxu0 0
    %1884 = vmatpush2.bf16.msra.mxu0 0
    %1885 = vmatprep.subr.bf16.mxu0 0
    %1886 = vmatpush2.bf16.msra.mxu0 0
    %1887 = vmatprep.subr.bf16.mxu0 0
    %1888 = vmatpush2.bf16.msra.mxu0 0
    %1889 = vmatprep.subr.bf16.mxu0 0
    %1890 = vmatpush2.bf16.msra.mxu0 0
    %1891 = vmatprep.mubr.bf16.mxu0 0
    %1892 = vmatmul.mubr.bf16.gmra.mxu0 %v1858
    %v1893 = vpop.f32.mrf.mxu0
    %v1894 = vadd.f32 0.0, %v1893
    %v1895 = vpop.f32.mrf.mxu0
    %v1896 = vpop.f32.mrf.mxu0
    %v1897 = vadd.f32 0.0, %v1896
    %v1898 = vpop.f32.mrf.mxu0
    %1899 = vdwg.mxu0
    %1900 = vrot.lane.b32.xlu0 %v507, 88
    %v1901 = vpop.permute.xlu0 %1900
    %v1903 = vsel %vm527, %v1901, 0
    %1905 = vmatprep.subr.bf16.mxu0 0
    %1906 = vmatpush1.bf16.xpose.msra.mxu0 0
    %1907 = vmatprep.subr.bf16.mxu0 0
    %1908 = vmatpush1.bf16.xpose.msra.mxu0 0
    %1909 = vmatprep.subr.bf16.mxu0 0
    %1910 = vmatpush1.bf16.xpose.msra.mxu0 0
    %1911 = vmatprep.subr.bf16.mxu0 0
    %1912 = vmatpush1.bf16.xpose.msra.mxu0 0
    %1913 = vmatprep.subr.bf16.mxu0 0
    %1914 = vmatpush1.bf16.xpose.msra.mxu0 0
    %1915 = vmatprep.subr.bf16.mxu0 0
    %1916 = vmatpush1.bf16.xpose.msra.mxu0 0
    %1917 = vmatprep.subr.bf16.mxu0 0
    %1918 = vmatpush1.bf16.xpose.msra.mxu0 0
    %1919 = vmatprep.subr.bf16.mxu0 0
    %1920 = vmatpush1.bf16.xpose.msra.mxu0 %v1903
    %1921 = vmatprep.subr.bf16.mxu0 0
    %1922 = vmatpush2.bf16.xpose.msra.mxu0 0
    %1923 = vmatprep.subr.bf16.mxu0 0
    %1924 = vmatpush2.bf16.xpose.msra.mxu0 0
    %1925 = vmatprep.subr.bf16.mxu0 0
    %1926 = vmatpush2.bf16.xpose.msra.mxu0 0
    %1927 = vmatprep.subr.bf16.mxu0 0
    %1928 = vmatpush2.bf16.xpose.msra.mxu0 0
    %1929 = vmatprep.subr.bf16.mxu0 0
    %1930 = vmatpush2.bf16.xpose.msra.mxu0 0
    %1931 = vmatprep.subr.bf16.mxu0 0
    %1932 = vmatpush2.bf16.xpose.msra.mxu0 0
    %1933 = vmatprep.subr.bf16.mxu0 0
    %1934 = vmatpush2.bf16.xpose.msra.mxu0 0
    %1935 = vmatprep.subr.bf16.mxu0 0
    %1936 = vmatpush2.bf16.xpose.msra.mxu0 0
    %1937 = vmatprep.mubr.bf16.mxu0 0
    %1938 = vmatmul.mubr.bf16.gmra.mxu0 %v1813
    %v1939 = vpop.f32.mrf.mxu0
    %v1940 = vadd.f32 %v1894, %v1939
    %v1941 = vpop.f32.mrf.mxu0
    %v1942 = vpop.f32.mrf.mxu0
    %v1943 = vadd.f32 %v1897, %v1942
    %v1944 = vpop.f32.mrf.mxu0
    %1945 = vdwg.mxu0
    %v1946 = vsel %vm715, %v1940, -inf
    %1947 = vmax.xlane.f32.xlu0 %v1946
    %v1948 = vpop.xlane.xlu0 %1947
    %v1949 = vsel %vm715, %v1943, -inf
    %1950 = vmax.xlane.f32.xlu0 %v1949
    %v1951 = vpop.xlane.xlu0 %1950
    %v1952 = vsub.f32 %v1940, %v1948
    %v1953 = vsub.f32 %v1943, %v1951
    %v1954 = vmul.f32 %v1952, 1.442695
    %v1955 = vpow.pop %v1954
    %v1956 = vmul.f32 %v1953, 1.442695
    %v1957 = vpow.pop %v1956
    %v1958 = vsel %vm715, %v1955, 0.0
    %1959 = vadd.xlane.f32.xlu0 %v1958
    %v1960 = vpop.xlane.xlu0 %1959
    %v1961 = vsel %vm715, %v1957, 0.0
    %1962 = vadd.xlane.f32.xlu0 %v1961
    %v1963 = vpop.xlane.xlu0 %1962
    %v1964 = vrcp.pop %v1960
    %v1965 = vrcp.pop %v1963
    %v1966 = vmul.f32 %v1955, %v1964
    %v1967 = vmul.f32 %v1957, %v1965
    %v1968 = vpack.c.bf16 %v1967, %v1966
    %1969 = vrot.lane.b32.xlu0 %v507, 56
    %v1970 = vpop.permute.xlu0 %1969
    %v1973 = vsel %vm715, %v1968, 0
    %1975 = vmatprep.subr.bf16.mxu0 0
    %1976 = vmatpush1.bf16.msra.mxu0 0
    %1977 = vmatprep.subr.bf16.mxu0 0
    %1978 = vmatpush1.bf16.msra.mxu0 0
    %1979 = vmatprep.subr.bf16.mxu0 0
    %1980 = vmatpush1.bf16.msra.mxu0 0
    %1981 = vmatprep.subr.bf16.mxu0 0
    %1982 = vmatpush1.bf16.msra.mxu0 0
    %1983 = vmatprep.subr.bf16.mxu0 0
    %1984 = vmatpush1.bf16.msra.mxu0 0
    %1985 = vmatprep.subr.bf16.mxu0 0
    %1986 = vmatpush1.bf16.msra.mxu0 0
    %1987 = vmatprep.subr.bf16.mxu0 0
    %1988 = vmatpush1.bf16.msra.mxu0 0
    %1989 = vmatprep.subr.bf16.mxu0 0
    %1990 = vmatpush1.bf16.msra.mxu0 %v1970
    %1991 = vmatprep.subr.bf16.mxu0 0
    %1992 = vmatpush2.bf16.msra.mxu0 0
    %1993 = vmatprep.subr.bf16.mxu0 0
    %1994 = vmatpush2.bf16.msra.mxu0 0
    %1995 = vmatprep.subr.bf16.mxu0 0
    %1996 = vmatpush2.bf16.msra.mxu0 0
    %1997 = vmatprep.subr.bf16.mxu0 0
    %1998 = vmatpush2.bf16.msra.mxu0 0
    %1999 = vmatprep.subr.bf16.mxu0 0
    %2000 = vmatpush2.bf16.msra.mxu0 0
    %2001 = vmatprep.subr.bf16.mxu0 0
    %2002 = vmatpush2.bf16.msra.mxu0 0
    %2003 = vmatprep.subr.bf16.mxu0 0
    %2004 = vmatpush2.bf16.msra.mxu0 0
    %2005 = vmatprep.subr.bf16.mxu0 0
    %2006 = vmatpush2.bf16.msra.mxu0 0
    %2007 = vmatprep.mubr.bf16.mxu0 0
    %2008 = vmatmul.mubr.bf16.gmra.mxu0 %v1973
    %v2009 = vpop.f32.mrf.mxu0
    %v2010 = vadd.f32 0.0, %v2009
    %v2011 = vpop.f32.mrf.mxu0
    %v2012 = vpop.f32.mrf.mxu0
    %v2013 = vadd.f32 0.0, %v2012
    %v2014 = vpop.f32.mrf.mxu0
    %2015 = vdwg.mxu0
    %v2016 = vpack.c.bf16 %v2013, %v2010
    %v2018 = vsel %vm527, %v2016, 0
    %2020 = vmatprep.subr.bf16.mxu0 0
    %2021 = vmatpush1.bf16.msra.mxu0 0
    %2022 = vmatprep.subr.bf16.mxu0 0
    %2023 = vmatpush1.bf16.msra.mxu0 0
    %2024 = vmatprep.subr.bf16.mxu0 0
    %2025 = vmatpush1.bf16.msra.mxu0 0
    %2026 = vmatprep.subr.bf16.mxu0 0
    %2027 = vmatpush1.bf16.msra.mxu0 0
    %2028 = vmatprep.subr.bf16.mxu0 0
    %2029 = vmatpush1.bf16.msra.mxu0 0
    %2030 = vmatprep.subr.bf16.mxu0 0
    %2031 = vmatpush1.bf16.msra.mxu0 0
    %2032 = vmatprep.subr.bf16.mxu0 0
    %2033 = vmatpush1.bf16.msra.mxu0 0
    %2034 = vmatprep.subr.bf16.mxu0 0
    %2035 = vmatpush1.bf16.msra.mxu0 %v1000
    %2036 = vmatprep.subr.bf16.mxu0 0
    %2037 = vmatpush2.bf16.msra.mxu0 0
    %2038 = vmatprep.subr.bf16.mxu0 0
    %2039 = vmatpush2.bf16.msra.mxu0 0
    %2040 = vmatprep.subr.bf16.mxu0 0
    %2041 = vmatpush2.bf16.msra.mxu0 0
    %2042 = vmatprep.subr.bf16.mxu0 0
    %2043 = vmatpush2.bf16.msra.mxu0 0
    %2044 = vmatprep.subr.bf16.mxu0 0
    %2045 = vmatpush2.bf16.msra.mxu0 0
    %2046 = vmatprep.subr.bf16.mxu0 0
    %2047 = vmatpush2.bf16.msra.mxu0 0
    %2048 = vmatprep.subr.bf16.mxu0 0
    %2049 = vmatpush2.bf16.msra.mxu0 0
    %2050 = vmatprep.subr.bf16.mxu0 0
    %2051 = vmatpush2.bf16.msra.mxu0 0
    %2052 = vmatprep.mubr.bf16.mxu0 0
    %2053 = vmatmul.mubr.bf16.gmra.mxu0 %v2018
    %v2054 = vpop.f32.mrf.mxu0
    %v2055 = vadd.f32 0.0, %v2054
    %v2056 = vpop.f32.mrf.mxu0
    %v2057 = vpop.f32.mrf.mxu0
    %v2058 = vadd.f32 0.0, %v2057
    %v2059 = vpop.f32.mrf.mxu0
    %2060 = vdwg.mxu0
    %v2062 = vsel %vm527, %v1809, 0
    %2064 = vmatprep.subr.bf16.mxu0 0
    %2065 = vmatpush1.bf16.msra.mxu0 0
    %2066 = vmatprep.subr.bf16.mxu0 0
    %2067 = vmatpush1.bf16.msra.mxu0 0
    %2068 = vmatprep.subr.bf16.mxu0 0
    %2069 = vmatpush1.bf16.msra.mxu0 0
    %2070 = vmatprep.subr.bf16.mxu0 0
    %2071 = vmatpush1.bf16.msra.mxu0 0
    %2072 = vmatprep.subr.bf16.mxu0 0
    %2073 = vmatpush1.bf16.msra.mxu0 0
    %2074 = vmatprep.subr.bf16.mxu0 0
    %2075 = vmatpush1.bf16.msra.mxu0 0
    %2076 = vmatprep.subr.bf16.mxu0 0
    %2077 = vmatpush1.bf16.msra.mxu0 0
    %2078 = vmatprep.subr.bf16.mxu0 0
    %2079 = vmatpush1.bf16.msra.mxu0 %v1047
    %2080 = vmatprep.subr.bf16.mxu0 0
    %2081 = vmatpush2.bf16.msra.mxu0 0
    %2082 = vmatprep.subr.bf16.mxu0 0
    %2083 = vmatpush2.bf16.msra.mxu0 0
    %2084 = vmatprep.subr.bf16.mxu0 0
    %2085 = vmatpush2.bf16.msra.mxu0 0
    %2086 = vmatprep.subr.bf16.mxu0 0
    %2087 = vmatpush2.bf16.msra.mxu0 0
    %2088 = vmatprep.subr.bf16.mxu0 0
    %2089 = vmatpush2.bf16.msra.mxu0 0
    %2090 = vmatprep.subr.bf16.mxu0 0
    %2091 = vmatpush2.bf16.msra.mxu0 0
    %2092 = vmatprep.subr.bf16.mxu0 0
    %2093 = vmatpush2.bf16.msra.mxu0 0
    %2094 = vmatprep.subr.bf16.mxu0 0
    %2095 = vmatpush2.bf16.msra.mxu0 0
    %2096 = vmatprep.mubr.bf16.mxu0 0
    %2097 = vmatmul.mubr.bf16.gmra.mxu0 %v2062
    %v2098 = vpop.f32.mrf.mxu0
    %v2099 = vadd.f32 %v2055, %v2098
    %v2100 = vpop.f32.mrf.mxu0
    %v2101 = vpop.f32.mrf.mxu0
    %v2102 = vadd.f32 %v2058, %v2101
    %v2103 = vpop.f32.mrf.mxu0
    %2104 = vdwg.mxu0
    %2105 = vrot.lane.b32.xlu0 %v507, 112
    %v2106 = vpop.permute.xlu0 %2105
    %v2108 = vsel %vm527, %v2106, 0
    %2110 = vmatprep.subr.bf16.mxu0 0
    %2111 = vmatpush1.bf16.msra.mxu0 0
    %2112 = vmatprep.subr.bf16.mxu0 0
    %2113 = vmatpush1.bf16.msra.mxu0 0
    %2114 = vmatprep.subr.bf16.mxu0 0
    %2115 = vmatpush1.bf16.msra.mxu0 0
    %2116 = vmatprep.subr.bf16.mxu0 0
    %2117 = vmatpush1.bf16.msra.mxu0 0
    %2118 = vmatprep.subr.bf16.mxu0 0
    %2119 = vmatpush1.bf16.msra.mxu0 0
    %2120 = vmatprep.subr.bf16.mxu0 0
    %2121 = vmatpush1.bf16.msra.mxu0 0
    %2122 = vmatprep.subr.bf16.mxu0 0
    %2123 = vmatpush1.bf16.msra.mxu0 0
    %2124 = vmatprep.subr.bf16.mxu0 0
    %2125 = vmatpush1.bf16.msra.mxu0 %v533
    %2126 = vmatprep.subr.bf16.mxu0 0
    %2127 = vmatpush2.bf16.msra.mxu0 0
    %2128 = vmatprep.subr.bf16.mxu0 0
    %2129 = vmatpush2.bf16.msra.mxu0 0
    %2130 = vmatprep.subr.bf16.mxu0 0
    %2131 = vmatpush2.bf16.msra.mxu0 0
    %2132 = vmatprep.subr.bf16.mxu0 0
    %2133 = vmatpush2.bf16.msra.mxu0 0
    %2134 = vmatprep.subr.bf16.mxu0 0
    %2135 = vmatpush2.bf16.msra.mxu0 0
    %2136 = vmatprep.subr.bf16.mxu0 0
    %2137 = vmatpush2.bf16.msra.mxu0 0
    %2138 = vmatprep.subr.bf16.mxu0 0
    %2139 = vmatpush2.bf16.msra.mxu0 0
    %2140 = vmatprep.subr.bf16.mxu0 0
    %2141 = vmatpush2.bf16.msra.mxu0 0
    %2142 = vmatprep.mubr.bf16.mxu0 0
    %2143 = vmatmul.mubr.bf16.gmra.mxu0 %v2108
    %v2144 = vpop.f32.mrf.mxu0
    %v2145 = vadd.f32 0.0, %v2144
    %v2146 = vpop.f32.mrf.mxu0
    %v2147 = vpop.f32.mrf.mxu0
    %v2148 = vadd.f32 0.0, %v2147
    %v2149 = vpop.f32.mrf.mxu0
    %2150 = vdwg.mxu0
    %v2151 = vmul.f32 %v2145, %v508
    %v2152 = vmul.f32 %v2148, %v509
    %v2153 = vpack.c.bf16 %v2152, %v2151
    %2154 = vmatprep.subr.bf16.mxu0 0
    %2155 = vmatpush1.bf16.msra.mxu0 %v618
    %2156 = vmatprep.subr.bf16.mxu0 0
    %2157 = vmatpush1.bf16.msra.mxu0 %v617
    %2158 = vmatprep.subr.bf16.mxu0 0
    %2159 = vmatpush1.bf16.msra.mxu0 %v616
    %2160 = vmatprep.subr.bf16.mxu0 0
    %2161 = vmatpush1.bf16.msra.mxu0 %v615
    %2162 = vmatprep.subr.bf16.mxu0 0
    %2163 = vmatpush1.bf16.msra.mxu0 %v614
    %2164 = vmatprep.subr.bf16.mxu0 0
    %2165 = vmatpush1.bf16.msra.mxu0 %v613
    %2166 = vmatprep.subr.bf16.mxu0 0
    %2167 = vmatpush1.bf16.msra.mxu0 %v612
    %2168 = vmatprep.subr.bf16.mxu0 0
    %2169 = vmatpush1.bf16.msra.mxu0 %v611
    %2170 = vmatprep.subr.bf16.mxu0 0
    %2171 = vmatpush2.bf16.msra.mxu0 0
    %2172 = vmatprep.subr.bf16.mxu0 0
    %2173 = vmatpush2.bf16.msra.mxu0 0
    %2174 = vmatprep.subr.bf16.mxu0 0
    %2175 = vmatpush2.bf16.msra.mxu0 0
    %2176 = vmatprep.subr.bf16.mxu0 0
    %2177 = vmatpush2.bf16.msra.mxu0 0
    %2178 = vmatprep.subr.bf16.mxu0 0
    %2179 = vmatpush2.bf16.msra.mxu0 0
    %2180 = vmatprep.subr.bf16.mxu0 0
    %2181 = vmatpush2.bf16.msra.mxu0 0
    %2182 = vmatprep.subr.bf16.mxu0 0
    %2183 = vmatpush2.bf16.msra.mxu0 0
    %2184 = vmatprep.subr.bf16.mxu0 0
    %2185 = vmatpush2.bf16.msra.mxu0 0
    %2186 = vmatprep.mubr.bf16.mxu0 0
    %2187 = vmatmul.mubr.bf16.gmra.mxu0 %v2153
    %v2188 = vpop.f32.mrf.mxu0
    %v2189 = vadd.f32 0.0, %v2188
    %v2190 = vpop.f32.mrf.mxu0
    %v2191 = vpop.f32.mrf.mxu0
    %v2192 = vadd.f32 0.0, %v2191
    %v2193 = vpop.f32.mrf.mxu0
    %2194 = vdwg.mxu0
    %2195 = vrot.lane.b32.xlu0 %v507, 80
    %v2196 = vpop.permute.xlu0 %2195
    %v2198 = vsel %vm527, %v2196, 0
    %2200 = vmatprep.subr.bf16.mxu0 0
    %2201 = vmatpush1.bf16.xpose.msra.mxu0 0
    %2202 = vmatprep.subr.bf16.mxu0 0
    %2203 = vmatpush1.bf16.xpose.msra.mxu0 0
    %2204 = vmatprep.subr.bf16.mxu0 0
    %2205 = vmatpush1.bf16.xpose.msra.mxu0 0
    %2206 = vmatprep.subr.bf16.mxu0 0
    %2207 = vmatpush1.bf16.xpose.msra.mxu0 0
    %2208 = vmatprep.subr.bf16.mxu0 0
    %2209 = vmatpush1.bf16.xpose.msra.mxu0 0
    %2210 = vmatprep.subr.bf16.mxu0 0
    %2211 = vmatpush1.bf16.xpose.msra.mxu0 0
    %2212 = vmatprep.subr.bf16.mxu0 0
    %2213 = vmatpush1.bf16.xpose.msra.mxu0 0
    %2214 = vmatprep.subr.bf16.mxu0 0
    %2215 = vmatpush1.bf16.xpose.msra.mxu0 %v2198
    %2216 = vmatprep.subr.bf16.mxu0 0
    %2217 = vmatpush2.bf16.xpose.msra.mxu0 0
    %2218 = vmatprep.subr.bf16.mxu0 0
    %2219 = vmatpush2.bf16.xpose.msra.mxu0 0
    %2220 = vmatprep.subr.bf16.mxu0 0
    %2221 = vmatpush2.bf16.xpose.msra.mxu0 0
    %2222 = vmatprep.subr.bf16.mxu0 0
    %2223 = vmatpush2.bf16.xpose.msra.mxu0 0
    %2224 = vmatprep.subr.bf16.mxu0 0
    %2225 = vmatpush2.bf16.xpose.msra.mxu0 0
    %2226 = vmatprep.subr.bf16.mxu0 0
    %2227 = vmatpush2.bf16.xpose.msra.mxu0 0
    %2228 = vmatprep.subr.bf16.mxu0 0
    %2229 = vmatpush2.bf16.xpose.msra.mxu0 0
    %2230 = vmatprep.subr.bf16.mxu0 0
    %2231 = vmatpush2.bf16.xpose.msra.mxu0 0
    %2232 = vmatprep.mubr.bf16.mxu0 0
    %2233 = vmatmul.mubr.bf16.gmra.mxu0 %v2108
    %v2234 = vpop.f32.mrf.mxu0
    %v2235 = vadd.f32 %v2189, %v2234
    %v2236 = vpop.f32.mrf.mxu0
    %v2237 = vpop.f32.mrf.mxu0
    %v2238 = vadd.f32 %v2192, %v2237
    %v2239 = vpop.f32.mrf.mxu0
    %2240 = vdwg.mxu0
    %v2241 = vsel %vm715, %v2235, -inf
    %2242 = vmax.xlane.f32.xlu0 %v2241
    %v2243 = vpop.xlane.xlu0 %2242
    %v2244 = vsel %vm715, %v2238, -inf
    %2245 = vmax.xlane.f32.xlu0 %v2244
    %v2246 = vpop.xlane.xlu0 %2245
    %v2247 = vsub.f32 %v2235, %v2243
    %v2248 = vsub.f32 %v2238, %v2246
    %v2249 = vmul.f32 %v2247, 1.442695
    %v2250 = vpow.pop %v2249
    %v2251 = vmul.f32 %v2248, 1.442695
    %v2252 = vpow.pop %v2251
    %v2253 = vsel %vm715, %v2250, 0.0
    %2254 = vadd.xlane.f32.xlu0 %v2253
    %v2255 = vpop.xlane.xlu0 %2254
    %v2256 = vsel %vm715, %v2252, 0.0
    %2257 = vadd.xlane.f32.xlu0 %v2256
    %v2258 = vpop.xlane.xlu0 %2257
    %v2259 = vrcp.pop %v2255
    %v2260 = vrcp.pop %v2258
    %v2261 = vmul.f32 %v2250, %v2259
    %v2262 = vmul.f32 %v2252, %v2260
    %v2263 = vpack.c.bf16 %v2262, %v2261
    %2264 = vrot.lane.b32.xlu0 %v507, 48
    %v2265 = vpop.permute.xlu0 %2264
    %v2268 = vsel %vm715, %v2263, 0
    %2270 = vmatprep.subr.bf16.mxu0 0
    %2271 = vmatpush1.bf16.msra.mxu0 0
    %2272 = vmatprep.subr.bf16.mxu0 0
    %2273 = vmatpush1.bf16.msra.mxu0 0
    %2274 = vmatprep.subr.bf16.mxu0 0
    %2275 = vmatpush1.bf16.msra.mxu0 0
    %2276 = vmatprep.subr.bf16.mxu0 0
    %2277 = vmatpush1.bf16.msra.mxu0 0
    %2278 = vmatprep.subr.bf16.mxu0 0
    %2279 = vmatpush1.bf16.msra.mxu0 0
    %2280 = vmatprep.subr.bf16.mxu0 0
    %2281 = vmatpush1.bf16.msra.mxu0 0
    %2282 = vmatprep.subr.bf16.mxu0 0
    %2283 = vmatpush1.bf16.msra.mxu0 0
    %2284 = vmatprep.subr.bf16.mxu0 0
    %2285 = vmatpush1.bf16.msra.mxu0 %v2265
    %2286 = vmatprep.subr.bf16.mxu0 0
    %2287 = vmatpush2.bf16.msra.mxu0 0
    %2288 = vmatprep.subr.bf16.mxu0 0
    %2289 = vmatpush2.bf16.msra.mxu0 0
    %2290 = vmatprep.subr.bf16.mxu0 0
    %2291 = vmatpush2.bf16.msra.mxu0 0
    %2292 = vmatprep.subr.bf16.mxu0 0
    %2293 = vmatpush2.bf16.msra.mxu0 0
    %2294 = vmatprep.subr.bf16.mxu0 0
    %2295 = vmatpush2.bf16.msra.mxu0 0
    %2296 = vmatprep.subr.bf16.mxu0 0
    %2297 = vmatpush2.bf16.msra.mxu0 0
    %2298 = vmatprep.subr.bf16.mxu0 0
    %2299 = vmatpush2.bf16.msra.mxu0 0
    %2300 = vmatprep.subr.bf16.mxu0 0
    %2301 = vmatpush2.bf16.msra.mxu0 0
    %2302 = vmatprep.mubr.bf16.mxu0 0
    %2303 = vmatmul.mubr.bf16.gmra.mxu0 %v2268
    %v2304 = vpop.f32.mrf.mxu0
    %v2305 = vadd.f32 0.0, %v2304
    %v2306 = vpop.f32.mrf.mxu0
    %v2307 = vpop.f32.mrf.mxu0
    %v2308 = vadd.f32 0.0, %v2307
    %v2309 = vpop.f32.mrf.mxu0
    %2310 = vdwg.mxu0
    %v2311 = vpack.c.bf16 %v2308, %v2305
    %v2313 = vsel %vm527, %v2311, 0
    %2315 = vmatprep.subr.bf16.mxu0 0
    %2316 = vmatpush1.bf16.msra.mxu0 0
    %2317 = vmatprep.subr.bf16.mxu0 0
    %2318 = vmatpush1.bf16.msra.mxu0 0
    %2319 = vmatprep.subr.bf16.mxu0 0
    %2320 = vmatpush1.bf16.msra.mxu0 0
    %2321 = vmatprep.subr.bf16.mxu0 0
    %2322 = vmatpush1.bf16.msra.mxu0 0
    %2323 = vmatprep.subr.bf16.mxu0 0
    %2324 = vmatpush1.bf16.msra.mxu0 0
    %2325 = vmatprep.subr.bf16.mxu0 0
    %2326 = vmatpush1.bf16.msra.mxu0 0
    %2327 = vmatprep.subr.bf16.mxu0 0
    %2328 = vmatpush1.bf16.msra.mxu0 0
    %2329 = vmatprep.subr.bf16.mxu0 0
    %2330 = vmatpush1.bf16.msra.mxu0 %v1302
    %2331 = vmatprep.subr.bf16.mxu0 0
    %2332 = vmatpush2.bf16.msra.mxu0 0
    %2333 = vmatprep.subr.bf16.mxu0 0
    %2334 = vmatpush2.bf16.msra.mxu0 0
    %2335 = vmatprep.subr.bf16.mxu0 0
    %2336 = vmatpush2.bf16.msra.mxu0 0
    %2337 = vmatprep.subr.bf16.mxu0 0
    %2338 = vmatpush2.bf16.msra.mxu0 0
    %2339 = vmatprep.subr.bf16.mxu0 0
    %2340 = vmatpush2.bf16.msra.mxu0 0
    %2341 = vmatprep.subr.bf16.mxu0 0
    %2342 = vmatpush2.bf16.msra.mxu0 0
    %2343 = vmatprep.subr.bf16.mxu0 0
    %2344 = vmatpush2.bf16.msra.mxu0 0
    %2345 = vmatprep.subr.bf16.mxu0 0
    %2346 = vmatpush2.bf16.msra.mxu0 0
    %2347 = vmatprep.mubr.bf16.mxu0 0
    %2348 = vmatmul.mubr.bf16.gmra.mxu0 %v2313
    %v2349 = vpop.f32.mrf.mxu0
    %v2350 = vadd.f32 0.0, %v2349
    %v2351 = vpop.f32.mrf.mxu0
    %v2352 = vpop.f32.mrf.mxu0
    %v2353 = vadd.f32 0.0, %v2352
    %v2354 = vpop.f32.mrf.mxu0
    %2355 = vdwg.mxu0
    %v2356 = vadd.f32 %v2099, %v2350
    %v2357 = vadd.f32 %v2102, %v2353
    %2358 = vrot.lane.b32.xlu0 %v507, 104
    %v2359 = vpop.permute.xlu0 %2358
    %v2361 = vsel %vm527, %v2359, 0
    %2363 = vmatprep.subr.bf16.mxu0 0
    %2364 = vmatpush1.bf16.msra.mxu0 0
    %2365 = vmatprep.subr.bf16.mxu0 0
    %2366 = vmatpush1.bf16.msra.mxu0 0
    %2367 = vmatprep.subr.bf16.mxu0 0
    %2368 = vmatpush1.bf16.msra.mxu0 0
    %2369 = vmatprep.subr.bf16.mxu0 0
    %2370 = vmatpush1.bf16.msra.mxu0 0
    %2371 = vmatprep.subr.bf16.mxu0 0
    %2372 = vmatpush1.bf16.msra.mxu0 0
    %2373 = vmatprep.subr.bf16.mxu0 0
    %2374 = vmatpush1.bf16.msra.mxu0 0
    %2375 = vmatprep.subr.bf16.mxu0 0
    %2376 = vmatpush1.bf16.msra.mxu0 0
    %2377 = vmatprep.subr.bf16.mxu0 0
    %2378 = vmatpush1.bf16.msra.mxu0 %v533
    %2379 = vmatprep.subr.bf16.mxu0 0
    %2380 = vmatpush2.bf16.msra.mxu0 0
    %2381 = vmatprep.subr.bf16.mxu0 0
    %2382 = vmatpush2.bf16.msra.mxu0 0
    %2383 = vmatprep.subr.bf16.mxu0 0
    %2384 = vmatpush2.bf16.msra.mxu0 0
    %2385 = vmatprep.subr.bf16.mxu0 0
    %2386 = vmatpush2.bf16.msra.mxu0 0
    %2387 = vmatprep.subr.bf16.mxu0 0
    %2388 = vmatpush2.bf16.msra.mxu0 0
    %2389 = vmatprep.subr.bf16.mxu0 0
    %2390 = vmatpush2.bf16.msra.mxu0 0
    %2391 = vmatprep.subr.bf16.mxu0 0
    %2392 = vmatpush2.bf16.msra.mxu0 0
    %2393 = vmatprep.subr.bf16.mxu0 0
    %2394 = vmatpush2.bf16.msra.mxu0 0
    %2395 = vmatprep.mubr.bf16.mxu0 0
    %2396 = vmatmul.mubr.bf16.gmra.mxu0 %v2361
    %v2397 = vpop.f32.mrf.mxu0
    %v2398 = vadd.f32 0.0, %v2397
    %v2399 = vpop.f32.mrf.mxu0
    %v2400 = vpop.f32.mrf.mxu0
    %v2401 = vadd.f32 0.0, %v2400
    %v2402 = vpop.f32.mrf.mxu0
    %2403 = vdwg.mxu0
    %v2404 = vmul.f32 %v2398, %v508
    %v2405 = vmul.f32 %v2401, %v509
    %v2406 = vpack.c.bf16 %v2405, %v2404
    %2407 = vmatprep.subr.bf16.mxu0 0
    %2408 = vmatpush1.bf16.msra.mxu0 %v618
    %2409 = vmatprep.subr.bf16.mxu0 0
    %2410 = vmatpush1.bf16.msra.mxu0 %v617
    %2411 = vmatprep.subr.bf16.mxu0 0
    %2412 = vmatpush1.bf16.msra.mxu0 %v616
    %2413 = vmatprep.subr.bf16.mxu0 0
    %2414 = vmatpush1.bf16.msra.mxu0 %v615
    %2415 = vmatprep.subr.bf16.mxu0 0
    %2416 = vmatpush1.bf16.msra.mxu0 %v614
    %2417 = vmatprep.subr.bf16.mxu0 0
    %2418 = vmatpush1.bf16.msra.mxu0 %v613
    %2419 = vmatprep.subr.bf16.mxu0 0
    %2420 = vmatpush1.bf16.msra.mxu0 %v612
    %2421 = vmatprep.subr.bf16.mxu0 0
    %2422 = vmatpush1.bf16.msra.mxu0 %v611
    %2423 = vmatprep.subr.bf16.mxu0 0
    %2424 = vmatpush2.bf16.msra.mxu0 0
    %2425 = vmatprep.subr.bf16.mxu0 0
    %2426 = vmatpush2.bf16.msra.mxu0 0
    %2427 = vmatprep.subr.bf16.mxu0 0
    %2428 = vmatpush2.bf16.msra.mxu0 0
    %2429 = vmatprep.subr.bf16.mxu0 0
    %2430 = vmatpush2.bf16.msra.mxu0 0
    %2431 = vmatprep.subr.bf16.mxu0 0
    %2432 = vmatpush2.bf16.msra.mxu0 0
    %2433 = vmatprep.subr.bf16.mxu0 0
    %2434 = vmatpush2.bf16.msra.mxu0 0
    %2435 = vmatprep.subr.bf16.mxu0 0
    %2436 = vmatpush2.bf16.msra.mxu0 0
    %2437 = vmatprep.subr.bf16.mxu0 0
    %2438 = vmatpush2.bf16.msra.mxu0 0
    %2439 = vmatprep.mubr.bf16.mxu0 0
    %2440 = vmatmul.mubr.bf16.gmra.mxu0 %v2406
    %v2441 = vpop.f32.mrf.mxu0
    %v2442 = vadd.f32 0.0, %v2441
    %v2443 = vpop.f32.mrf.mxu0
    %v2444 = vpop.f32.mrf.mxu0
    %v2445 = vadd.f32 0.0, %v2444
    %v2446 = vpop.f32.mrf.mxu0
    %2447 = vdwg.mxu0
    %2448 = vrot.lane.b32.xlu0 %v507, 72
    %v2449 = vpop.permute.xlu0 %2448
    %v2451 = vsel %vm527, %v2449, 0
    %2453 = vmatprep.subr.bf16.mxu0 0
    %2454 = vmatpush1.bf16.xpose.msra.mxu0 0
    %2455 = vmatprep.subr.bf16.mxu0 0
    %2456 = vmatpush1.bf16.xpose.msra.mxu0 0
    %2457 = vmatprep.subr.bf16.mxu0 0
    %2458 = vmatpush1.bf16.xpose.msra.mxu0 0
    %2459 = vmatprep.subr.bf16.mxu0 0
    %2460 = vmatpush1.bf16.xpose.msra.mxu0 0
    %2461 = vmatprep.subr.bf16.mxu0 0
    %2462 = vmatpush1.bf16.xpose.msra.mxu0 0
    %2463 = vmatprep.subr.bf16.mxu0 0
    %2464 = vmatpush1.bf16.xpose.msra.mxu0 0
    %2465 = vmatprep.subr.bf16.mxu0 0
    %2466 = vmatpush1.bf16.xpose.msra.mxu0 0
    %2467 = vmatprep.subr.bf16.mxu0 0
    %2468 = vmatpush1.bf16.xpose.msra.mxu0 %v2451
    %2469 = vmatprep.subr.bf16.mxu0 0
    %2470 = vmatpush2.bf16.xpose.msra.mxu0 0
    %2471 = vmatprep.subr.bf16.mxu0 0
    %2472 = vmatpush2.bf16.xpose.msra.mxu0 0
    %2473 = vmatprep.subr.bf16.mxu0 0
    %2474 = vmatpush2.bf16.xpose.msra.mxu0 0
    %2475 = vmatprep.subr.bf16.mxu0 0
    %2476 = vmatpush2.bf16.xpose.msra.mxu0 0
    %2477 = vmatprep.subr.bf16.mxu0 0
    %2478 = vmatpush2.bf16.xpose.msra.mxu0 0
    %2479 = vmatprep.subr.bf16.mxu0 0
    %2480 = vmatpush2.bf16.xpose.msra.mxu0 0
    %2481 = vmatprep.subr.bf16.mxu0 0
    %2482 = vmatpush2.bf16.xpose.msra.mxu0 0
    %2483 = vmatprep.subr.bf16.mxu0 0
    %2484 = vmatpush2.bf16.xpose.msra.mxu0 0
    %2485 = vmatprep.mubr.bf16.mxu0 0
    %2486 = vmatmul.mubr.bf16.gmra.mxu0 %v2361
    %v2487 = vpop.f32.mrf.mxu0
    %v2488 = vadd.f32 %v2442, %v2487
    %v2489 = vpop.f32.mrf.mxu0
    %v2490 = vpop.f32.mrf.mxu0
    %v2491 = vadd.f32 %v2445, %v2490
    %v2492 = vpop.f32.mrf.mxu0
    %2493 = vdwg.mxu0
    %v2494 = vsel %vm715, %v2488, -inf
    %2495 = vmax.xlane.f32.xlu0 %v2494
    %v2496 = vpop.xlane.xlu0 %2495
    %v2497 = vsel %vm715, %v2491, -inf
    %2498 = vmax.xlane.f32.xlu0 %v2497
    %v2499 = vpop.xlane.xlu0 %2498
    %v2500 = vsub.f32 %v2488, %v2496
    %v2501 = vsub.f32 %v2491, %v2499
    %v2502 = vmul.f32 %v2500, 1.442695
    %v2503 = vpow.pop %v2502
    %v2504 = vmul.f32 %v2501, 1.442695
    %v2505 = vpow.pop %v2504
    %v2506 = vsel %vm715, %v2503, 0.0
    %2507 = vadd.xlane.f32.xlu0 %v2506
    %v2508 = vpop.xlane.xlu0 %2507
    %v2509 = vsel %vm715, %v2505, 0.0
    %2510 = vadd.xlane.f32.xlu0 %v2509
    %v2511 = vpop.xlane.xlu0 %2510
    %v2512 = vrcp.pop %v2508
    %v2513 = vrcp.pop %v2511
    %v2514 = vmul.f32 %v2503, %v2512
    %v2515 = vmul.f32 %v2505, %v2513
    %v2516 = vpack.c.bf16 %v2515, %v2514
    %2517 = vrot.lane.b32.xlu0 %v507, 40
    %v2518 = vpop.permute.xlu0 %2517
    %v2521 = vsel %vm715, %v2516, 0
    %2523 = vmatprep.subr.bf16.mxu0 0
    %2524 = vmatpush1.bf16.msra.mxu0 0
    %2525 = vmatprep.subr.bf16.mxu0 0
    %2526 = vmatpush1.bf16.msra.mxu0 0
    %2527 = vmatprep.subr.bf16.mxu0 0
    %2528 = vmatpush1.bf16.msra.mxu0 0
    %2529 = vmatprep.subr.bf16.mxu0 0
    %2530 = vmatpush1.bf16.msra.mxu0 0
    %2531 = vmatprep.subr.bf16.mxu0 0
    %2532 = vmatpush1.bf16.msra.mxu0 0
    %2533 = vmatprep.subr.bf16.mxu0 0
    %2534 = vmatpush1.bf16.msra.mxu0 0
    %2535 = vmatprep.subr.bf16.mxu0 0
    %2536 = vmatpush1.bf16.msra.mxu0 0
    %2537 = vmatprep.subr.bf16.mxu0 0
    %2538 = vmatpush1.bf16.msra.mxu0 %v2518
    %2539 = vmatprep.subr.bf16.mxu0 0
    %2540 = vmatpush2.bf16.msra.mxu0 0
    %2541 = vmatprep.subr.bf16.mxu0 0
    %2542 = vmatpush2.bf16.msra.mxu0 0
    %2543 = vmatprep.subr.bf16.mxu0 0
    %2544 = vmatpush2.bf16.msra.mxu0 0
    %2545 = vmatprep.subr.bf16.mxu0 0
    %2546 = vmatpush2.bf16.msra.mxu0 0
    %2547 = vmatprep.subr.bf16.mxu0 0
    %2548 = vmatpush2.bf16.msra.mxu0 0
    %2549 = vmatprep.subr.bf16.mxu0 0
    %2550 = vmatpush2.bf16.msra.mxu0 0
    %2551 = vmatprep.subr.bf16.mxu0 0
    %2552 = vmatpush2.bf16.msra.mxu0 0
    %2553 = vmatprep.subr.bf16.mxu0 0
    %2554 = vmatpush2.bf16.msra.mxu0 0
    %2555 = vmatprep.mubr.bf16.mxu0 0
    %2556 = vmatmul.mubr.bf16.gmra.mxu0 %v2521
    %v2557 = vpop.f32.mrf.mxu0
    %v2558 = vadd.f32 0.0, %v2557
    %v2559 = vpop.f32.mrf.mxu0
    %v2560 = vpop.f32.mrf.mxu0
    %v2561 = vadd.f32 0.0, %v2560
    %v2562 = vpop.f32.mrf.mxu0
    %2563 = vdwg.mxu0
    %v2564 = vpack.c.bf16 %v2561, %v2558
    %v2566 = vsel %vm527, %v2564, 0
    %2568 = vmatprep.subr.bf16.mxu0 0
    %2569 = vmatpush1.bf16.msra.mxu0 0
    %2570 = vmatprep.subr.bf16.mxu0 0
    %2571 = vmatpush1.bf16.msra.mxu0 0
    %2572 = vmatprep.subr.bf16.mxu0 0
    %2573 = vmatpush1.bf16.msra.mxu0 0
    %2574 = vmatprep.subr.bf16.mxu0 0
    %2575 = vmatpush1.bf16.msra.mxu0 0
    %2576 = vmatprep.subr.bf16.mxu0 0
    %2577 = vmatpush1.bf16.msra.mxu0 0
    %2578 = vmatprep.subr.bf16.mxu0 0
    %2579 = vmatpush1.bf16.msra.mxu0 0
    %2580 = vmatprep.subr.bf16.mxu0 0
    %2581 = vmatpush1.bf16.msra.mxu0 0
    %2582 = vmatprep.subr.bf16.mxu0 0
    %2583 = vmatpush1.bf16.msra.mxu0 %v1559
    %2584 = vmatprep.subr.bf16.mxu0 0
    %2585 = vmatpush2.bf16.msra.mxu0 0
    %2586 = vmatprep.subr.bf16.mxu0 0
    %2587 = vmatpush2.bf16.msra.mxu0 0
    %2588 = vmatprep.subr.bf16.mxu0 0
    %2589 = vmatpush2.bf16.msra.mxu0 0
    %2590 = vmatprep.subr.bf16.mxu0 0
    %2591 = vmatpush2.bf16.msra.mxu0 0
    %2592 = vmatprep.subr.bf16.mxu0 0
    %2593 = vmatpush2.bf16.msra.mxu0 0
    %2594 = vmatprep.subr.bf16.mxu0 0
    %2595 = vmatpush2.bf16.msra.mxu0 0
    %2596 = vmatprep.subr.bf16.mxu0 0
    %2597 = vmatpush2.bf16.msra.mxu0 0
    %2598 = vmatprep.subr.bf16.mxu0 0
    %2599 = vmatpush2.bf16.msra.mxu0 0
    %2600 = vmatprep.mubr.bf16.mxu0 0
    %2601 = vmatmul.mubr.bf16.gmra.mxu0 %v2566
    %v2602 = vpop.f32.mrf.mxu0
    %v2603 = vadd.f32 0.0, %v2602
    %v2604 = vpop.f32.mrf.mxu0
    %v2605 = vpop.f32.mrf.mxu0
    %v2606 = vadd.f32 0.0, %v2605
    %v2607 = vpop.f32.mrf.mxu0
    %2608 = vdwg.mxu0
    %v2609 = vadd.f32 %v2356, %v2603
    %v2610 = vadd.f32 %v2357, %v2606
    %v2611 = vld [vmem:[#allocation5 + $0x1d] sm:$0x1]
    %v2612 = vlaneseq
    %v2613 = vshrl.u32 %v2612, 7
    %v2614 = vsub.s32 0, %v2613
    %v2615 = vrot.slane %v2611, %v2614
    %v2616 = vadd.f32 %v1602, %v2615
    %v2617 = vadd.f32 %v1603, %v2615
    %v2618 = vadd.f32 %v2609, %v2615
    %v2619 = vadd.f32 %v2610, %v2615
    %v2620 = vadd.f32 %v2616, %v359
    %v2621 = vadd.f32 %v2617, %v360
    %v2622 = vadd.f32 %v2618, %v361
    %v2623 = vadd.f32 %v2619, %v362
    %v2624 = vld [vmem:[#allocation5 + $0x1e] sm:$0x1]
    %v2625 = vld [vmem:[#allocation5 + $0x1f] sm:$0x1]
    %v2626 = vsel %vm63, %v2620, 0.0
    %2627 = vadd.xlane.f32.xlu0 %v2626
    %v2628 = vpop.xlane.xlu0 %2627
    %v2629 = vsel %vm63, %v2621, 0.0
    %2630 = vadd.xlane.f32.xlu0 %v2629
    %v2631 = vpop.xlane.xlu0 %2630
    %v2632 = vsel %vm63, %v2622, 0.0
    %2633 = vadd.xlane.f32.xlu0 %v2632
    %v2634 = vpop.xlane.xlu0 %2633
    %v2635 = vsel %vm63, %v2623, 0.0
    %2636 = vadd.xlane.f32.xlu0 %v2635
    %v2637 = vpop.xlane.xlu0 %2636
    %v2638 = vmul.f32 %v2628, %v76
    %v2639 = vmul.f32 %v2631, %v76
    %v2640 = vmul.f32 %v2634, %v76
    %v2641 = vmul.f32 %v2637, %v76
    %v2642 = vsub.f32 %v2620, %v2638
    %v2643 = vsub.f32 %v2621, %v2639
    %v2644 = vsub.f32 %v2622, %v2640
    %v2645 = vsub.f32 %v2623, %v2641
    %v2646 = vmul.f32 %v2642, %v2642
    %v2647 = vmul.f32 %v2643, %v2643
    %v2648 = vmul.f32 %v2644, %v2644
    %v2649 = vmul.f32 %v2645, %v2645
    %v2650 = vsel %vm63, %v2646, 0.0
    %2651 = vadd.xlane.f32.xlu0 %v2650
    %v2652 = vpop.xlane.xlu0 %2651
    %v2653 = vsel %vm63, %v2647, 0.0
    %2654 = vadd.xlane.f32.xlu0 %v2653
    %v2655 = vpop.xlane.xlu0 %2654
    %v2656 = vsel %vm63, %v2648, 0.0
    %2657 = vadd.xlane.f32.xlu0 %v2656
    %v2658 = vpop.xlane.xlu0 %2657
    %v2659 = vsel %vm63, %v2649, 0.0
    %2660 = vadd.xlane.f32.xlu0 %v2659
    %v2661 = vpop.xlane.xlu0 %2660
    %v2662 = vmul.f32 %v2652, %v76
    %v2663 = vmul.f32 %v2655, %v76
    %v2664 = vmul.f32 %v2658, %v76
    %v2665 = vmul.f32 %v2661, %v76
    %v2666 = vadd.f32 %v2662, 1e-05
    %v2667 = vadd.f32 %v2663, 1e-05
    %v2668 = vadd.f32 %v2664, 1e-05
    %v2669 = vadd.f32 %v2665, 1e-05
    %v2670 = vrsqrt.pop %v2666
    %v2671 = vrsqrt.pop %v2667
    %v2672 = vrsqrt.pop %v2668
    %v2673 = vrsqrt.pop %v2669
    %v2674 = vmul.f32 %v2642, %v2670
    %v2675 = vmul.f32 %v2643, %v2671
    %v2676 = vmul.f32 %v2644, %v2672
    %v2677 = vmul.f32 %v2645, %v2673
    %v2678 = vlaneseq
    %v2679 = vshrl.u32 %v2678, 7
    %v2680 = vsub.s32 0, %v2679
    %v2681 = vrot.slane %v2624, %v2680
    %v2682 = vmul.f32 %v2674, %v2681
    %v2683 = vmul.f32 %v2675, %v2681
    %v2684 = vmul.f32 %v2676, %v2681
    %v2685 = vmul.f32 %v2677, %v2681
    %v2686 = vlaneseq
    %v2687 = vshrl.u32 %v2686, 7
    %v2688 = vsub.s32 0, %v2687
    %v2689 = vrot.slane %v2625, %v2688
    %v2690 = vadd.f32 %v2682, %v2689
    %v2691 = vadd.f32 %v2683, %v2689
    %v2692 = vadd.f32 %v2684, %v2689
    %v2693 = vadd.f32 %v2685, %v2689
    %v2694 = vpack.c.bf16 %v2691, %v2690
    %v2695 = vpack.c.bf16 %v2693, %v2692
    %v2696 = vld [vmem:[#allocation7 + $0xc8] sm:$0xf]
    %v2697 = vld [vmem:[#allocation7 + $0xcc] sm:$0xf]
    %v2698 = vld [vmem:[#allocation7 + $0xd0] sm:$0xf]
    %v2699 = vld [vmem:[#allocation7 + $0xd4] sm:$0xf]
    %v2700 = vld [vmem:[#allocation5 + $0x20] sm:$0x1]
    %v2701 = vlaneseq
    %v2702 = vshrl.u32 %v2701, 7
    %v2703 = vsub.s32 0, %v2702
    %v2704 = vrot.slane %v2700, %v2703
    %v2709 = vunpack.c.l.b16 %v2696
    %v2710 = vunpack.c.l.b16 %v2697
    %v2711 = vunpack.c.l.b16 %v2698
    %v2712 = vunpack.c.l.b16 %v2699
    %v2713 = vpack.c.b16 %v2710, %v2709
    %v2714 = vpack.c.b16 %v2712, %v2711
    %v2718 = vsel %vm63, %v2694, 0
    %v2721 = vsel %vm63, %v2695, 0
    %2723 = vmatprep.subr.bf16.mxu0 0
    %2724 = vmatpush1.bf16.msra.mxu0 0
    %2725 = vmatprep.subr.bf16.mxu0 0
    %2726 = vmatpush1.bf16.msra.mxu0 0
    %2727 = vmatprep.subr.bf16.mxu0 0
    %2728 = vmatpush1.bf16.msra.mxu0 0
    %2729 = vmatprep.subr.bf16.mxu0 0
    %2730 = vmatpush1.bf16.msra.mxu0 0
    %2731 = vmatprep.subr.bf16.mxu0 0
    %2732 = vmatpush1.bf16.msra.mxu0 0
    %2733 = vmatprep.subr.bf16.mxu0 0
    %2734 = vmatpush1.bf16.msra.mxu0 0
    %2735 = vmatprep.subr.bf16.mxu0 0
    %2736 = vmatpush1.bf16.msra.mxu0 %v2714
    %2737 = vmatprep.subr.bf16.mxu0 0
    %2738 = vmatpush1.bf16.msra.mxu0 %v2713
    %2739 = vmatprep.subr.bf16.mxu0 0
    %2740 = vmatpush2.bf16.msra.mxu0 0
    %2741 = vmatprep.subr.bf16.mxu0 0
    %2742 = vmatpush2.bf16.msra.mxu0 0
    %2743 = vmatprep.subr.bf16.mxu0 0
    %2744 = vmatpush2.bf16.msra.mxu0 0
    %2745 = vmatprep.subr.bf16.mxu0 0
    %2746 = vmatpush2.bf16.msra.mxu0 0
    %2747 = vmatprep.subr.bf16.mxu0 0
    %2748 = vmatpush2.bf16.msra.mxu0 0
    %2749 = vmatprep.subr.bf16.mxu0 0
    %2750 = vmatpush2.bf16.msra.mxu0 0
    %2751 = vmatprep.subr.bf16.mxu0 0
    %2752 = vmatpush2.bf16.msra.mxu0 0
    %2753 = vmatprep.subr.bf16.mxu0 0
    %2754 = vmatpush2.bf16.msra.mxu0 0
    %2755 = vmatprep.mubr.bf16.mxu0 0
    %2756 = vmatmul.mubr.bf16.gmra.mxu0 %v2718
    %v2757 = vpop.f32.mrf.mxu0
    %v2758 = vadd.f32 %v2704, %v2757
    %v2759 = vpop.f32.mrf.mxu0
    %v2760 = vpop.f32.mrf.mxu0
    %v2761 = vadd.f32 %v2704, %v2760
    %v2762 = vpop.f32.mrf.mxu0
    %2763 = vmatprep.mubr.bf16.mxu0 0
    %2764 = vmatmul.mubr.bf16.gmra.mxu0 %v2721
    %v2765 = vpop.f32.mrf.mxu0
    %v2766 = vadd.f32 %v2704, %v2765
    %v2767 = vpop.f32.mrf.mxu0
    %v2768 = vpop.f32.mrf.mxu0
    %v2769 = vadd.f32 %v2704, %v2768
    %v2770 = vpop.f32.mrf.mxu0
    %2771 = vdwg.mxu0
    %v2772 = vxor.u32 %v2758, 2147483648
    %v2773 = vxor.u32 %v2761, 2147483648
    %v2774 = vxor.u32 %v2766, 2147483648
    %v2775 = vxor.u32 %v2769, 2147483648
    %v2776 = vmul.f32 %v2772, 1.442695
    %v2777 = vpow.pop %v2776
    %v2778 = vmul.f32 %v2773, 1.442695
    %v2779 = vpow.pop %v2778
    %v2780 = vmul.f32 %v2774, 1.442695
    %v2781 = vpow.pop %v2780
    %v2782 = vmul.f32 %v2775, 1.442695
    %v2783 = vpow.pop %v2782
    %v2784 = vadd.f32 %v2777, 1.0
    %v2785 = vadd.f32 %v2779, 1.0
    %v2786 = vadd.f32 %v2781, 1.0
    %v2787 = vadd.f32 %v2783, 1.0
    %v2788 = vrcp.pop %v2784
    %v2789 = vmul.f32 1.0, %v2788
    %v2790 = vrcp.pop %v2785
    %v2791 = vmul.f32 1.0, %v2790
    %v2792 = vrcp.pop %v2786
    %v2793 = vmul.f32 1.0, %v2792
    %v2794 = vrcp.pop %v2787
    %v2795 = vmul.f32 1.0, %v2794
    %2800 = vrot.lane.b32.xlu0 %v2789, 64
    %v2801 = vpop.permute.xlu0 %2800
    %2802 = vrot.lane.b32.xlu0 %v2791, 64
    %v2803 = vpop.permute.xlu0 %2802
    %2804 = vrot.lane.b32.xlu0 %v2793, 64
    %v2805 = vpop.permute.xlu0 %2804
    %2806 = vrot.lane.b32.xlu0 %v2795, 64
    %v2807 = vpop.permute.xlu0 %2806
    %v2812 = vmul.f32 %v2758, %v2801
    %v2813 = vmul.f32 %v2761, %v2803
    %v2814 = vmul.f32 %v2766, %v2805
    %v2815 = vmul.f32 %v2769, %v2807
    %v2816 = vld [vmem:[#allocation5 + $0x10] sm:$0x7f]
    %v2817 = vlaneseq
    %v2818 = vshrl.u32 %v2817, 7
    %v2819 = vadd.s32 %v2818, 8
    %v2820 = vadd.s32 %v2818, 16
    %v2821 = vadd.s32 %v2818, 24
    %vm2822 = vcmp.lt.s32.totalorder %v2818, 0
    %v2823 = vsub.s32 0, %v2818
    %v2824 = vsel %vm2822, %v2823, %v2818
    %v2825 = vshrl.u32 %v2824, 4
    %v2826 = vand.u32 %v2824, 15
    %v2827 = vsub.s32 0, %v2826
    %v2828 = vsel %vm2822, %v2827, %v2826
    %vm2829 = vcmp.lt.s32.totalorder %v2819, 0
    %v2830 = vsub.s32 0, %v2819
    %v2831 = vsel %vm2829, %v2830, %v2819
    %v2832 = vshrl.u32 %v2831, 4
    %v2833 = vand.u32 %v2831, 15
    %v2834 = vsub.s32 0, %v2833
    %v2835 = vsel %vm2829, %v2834, %v2833
    %vm2836 = vcmp.lt.s32.totalorder %v2820, 0
    %v2837 = vsub.s32 0, %v2820
    %v2838 = vsel %vm2836, %v2837, %v2820
    %v2839 = vshrl.u32 %v2838, 4
    %v2840 = vand.u32 %v2838, 15
    %v2841 = vsub.s32 0, %v2840
    %v2842 = vsel %vm2836, %v2841, %v2840
    %vm2843 = vcmp.lt.s32.totalorder %v2821, 0
    %v2844 = vsub.s32 0, %v2821
    %v2845 = vsel %vm2843, %v2844, %v2821
    %v2846 = vshrl.u32 %v2845, 4
    %v2847 = vand.u32 %v2845, 15
    %v2848 = vsub.s32 0, %v2847
    %v2849 = vsel %vm2843, %v2848, %v2847
    %vm2850 = vcmp.ne.s32.totalorder %v2828, 0
    %vm2851 = vcmp.ne.s32.totalorder %v2835, 0
    %vm2852 = vcmp.ne.s32.totalorder %v2842, 0
    %vm2853 = vcmp.ne.s32.totalorder %v2849, 0
    %vm2854 = vcmp.lt.s32.totalorder %v2828, 0
    %vm2855 = vcmp.lt.s32.totalorder %v2835, 0
    %vm2856 = vcmp.lt.s32.totalorder %v2842, 0
    %vm2857 = vcmp.lt.s32.totalorder %v2849, 0
    %vm2858 = vmand %vm2854, %vm2850
    %vm2859 = vmand %vm2855, %vm2851
    %vm2860 = vmand %vm2856, %vm2852
    %vm2861 = vmand %vm2857, %vm2853
    %v2862 = vadd.s32 %v2828, 16
    %v2863 = vadd.s32 %v2835, 16
    %v2864 = vadd.s32 %v2842, 16
    %v2865 = vadd.s32 %v2849, 16
    %v2866 = vsel %vm2858, %v2862, %v2828
    %v2867 = vsel %vm2859, %v2863, %v2835
    %v2868 = vsel %vm2860, %v2864, %v2842
    %v2869 = vsel %vm2861, %v2865, %v2849
    %v2870 = vlaneseq
    %v2871 = vshrl.u32 %v2870, 7
    %v2872 = vsub.s32 3, %v2871
    %v2873 = vrot.slane %v2816, %v2872
    %v2874 = vmul.f32 %v2812, %v2873
    %v2875 = vmul.f32 %v2813, %v2873
    %v2876 = vmul.f32 %v2814, %v2873
    %v2877 = vmul.f32 %v2815, %v2873
    %v2878 = vrot.slane %v2812, 5
    %v2879 = vrot.slane %v2813, 5
    %v2880 = vrot.slane %v2814, 5
    %v2881 = vrot.slane %v2815, 5
    %vm2882 = vcmp.lt.s32.totalorder %v2818, 3
    %v2883 = vsel %vm2882, %v2880, %v2881
    %v2884 = vsel %vm2882, %v2879, %v2880
    %v2885 = vsel %vm2882, %v2878, %v2879
    %v2886 = vsel %vm2882, %v2881, %v2878
    %v2887 = vadd.s32 %v2866, 4294967293
    %v2888 = vadd.s32 %v2867, 4294967293
    %v2889 = vadd.s32 %v2868, 4294967293
    %v2890 = vadd.s32 %v2869, 4294967293
    %vm2891 = vcmp.ge.s32.totalorder %v2887, 0
    %vm2892 = vcmp.ge.s32.totalorder %v2888, 0
    %vm2893 = vcmp.ge.s32.totalorder %v2889, 0
    %vm2894 = vcmp.ge.s32.totalorder %v2890, 0
    %vm2895 = vcmp.lt.s32.totalorder %v2887, 16
    %vm2896 = vcmp.lt.s32.totalorder %v2888, 16
    %vm2897 = vcmp.lt.s32.totalorder %v2889, 16
    %vm2898 = vcmp.lt.s32.totalorder %v2890, 16
    %vm2899 = vmand %vm2891, %vm2895
    %vm2900 = vmand %vm2892, %vm2896
    %vm2901 = vmand %vm2893, %vm2897
    %vm2902 = vmand %vm2894, %vm2898
    %v2903 = vsel %vm2899, 1, 0
    %v2904 = vsel %vm2900, 1, 0
    %v2905 = vsel %vm2901, 1, 0
    %v2906 = vsel %vm2902, 1, 0
    %vm2907 = vcmp.eq.s32.totalorder %v2903, 1
    %vm2908 = vcmp.eq.s32.totalorder %v2904, 1
    %vm2909 = vcmp.eq.s32.totalorder %v2905, 1
    %vm2910 = vcmp.eq.s32.totalorder %v2906, 1
    %v2911 = vsel %vm2907, %v2886, 0.0
    %v2912 = vsel %vm2908, %v2885, 0.0
    %v2913 = vsel %vm2909, %v2884, 0.0
    %v2914 = vsel %vm2910, %v2883, 0.0
    %v2915 = vlaneseq
    %v2916 = vshrl.u32 %v2915, 7
    %v2917 = vsub.s32 0, %v2916
    %v2918 = vrot.slane %v2816, %v2917
    %v2919 = vmul.f32 %v2911, %v2918
    %v2920 = vmul.f32 %v2912, %v2918
    %v2921 = vmul.f32 %v2913, %v2918
    %v2922 = vmul.f32 %v2914, %v2918
    %v2923 = vadd.f32 %v2874, %v2919
    %v2924 = vadd.f32 %v2875, %v2920
    %v2925 = vadd.f32 %v2876, %v2921
    %v2926 = vadd.f32 %v2877, %v2922
    %v2927 = vrot.slane %v2812, 6
    %v2928 = vrot.slane %v2813, 6
    %v2929 = vrot.slane %v2814, 6
    %v2930 = vrot.slane %v2815, 6
    %vm2931 = vcmp.lt.s32.totalorder %v2818, 2
    %v2932 = vsel %vm2931, %v2929, %v2930
    %v2933 = vsel %vm2931, %v2928, %v2929
    %v2934 = vsel %vm2931, %v2927, %v2928
    %v2935 = vsel %vm2931, %v2930, %v2927
    %v2936 = vadd.s32 %v2866, 4294967294
    %v2937 = vadd.s32 %v2867, 4294967294
    %v2938 = vadd.s32 %v2868, 4294967294
    %v2939 = vadd.s32 %v2869, 4294967294
    %vm2940 = vcmp.ge.s32.totalorder %v2936, 0
    %vm2941 = vcmp.ge.s32.totalorder %v2937, 0
    %vm2942 = vcmp.ge.s32.totalorder %v2938, 0
    %vm2943 = vcmp.ge.s32.totalorder %v2939, 0
    %vm2944 = vcmp.lt.s32.totalorder %v2936, 16
    %vm2945 = vcmp.lt.s32.totalorder %v2937, 16
    %vm2946 = vcmp.lt.s32.totalorder %v2938, 16
    %vm2947 = vcmp.lt.s32.totalorder %v2939, 16
    %vm2948 = vmand %vm2940, %vm2944
    %vm2949 = vmand %vm2941, %vm2945
    %vm2950 = vmand %vm2942, %vm2946
    %vm2951 = vmand %vm2943, %vm2947
    %v2952 = vsel %vm2948, 1, 0
    %v2953 = vsel %vm2949, 1, 0
    %v2954 = vsel %vm2950, 1, 0
    %v2955 = vsel %vm2951, 1, 0
    %vm2956 = vcmp.eq.s32.totalorder %v2952, 1
    %vm2957 = vcmp.eq.s32.totalorder %v2953, 1
    %vm2958 = vcmp.eq.s32.totalorder %v2954, 1
    %vm2959 = vcmp.eq.s32.totalorder %v2955, 1
    %v2960 = vsel %vm2956, %v2935, 0.0
    %v2961 = vsel %vm2957, %v2934, 0.0
    %v2962 = vsel %vm2958, %v2933, 0.0
    %v2963 = vsel %vm2959, %v2932, 0.0
    %v2964 = vlaneseq
    %v2965 = vshrl.u32 %v2964, 7
    %v2966 = vsub.s32 1, %v2965
    %v2967 = vrot.slane %v2816, %v2966
    %v2968 = vmul.f32 %v2960, %v2967
    %v2969 = vmul.f32 %v2961, %v2967
    %v2970 = vmul.f32 %v2962, %v2967
    %v2971 = vmul.f32 %v2963, %v2967
    %v2972 = vadd.f32 %v2923, %v2968
    %v2973 = vadd.f32 %v2924, %v2969
    %v2974 = vadd.f32 %v2925, %v2970
    %v2975 = vadd.f32 %v2926, %v2971
    %v2976 = vrot.slane %v2812, 7
    %v2977 = vrot.slane %v2813, 7
    %v2978 = vrot.slane %v2814, 7
    %v2979 = vrot.slane %v2815, 7
    %vm2980 = vcmp.lt.s32.totalorder %v2818, 1
    %v2981 = vsel %vm2980, %v2978, %v2979
    %v2982 = vsel %vm2980, %v2977, %v2978
    %v2983 = vsel %vm2980, %v2976, %v2977
    %v2984 = vsel %vm2980, %v2979, %v2976
    %v2985 = vadd.s32 %v2866, 4294967295
    %v2986 = vadd.s32 %v2867, 4294967295
    %v2987 = vadd.s32 %v2868, 4294967295
    %v2988 = vadd.s32 %v2869, 4294967295
    %vm2989 = vcmp.ge.s32.totalorder %v2985, 0
    %vm2990 = vcmp.ge.s32.totalorder %v2986, 0
    %vm2991 = vcmp.ge.s32.totalorder %v2987, 0
    %vm2992 = vcmp.ge.s32.totalorder %v2988, 0
    %vm2993 = vcmp.lt.s32.totalorder %v2985, 16
    %vm2994 = vcmp.lt.s32.totalorder %v2986, 16
    %vm2995 = vcmp.lt.s32.totalorder %v2987, 16
    %vm2996 = vcmp.lt.s32.totalorder %v2988, 16
    %vm2997 = vmand %vm2989, %vm2993
    %vm2998 = vmand %vm2990, %vm2994
    %vm2999 = vmand %vm2991, %vm2995
    %vm3000 = vmand %vm2992, %vm2996
    %v3001 = vsel %vm2997, 1, 0
    %v3002 = vsel %vm2998, 1, 0
    %v3003 = vsel %vm2999, 1, 0
    %v3004 = vsel %vm3000, 1, 0
    %vm3005 = vcmp.eq.s32.totalorder %v3001, 1
    %vm3006 = vcmp.eq.s32.totalorder %v3002, 1
    %vm3007 = vcmp.eq.s32.totalorder %v3003, 1
    %vm3008 = vcmp.eq.s32.totalorder %v3004, 1
    %v3009 = vsel %vm3005, %v2984, 0.0
    %v3010 = vsel %vm3006, %v2983, 0.0
    %v3011 = vsel %vm3007, %v2982, 0.0
    %v3012 = vsel %vm3008, %v2981, 0.0
    %v3013 = vlaneseq
    %v3014 = vshrl.u32 %v3013, 7
    %v3015 = vsub.s32 2, %v3014
    %v3016 = vrot.slane %v2816, %v3015
    %v3017 = vmul.f32 %v3009, %v3016
    %v3018 = vmul.f32 %v3010, %v3016
    %v3019 = vmul.f32 %v3011, %v3016
    %v3020 = vmul.f32 %v3012, %v3016
    %v3021 = vadd.f32 %v2972, %v3017
    %v3022 = vadd.f32 %v2973, %v3018
    %v3023 = vadd.f32 %v2974, %v3019
    %v3024 = vadd.f32 %v2975, %v3020
    %v3025 = vrot.slane %v2812, 1
    %v3026 = vrot.slane %v2813, 1
    %v3027 = vrot.slane %v2814, 1
    %v3028 = vrot.slane %v2815, 1
    %vm3029 = vcmp.lt.s32.totalorder %v2818, 7
    %v3030 = vsel %vm3029, %v3027, %v3028
    %v3031 = vsel %vm3029, %v3026, %v3027
    %v3032 = vsel %vm3029, %v3025, %v3026
    %v3033 = vsel %vm3029, %v3028, %v3025
    %v3034 = vadd.s32 %v2866, 1
    %v3035 = vadd.s32 %v2867, 1
    %v3036 = vadd.s32 %v2868, 1
    %v3037 = vadd.s32 %v2869, 1
    %vm3038 = vcmp.ge.s32.totalorder %v3034, 0
    %vm3039 = vcmp.ge.s32.totalorder %v3035, 0
    %vm3040 = vcmp.ge.s32.totalorder %v3036, 0
    %vm3041 = vcmp.ge.s32.totalorder %v3037, 0
    %vm3042 = vcmp.lt.s32.totalorder %v3034, 16
    %vm3043 = vcmp.lt.s32.totalorder %v3035, 16
    %vm3044 = vcmp.lt.s32.totalorder %v3036, 16
    %vm3045 = vcmp.lt.s32.totalorder %v3037, 16
    %vm3046 = vmand %vm3038, %vm3042
    %vm3047 = vmand %vm3039, %vm3043
    %vm3048 = vmand %vm3040, %vm3044
    %vm3049 = vmand %vm3041, %vm3045
    %v3050 = vsel %vm3046, 1, 0
    %v3051 = vsel %vm3047, 1, 0
    %v3052 = vsel %vm3048, 1, 0
    %v3053 = vsel %vm3049, 1, 0
    %vm3054 = vcmp.eq.s32.totalorder %v3050, 1
    %vm3055 = vcmp.eq.s32.totalorder %v3051, 1
    %vm3056 = vcmp.eq.s32.totalorder %v3052, 1
    %vm3057 = vcmp.eq.s32.totalorder %v3053, 1
    %v3058 = vsel %vm3054, %v3032, 0.0
    %v3059 = vsel %vm3055, %v3031, 0.0
    %v3060 = vsel %vm3056, %v3030, 0.0
    %v3061 = vsel %vm3057, %v3033, 0.0
    %v3062 = vlaneseq
    %v3063 = vshrl.u32 %v3062, 7
    %v3064 = vsub.s32 4, %v3063
    %v3065 = vrot.slane %v2816, %v3064
    %v3066 = vmul.f32 %v3058, %v3065
    %v3067 = vmul.f32 %v3059, %v3065
    %v3068 = vmul.f32 %v3060, %v3065
    %v3069 = vmul.f32 %v3061, %v3065
    %v3070 = vadd.f32 %v3021, %v3066
    %v3071 = vadd.f32 %v3022, %v3067
    %v3072 = vadd.f32 %v3023, %v3068
    %v3073 = vadd.f32 %v3024, %v3069
    %v3074 = vrot.slane %v2812, 2
    %v3075 = vrot.slane %v2813, 2
    %v3076 = vrot.slane %v2814, 2
    %v3077 = vrot.slane %v2815, 2
    %vm3078 = vcmp.lt.s32.totalorder %v2818, 6
    %v3079 = vsel %vm3078, %v3076, %v3077
    %v3080 = vsel %vm3078, %v3075, %v3076
    %v3081 = vsel %vm3078, %v3074, %v3075
    %v3082 = vsel %vm3078, %v3077, %v3074
    %v3083 = vadd.s32 %v2866, 2
    %v3084 = vadd.s32 %v2867, 2
    %v3085 = vadd.s32 %v2868, 2
    %v3086 = vadd.s32 %v2869, 2
    %vm3087 = vcmp.ge.s32.totalorder %v3083, 0
    %vm3088 = vcmp.ge.s32.totalorder %v3084, 0
    %vm3089 = vcmp.ge.s32.totalorder %v3085, 0
    %vm3090 = vcmp.ge.s32.totalorder %v3086, 0
    %vm3091 = vcmp.lt.s32.totalorder %v3083, 16
    %vm3092 = vcmp.lt.s32.totalorder %v3084, 16
    %vm3093 = vcmp.lt.s32.totalorder %v3085, 16
    %vm3094 = vcmp.lt.s32.totalorder %v3086, 16
    %vm3095 = vmand %vm3087, %vm3091
    %vm3096 = vmand %vm3088, %vm3092
    %vm3097 = vmand %vm3089, %vm3093
    %vm3098 = vmand %vm3090, %vm3094
    %v3099 = vsel %vm3095, 1, 0
    %v3100 = vsel %vm3096, 1, 0
    %v3101 = vsel %vm3097, 1, 0
    %v3102 = vsel %vm3098, 1, 0
    %vm3103 = vcmp.eq.s32.totalorder %v3099, 1
    %vm3104 = vcmp.eq.s32.totalorder %v3100, 1
    %vm3105 = vcmp.eq.s32.totalorder %v3101, 1
    %vm3106 = vcmp.eq.s32.totalorder %v3102, 1
    %v3107 = vsel %vm3103, %v3081, 0.0
    %v3108 = vsel %vm3104, %v3080, 0.0
    %v3109 = vsel %vm3105, %v3079, 0.0
    %v3110 = vsel %vm3106, %v3082, 0.0
    %v3111 = vlaneseq
    %v3112 = vshrl.u32 %v3111, 7
    %v3113 = vsub.s32 5, %v3112
    %v3114 = vrot.slane %v2816, %v3113
    %v3115 = vmul.f32 %v3107, %v3114
    %v3116 = vmul.f32 %v3108, %v3114
    %v3117 = vmul.f32 %v3109, %v3114
    %v3118 = vmul.f32 %v3110, %v3114
    %v3119 = vadd.f32 %v3070, %v3115
    %v3120 = vadd.f32 %v3071, %v3116
    %v3121 = vadd.f32 %v3072, %v3117
    %v3122 = vadd.f32 %v3073, %v3118
    %v3123 = vrot.slane %v2812, 3
    %v3124 = vrot.slane %v2813, 3
    %v3125 = vrot.slane %v2814, 3
    %v3126 = vrot.slane %v2815, 3
    %vm3127 = vcmp.lt.s32.totalorder %v2818, 5
    %v3128 = vsel %vm3127, %v3125, %v3126
    %v3129 = vsel %vm3127, %v3124, %v3125
    %v3130 = vsel %vm3127, %v3123, %v3124
    %v3131 = vsel %vm3127, %v3126, %v3123
    %v3132 = vadd.s32 %v2866, 3
    %v3133 = vadd.s32 %v2867, 3
    %v3134 = vadd.s32 %v2868, 3
    %v3135 = vadd.s32 %v2869, 3
    %vm3136 = vcmp.ge.s32.totalorder %v3132, 0
    %vm3137 = vcmp.ge.s32.totalorder %v3133, 0
    %vm3138 = vcmp.ge.s32.totalorder %v3134, 0
    %vm3139 = vcmp.ge.s32.totalorder %v3135, 0
    %vm3140 = vcmp.lt.s32.totalorder %v3132, 16
    %vm3141 = vcmp.lt.s32.totalorder %v3133, 16
    %vm3142 = vcmp.lt.s32.totalorder %v3134, 16
    %vm3143 = vcmp.lt.s32.totalorder %v3135, 16
    %vm3144 = vmand %vm3136, %vm3140
    %vm3145 = vmand %vm3137, %vm3141
    %vm3146 = vmand %vm3138, %vm3142
    %vm3147 = vmand %vm3139, %vm3143
    %v3148 = vsel %vm3144, 1, 0
    %v3149 = vsel %vm3145, 1, 0
    %v3150 = vsel %vm3146, 1, 0
    %v3151 = vsel %vm3147, 1, 0
    %vm3152 = vcmp.eq.s32.totalorder %v3148, 1
    %vm3153 = vcmp.eq.s32.totalorder %v3149, 1
    %vm3154 = vcmp.eq.s32.totalorder %v3150, 1
    %vm3155 = vcmp.eq.s32.totalorder %v3151, 1
    %v3156 = vsel %vm3152, %v3130, 0.0
    %v3157 = vsel %vm3153, %v3129, 0.0
    %v3158 = vsel %vm3154, %v3128, 0.0
    %v3159 = vsel %vm3155, %v3131, 0.0
    %v3160 = vlaneseq
    %v3161 = vshrl.u32 %v3160, 7
    %v3162 = vsub.s32 6, %v3161
    %v3163 = vrot.slane %v2816, %v3162
    %v3164 = vmul.f32 %v3156, %v3163
    %v3165 = vmul.f32 %v3157, %v3163
    %v3166 = vmul.f32 %v3158, %v3163
    %v3167 = vmul.f32 %v3159, %v3163
    %v3168 = vadd.f32 %v3119, %v3164
    %v3169 = vadd.f32 %v3120, %v3165
    %v3170 = vadd.f32 %v3121, %v3166
    %v3171 = vadd.f32 %v3122, %v3167
    %v3172 = vld [vmem:[#allocation5 + $0x21] sm:$0x1]
    %v3173 = vlaneseq
    %v3174 = vshrl.u32 %v3173, 7
    %v3175 = vsub.s32 0, %v3174
    %v3176 = vrot.slane %v3172, %v3175
    %v3177 = vadd.f32 %v3168, %v3176
    %v3178 = vadd.f32 %v3169, %v3176
    %v3179 = vadd.f32 %v3170, %v3176
    %v3180 = vadd.f32 %v3171, %v3176
    %v3181 = vxor.u32 %v3177, 2147483648
    %v3182 = vxor.u32 %v3178, 2147483648
    %v3183 = vxor.u32 %v3179, 2147483648
    %v3184 = vxor.u32 %v3180, 2147483648
    %v3185 = vmul.f32 %v3181, 1.442695
    %v3186 = vpow.pop %v3185
    %v3187 = vmul.f32 %v3182, 1.442695
    %v3188 = vpow.pop %v3187
    %v3189 = vmul.f32 %v3183, 1.442695
    %v3190 = vpow.pop %v3189
    %v3191 = vmul.f32 %v3184, 1.442695
    %v3192 = vpow.pop %v3191
    %v3193 = vadd.f32 %v3186, 1.0
    %v3194 = vadd.f32 %v3188, 1.0
    %v3195 = vadd.f32 %v3190, 1.0
    %v3196 = vadd.f32 %v3192, 1.0
    %v3197 = vrcp.pop %v3193
    %v3198 = vmul.f32 1.0, %v3197
    %v3199 = vrcp.pop %v3194
    %v3200 = vmul.f32 1.0, %v3199
    %v3201 = vrcp.pop %v3195
    %v3202 = vmul.f32 1.0, %v3201
    %v3203 = vrcp.pop %v3196
    %v3204 = vmul.f32 1.0, %v3203
    %v3205 = vmul.f32 %v3177, %v3198
    %v3206 = vmul.f32 %v3178, %v3200
    %v3207 = vmul.f32 %v3179, %v3202
    %v3208 = vmul.f32 %v3180, %v3204
    %v3209 = vpack.c.bf16 %v3206, %v3205
    %v3210 = vpack.c.bf16 %v3208, %v3207
    %v3211 = vld [vmem:[#allocation7 + $0xd8] sm:$0xf]
    %v3212 = vld [vmem:[#allocation7 + $0xdc] sm:$0xf]
    %v3213 = vld [vmem:[#allocation7 + $0xe0] sm:$0xf]
    %v3214 = vld [vmem:[#allocation7 + $0xe4] sm:$0xf]
    %v3215 = vld [vmem:[#allocation7 + $0xe8] sm:$0xf]
    %v3216 = vld [vmem:[#allocation7 + $0xec] sm:$0xf]
    %v3217 = vld [vmem:[#allocation7 + $0xf0] sm:$0xf]
    %v3218 = vld [vmem:[#allocation7 + $0xf4] sm:$0xf]
    %v3219 = vld [vmem:[#allocation5 + $0x22] sm:$0x1]
    %v3220 = vlaneseq
    %v3221 = vshrl.u32 %v3220, 7
    %v3222 = vsub.s32 0, %v3221
    %v3223 = vrot.slane %v3219, %v3222
    %v3232 = vunpack.c.l.b16 %v3211
    %v3233 = vunpack.c.l.b16 %v3212
    %v3234 = vunpack.c.l.b16 %v3213
    %v3235 = vunpack.c.l.b16 %v3214
    %v3236 = vunpack.c.l.b16 %v3215
    %v3237 = vunpack.c.l.b16 %v3216
    %v3238 = vunpack.c.l.b16 %v3217
    %v3239 = vunpack.c.l.b16 %v3218
    %v3240 = vpack.c.b16 %v3233, %v3232
    %v3241 = vpack.c.b16 %v3235, %v3234
    %v3242 = vpack.c.b16 %v3237, %v3236
    %v3243 = vpack.c.b16 %v3239, %v3238
    %vm3248 = vcmask 523264
    %v3250 = vsel %vm3248, %v3209, 0
    %v3253 = vsel %vm3248, %v3210, 0
    %3255 = vmatprep.subr.bf16.mxu0 0
    %3256 = vmatpush1.bf16.msra.mxu0 0
    %3257 = vmatprep.subr.bf16.mxu0 0
    %3258 = vmatpush1.bf16.msra.mxu0 0
    %3259 = vmatprep.subr.bf16.mxu0 0
    %3260 = vmatpush1.bf16.msra.mxu0 0
    %3261 = vmatprep.subr.bf16.mxu0 0
    %3262 = vmatpush1.bf16.msra.mxu0 0
    %3263 = vmatprep.subr.bf16.mxu0 0
    %3264 = vmatpush1.bf16.msra.mxu0 %v3243
    %3265 = vmatprep.subr.bf16.mxu0 0
    %3266 = vmatpush1.bf16.msra.mxu0 %v3242
    %3267 = vmatprep.subr.bf16.mxu0 0
    %3268 = vmatpush1.bf16.msra.mxu0 %v3241
    %3269 = vmatprep.subr.bf16.mxu0 0
    %3270 = vmatpush1.bf16.msra.mxu0 %v3240
    %3271 = vmatprep.subr.bf16.mxu0 0
    %3272 = vmatpush2.bf16.msra.mxu0 0
    %3273 = vmatprep.subr.bf16.mxu0 0
    %3274 = vmatpush2.bf16.msra.mxu0 0
    %3275 = vmatprep.subr.bf16.mxu0 0
    %3276 = vmatpush2.bf16.msra.mxu0 0
    %3277 = vmatprep.subr.bf16.mxu0 0
    %3278 = vmatpush2.bf16.msra.mxu0 0
    %3279 = vmatprep.subr.bf16.mxu0 0
    %3280 = vmatpush2.bf16.msra.mxu0 0
    %3281 = vmatprep.subr.bf16.mxu0 0
    %3282 = vmatpush2.bf16.msra.mxu0 0
    %3283 = vmatprep.subr.bf16.mxu0 0
    %3284 = vmatpush2.bf16.msra.mxu0 0
    %3285 = vmatprep.subr.bf16.mxu0 0
    %3286 = vmatpush2.bf16.msra.mxu0 0
    %3287 = vmatprep.mubr.bf16.mxu0 0
    %3288 = vmatmul.mubr.bf16.gmra.mxu0 %v3250
    %v3289 = vpop.f32.mrf.mxu0
    %v3290 = vadd.f32 %v3223, %v3289
    %v3291 = vpop.f32.mrf.mxu0
    %v3292 = vpop.f32.mrf.mxu0
    %v3293 = vadd.f32 %v3223, %v3292
    %v3294 = vpop.f32.mrf.mxu0
    %3295 = vmatprep.mubr.bf16.mxu0 0
    %3296 = vmatmul.mubr.bf16.gmra.mxu0 %v3253
    %v3297 = vpop.f32.mrf.mxu0
    %v3298 = vadd.f32 %v3223, %v3297
    %v3299 = vpop.f32.mrf.mxu0
    %v3300 = vpop.f32.mrf.mxu0
    %v3301 = vadd.f32 %v3223, %v3300
    %v3302 = vpop.f32.mrf.mxu0
    %3303 = vdwg.mxu0
    %v3304 = vadd.f32 %v3290, %v2620
    %v3305 = vadd.f32 %v3293, %v2621
    %v3306 = vadd.f32 %v3298, %v2622
    %v3307 = vadd.f32 %v3301, %v2623
    %v3308 = vld [vmem:[#allocation5 + $0x23] sm:$0x1]
    %v3309 = vld [vmem:[#allocation5 + $0x24] sm:$0x1]
    %v3310 = vsel %vm63, %v3304, 0.0
    %3311 = vadd.xlane.f32.xlu0 %v3310
    %v3312 = vpop.xlane.xlu0 %3311
    %v3313 = vsel %vm63, %v3305, 0.0
    %3314 = vadd.xlane.f32.xlu0 %v3313
    %v3315 = vpop.xlane.xlu0 %3314
    %v3316 = vsel %vm63, %v3306, 0.0
    %3317 = vadd.xlane.f32.xlu0 %v3316
    %v3318 = vpop.xlane.xlu0 %3317
    %v3319 = vsel %vm63, %v3307, 0.0
    %3320 = vadd.xlane.f32.xlu0 %v3319
    %v3321 = vpop.xlane.xlu0 %3320
    %v3322 = vmul.f32 %v3312, %v76
    %v3323 = vmul.f32 %v3315, %v76
    %v3324 = vmul.f32 %v3318, %v76
    %v3325 = vmul.f32 %v3321, %v76
    %v3326 = vsub.f32 %v3304, %v3322
    %v3327 = vsub.f32 %v3305, %v3323
    %v3328 = vsub.f32 %v3306, %v3324
    %v3329 = vsub.f32 %v3307, %v3325
    %v3330 = vmul.f32 %v3326, %v3326
    %v3331 = vmul.f32 %v3327, %v3327
    %v3332 = vmul.f32 %v3328, %v3328
    %v3333 = vmul.f32 %v3329, %v3329
    %v3334 = vsel %vm63, %v3330, 0.0
    %3335 = vadd.xlane.f32.xlu0 %v3334
    %v3336 = vpop.xlane.xlu0 %3335
    %v3337 = vsel %vm63, %v3331, 0.0
    %3338 = vadd.xlane.f32.xlu0 %v3337
    %v3339 = vpop.xlane.xlu0 %3338
    %v3340 = vsel %vm63, %v3332, 0.0
    %3341 = vadd.xlane.f32.xlu0 %v3340
    %v3342 = vpop.xlane.xlu0 %3341
    %v3343 = vsel %vm63, %v3333, 0.0
    %3344 = vadd.xlane.f32.xlu0 %v3343
    %v3345 = vpop.xlane.xlu0 %3344
    %v3346 = vmul.f32 %v3336, %v76
    %v3347 = vmul.f32 %v3339, %v76
    %v3348 = vmul.f32 %v3342, %v76
    %v3349 = vmul.f32 %v3345, %v76
    %v3350 = vadd.f32 %v3346, 1e-05
    %v3351 = vadd.f32 %v3347, 1e-05
    %v3352 = vadd.f32 %v3348, 1e-05
    %v3353 = vadd.f32 %v3349, 1e-05
    %v3354 = vrsqrt.pop %v3350
    %v3355 = vrsqrt.pop %v3351
    %v3356 = vrsqrt.pop %v3352
    %v3357 = vrsqrt.pop %v3353
    %v3358 = vmul.f32 %v3326, %v3354
    %v3359 = vmul.f32 %v3327, %v3355
    %v3360 = vmul.f32 %v3328, %v3356
    %v3361 = vmul.f32 %v3329, %v3357
    %v3362 = vlaneseq
    %v3363 = vshrl.u32 %v3362, 7
    %v3364 = vsub.s32 0, %v3363
    %v3365 = vrot.slane %v3308, %v3364
    %v3366 = vmul.f32 %v3358, %v3365
    %v3367 = vmul.f32 %v3359, %v3365
    %v3368 = vmul.f32 %v3360, %v3365
    %v3369 = vmul.f32 %v3361, %v3365
    %v3370 = vlaneseq
    %v3371 = vshrl.u32 %v3370, 7
    %v3372 = vsub.s32 0, %v3371
    %v3373 = vrot.slane %v3309, %v3372
    %v3374 = vadd.f32 %v3366, %v3373
    %v3375 = vadd.f32 %v3367, %v3373
    %v3376 = vadd.f32 %v3368, %v3373
    %v3377 = vadd.f32 %v3369, %v3373
    %v3378 = vpack.c.bf16 %v3375, %v3374
    %v3379 = vpack.c.bf16 %v3377, %v3376
    %v3380 = vld [vmem:[#allocation7 + $0xf8] sm:$0xf]
    %v3381 = vld [vmem:[#allocation7 + $0xfc] sm:$0xf]
    %v3382 = vld [vmem:[#allocation7 + $0x100] sm:$0xf]
    %v3383 = vld [vmem:[#allocation7 + $0x104] sm:$0xf]
    %v3384 = vld [vmem:[#allocation5 + $0x25] sm:$0x1]
    %v3385 = vlaneseq
    %v3386 = vshrl.u32 %v3385, 7
    %v3387 = vsub.s32 0, %v3386
    %v3388 = vrot.slane %v3384, %v3387
    %v3393 = vunpack.c.l.b16 %v3380
    %v3394 = vunpack.c.l.b16 %v3381
    %v3395 = vunpack.c.l.b16 %v3382
    %v3396 = vunpack.c.l.b16 %v3383
    %v3397 = vpack.c.b16 %v3394, %v3393
    %v3398 = vpack.c.b16 %v3396, %v3395
    %v3402 = vsel %vm63, %v3378, 0
    %v3405 = vsel %vm63, %v3379, 0
    %3407 = vmatprep.subr.bf16.mxu0 0
    %3408 = vmatpush1.bf16.msra.mxu0 0
    %3409 = vmatprep.subr.bf16.mxu0 0
    %3410 = vmatpush1.bf16.msra.mxu0 0
    %3411 = vmatprep.subr.bf16.mxu0 0
    %3412 = vmatpush1.bf16.msra.mxu0 0
    %3413 = vmatprep.subr.bf16.mxu0 0
    %3414 = vmatpush1.bf16.msra.mxu0 0
    %3415 = vmatprep.subr.bf16.mxu0 0
    %3416 = vmatpush1.bf16.msra.mxu0 0
    %3417 = vmatprep.subr.bf16.mxu0 0
    %3418 = vmatpush1.bf16.msra.mxu0 0
    %3419 = vmatprep.subr.bf16.mxu0 0
    %3420 = vmatpush1.bf16.msra.mxu0 %v3398
    %3421 = vmatprep.subr.bf16.mxu0 0
    %3422 = vmatpush1.bf16.msra.mxu0 %v3397
    %3423 = vmatprep.subr.bf16.mxu0 0
    %3424 = vmatpush2.bf16.msra.mxu0 0
    %3425 = vmatprep.subr.bf16.mxu0 0
    %3426 = vmatpush2.bf16.msra.mxu0 0
    %3427 = vmatprep.subr.bf16.mxu0 0
    %3428 = vmatpush2.bf16.msra.mxu0 0
    %3429 = vmatprep.subr.bf16.mxu0 0
    %3430 = vmatpush2.bf16.msra.mxu0 0
    %3431 = vmatprep.subr.bf16.mxu0 0
    %3432 = vmatpush2.bf16.msra.mxu0 0
    %3433 = vmatprep.subr.bf16.mxu0 0
    %3434 = vmatpush2.bf16.msra.mxu0 0
    %3435 = vmatprep.subr.bf16.mxu0 0
    %3436 = vmatpush2.bf16.msra.mxu0 0
    %3437 = vmatprep.subr.bf16.mxu0 0
    %3438 = vmatpush2.bf16.msra.mxu0 0
    %3439 = vmatprep.mubr.bf16.mxu0 0
    %3440 = vmatmul.mubr.bf16.gmra.mxu0 %v3402
    %v3441 = vpop.f32.mrf.mxu0
    %v3442 = vadd.f32 %v3388, %v3441
    %v3443 = vpop.f32.mrf.mxu0
    %v3444 = vpop.f32.mrf.mxu0
    %v3445 = vadd.f32 %v3388, %v3444
    %v3446 = vpop.f32.mrf.mxu0
    %3447 = vmatprep.mubr.bf16.mxu0 0
    %3448 = vmatmul.mubr.bf16.gmra.mxu0 %v3405
    %v3449 = vpop.f32.mrf.mxu0
    %v3450 = vadd.f32 %v3388, %v3449
    %v3451 = vpop.f32.mrf.mxu0
    %v3452 = vpop.f32.mrf.mxu0
    %v3453 = vadd.f32 %v3388, %v3452
    %v3454 = vpop.f32.mrf.mxu0
    %3455 = vdwg.mxu0
    %v3456 = vxor.u32 %v3442, 2147483648
    %v3457 = vxor.u32 %v3445, 2147483648
    %v3458 = vxor.u32 %v3450, 2147483648
    %v3459 = vxor.u32 %v3453, 2147483648
    %v3460 = vmul.f32 %v3456, 1.442695
    %v3461 = vpow.pop %v3460
    %v3462 = vmul.f32 %v3457, 1.442695
    %v3463 = vpow.pop %v3462
    %v3464 = vmul.f32 %v3458, 1.442695
    %v3465 = vpow.pop %v3464
    %v3466 = vmul.f32 %v3459, 1.442695
    %v3467 = vpow.pop %v3466
    %v3468 = vadd.f32 %v3461, 1.0
    %v3469 = vadd.f32 %v3463, 1.0
    %v3470 = vadd.f32 %v3465, 1.0
    %v3471 = vadd.f32 %v3467, 1.0
    %v3472 = vrcp.pop %v3468
    %v3473 = vmul.f32 1.0, %v3472
    %v3474 = vrcp.pop %v3469
    %v3475 = vmul.f32 1.0, %v3474
    %v3476 = vrcp.pop %v3470
    %v3477 = vmul.f32 1.0, %v3476
    %v3478 = vrcp.pop %v3471
    %v3479 = vmul.f32 1.0, %v3478
    %v3480 = vmul.f32 %v3442, %v3473
    %v3481 = vmul.f32 %v3445, %v3475
    %v3482 = vmul.f32 %v3450, %v3477
    %v3483 = vmul.f32 %v3453, %v3479
    %v3484 = vpack.c.bf16 %v3481, %v3480
    %v3485 = vpack.c.bf16 %v3483, %v3482
    %v3486 = vld [vmem:[#allocation7 + $0x108] sm:$0xf]
    %v3487 = vld [vmem:[#allocation7 + $0x10c] sm:$0xf]
    %v3488 = vld [vmem:[#allocation7 + $0x110] sm:$0xf]
    %v3489 = vld [vmem:[#allocation7 + $0x114] sm:$0xf]
    %v3490 = vld [vmem:[#allocation7 + $0x118] sm:$0xf]
    %v3491 = vld [vmem:[#allocation7 + $0x11c] sm:$0xf]
    %v3492 = vld [vmem:[#allocation7 + $0x120] sm:$0xf]
    %v3493 = vld [vmem:[#allocation7 + $0x124] sm:$0xf]
    %v3494 = vld [vmem:[#allocation7 + $0x128] sm:$0xf]
    %v3495 = vld [vmem:[#allocation7 + $0x12c] sm:$0xf]
    %v3496 = vld [vmem:[#allocation7 + $0x130] sm:$0xf]
    %v3497 = vld [vmem:[#allocation7 + $0x134] sm:$0xf]
    %v3498 = vld [vmem:[#allocation7 + $0x138] sm:$0xf]
    %v3499 = vld [vmem:[#allocation7 + $0x13c] sm:$0xf]
    %v3500 = vld [vmem:[#allocation7 + $0x140] sm:$0xf]
    %v3501 = vld [vmem:[#allocation7 + $0x144] sm:$0xf]
    %v3502 = vld [vmem:[#allocation5 + $0x26] sm:$0x1]
    %v3503 = vlaneseq
    %v3504 = vshrl.u32 %v3503, 7
    %v3505 = vsub.s32 0, %v3504
    %v3506 = vrot.slane %v3502, %v3505
    %v3523 = vunpack.c.l.b16 %v3486
    %v3524 = vunpack.c.l.b16 %v3487
    %v3525 = vunpack.c.l.b16 %v3488
    %v3526 = vunpack.c.l.b16 %v3489
    %v3527 = vunpack.c.l.b16 %v3490
    %v3528 = vunpack.c.l.b16 %v3491
    %v3529 = vunpack.c.l.b16 %v3492
    %v3530 = vunpack.c.l.b16 %v3493
    %v3531 = vunpack.c.l.b16 %v3494
    %v3532 = vunpack.c.l.b16 %v3495
    %v3533 = vunpack.c.l.b16 %v3496
    %v3534 = vunpack.c.l.b16 %v3497
    %v3535 = vunpack.c.l.b16 %v3498
    %v3536 = vunpack.c.l.b16 %v3499
    %v3537 = vunpack.c.l.b16 %v3500
    %v3538 = vunpack.c.l.b16 %v3501
    %v3539 = vpack.c.b16 %v3524, %v3523
    %v3540 = vpack.c.b16 %v3526, %v3525
    %v3541 = vpack.c.b16 %v3528, %v3527
    %v3542 = vpack.c.b16 %v3530, %v3529
    %v3543 = vpack.c.b16 %v3532, %v3531
    %v3544 = vpack.c.b16 %v3534, %v3533
    %v3545 = vpack.c.b16 %v3536, %v3535
    %v3546 = vpack.c.b16 %v3538, %v3537
    %3555 = vmatprep.subr.bf16.mxu0 0
    %3556 = vmatpush1.bf16.msra.mxu0 %v3546
    %3557 = vmatprep.subr.bf16.mxu0 0
    %3558 = vmatpush1.bf16.msra.mxu0 %v3545
    %3559 = vmatprep.subr.bf16.mxu0 0
    %3560 = vmatpush1.bf16.msra.mxu0 %v3544
    %3561 = vmatprep.subr.bf16.mxu0 0
    %3562 = vmatpush1.bf16.msra.mxu0 %v3543
    %3563 = vmatprep.subr.bf16.mxu0 0
    %3564 = vmatpush1.bf16.msra.mxu0 %v3542
    %3565 = vmatprep.subr.bf16.mxu0 0
    %3566 = vmatpush1.bf16.msra.mxu0 %v3541
    %3567 = vmatprep.subr.bf16.mxu0 0
    %3568 = vmatpush1.bf16.msra.mxu0 %v3540
    %3569 = vmatprep.subr.bf16.mxu0 0
    %3570 = vmatpush1.bf16.msra.mxu0 %v3539
    %3571 = vmatprep.subr.bf16.mxu0 0
    %3572 = vmatpush2.bf16.msra.mxu0 0
    %3573 = vmatprep.subr.bf16.mxu0 0
    %3574 = vmatpush2.bf16.msra.mxu0 0
    %3575 = vmatprep.subr.bf16.mxu0 0
    %3576 = vmatpush2.bf16.msra.mxu0 0
    %3577 = vmatprep.subr.bf16.mxu0 0
    %3578 = vmatpush2.bf16.msra.mxu0 0
    %3579 = vmatprep.subr.bf16.mxu0 0
    %3580 = vmatpush2.bf16.msra.mxu0 0
    %3581 = vmatprep.subr.bf16.mxu0 0
    %3582 = vmatpush2.bf16.msra.mxu0 0
    %3583 = vmatprep.subr.bf16.mxu0 0
    %3584 = vmatpush2.bf16.msra.mxu0 0
    %3585 = vmatprep.subr.bf16.mxu0 0
    %3586 = vmatpush2.bf16.msra.mxu0 0
    %3587 = vmatprep.mubr.bf16.mxu0 0
    %3588 = vmatmul.mubr.bf16.gmra.mxu0 %v3484
    %v3589 = vpop.f32.mrf.mxu0
    %v3590 = vadd.f32 %v3506, %v3589
    %v3591 = vpop.f32.mrf.mxu0
    %v3592 = vpop.f32.mrf.mxu0
    %v3593 = vadd.f32 %v3506, %v3592
    %v3594 = vpop.f32.mrf.mxu0
    %3595 = vmatprep.mubr.bf16.mxu0 0
    %3596 = vmatmul.mubr.bf16.gmra.mxu0 %v3485
    %v3597 = vpop.f32.mrf.mxu0
    %v3598 = vadd.f32 %v3506, %v3597
    %v3599 = vpop.f32.mrf.mxu0
    %v3600 = vpop.f32.mrf.mxu0
    %v3601 = vadd.f32 %v3506, %v3600
    %v3602 = vpop.f32.mrf.mxu0
    %3603 = vdwg.mxu0
    %v3604 = vadd.f32 %v3590, %v3304
    %v3605 = vadd.f32 %v3593, %v3305
    %v3606 = vadd.f32 %v3598, %v3306
    %v3607 = vadd.f32 %v3601, %v3307
    %v3608 = vld [vmem:[#allocation5 + $0x27] sm:$0x1]
    %v3609 = vld [vmem:[#allocation5 + $0x28] sm:$0x1]
    %v3610 = vsel %vm63, %v3604, 0.0
    %3611 = vadd.xlane.f32.xlu0 %v3610
    %v3612 = vpop.xlane.xlu0 %3611
    %v3613 = vsel %vm63, %v3605, 0.0
    %3614 = vadd.xlane.f32.xlu0 %v3613
    %v3615 = vpop.xlane.xlu0 %3614
    %v3616 = vsel %vm63, %v3606, 0.0
    %3617 = vadd.xlane.f32.xlu0 %v3616
    %v3618 = vpop.xlane.xlu0 %3617
    %v3619 = vsel %vm63, %v3607, 0.0
    %3620 = vadd.xlane.f32.xlu0 %v3619
    %v3621 = vpop.xlane.xlu0 %3620
    %v3622 = vmul.f32 %v3612, %v76
    %v3623 = vmul.f32 %v3615, %v76
    %v3624 = vmul.f32 %v3618, %v76
    %v3625 = vmul.f32 %v3621, %v76
    %v3626 = vsub.f32 %v3604, %v3622
    %v3627 = vsub.f32 %v3605, %v3623
    %v3628 = vsub.f32 %v3606, %v3624
    %v3629 = vsub.f32 %v3607, %v3625
    %v3630 = vmul.f32 %v3626, %v3626
    %v3631 = vmul.f32 %v3627, %v3627
    %v3632 = vmul.f32 %v3628, %v3628
    %v3633 = vmul.f32 %v3629, %v3629
    %v3634 = vsel %vm63, %v3630, 0.0
    %3635 = vadd.xlane.f32.xlu0 %v3634
    %v3636 = vpop.xlane.xlu0 %3635
    %v3637 = vsel %vm63, %v3631, 0.0
    %3638 = vadd.xlane.f32.xlu0 %v3637
    %v3639 = vpop.xlane.xlu0 %3638
    %v3640 = vsel %vm63, %v3632, 0.0
    %3641 = vadd.xlane.f32.xlu0 %v3640
    %v3642 = vpop.xlane.xlu0 %3641
    %v3643 = vsel %vm63, %v3633, 0.0
    %3644 = vadd.xlane.f32.xlu0 %v3643
    %v3645 = vpop.xlane.xlu0 %3644
    %v3646 = vmul.f32 %v3636, %v76
    %v3647 = vmul.f32 %v3639, %v76
    %v3648 = vmul.f32 %v3642, %v76
    %v3649 = vmul.f32 %v3645, %v76
    %v3650 = vadd.f32 %v3646, 1e-05
    %v3651 = vadd.f32 %v3647, 1e-05
    %v3652 = vadd.f32 %v3648, 1e-05
    %v3653 = vadd.f32 %v3649, 1e-05
    %v3654 = vrsqrt.pop %v3650
    %v3655 = vrsqrt.pop %v3651
    %v3656 = vrsqrt.pop %v3652
    %v3657 = vrsqrt.pop %v3653
    %v3658 = vmul.f32 %v3626, %v3654
    %v3659 = vmul.f32 %v3627, %v3655
    %v3660 = vmul.f32 %v3628, %v3656
    %v3661 = vmul.f32 %v3629, %v3657
    %v3662 = vlaneseq
    %v3663 = vshrl.u32 %v3662, 7
    %v3664 = vsub.s32 0, %v3663
    %v3665 = vrot.slane %v3608, %v3664
    %v3666 = vmul.f32 %v3658, %v3665
    %v3667 = vmul.f32 %v3659, %v3665
    %v3668 = vmul.f32 %v3660, %v3665
    %v3669 = vmul.f32 %v3661, %v3665
    %v3670 = vlaneseq
    %v3671 = vshrl.u32 %v3670, 7
    %v3672 = vsub.s32 0, %v3671
    %v3673 = vrot.slane %v3609, %v3672
    %v3674 = vadd.f32 %v3666, %v3673
    %v3675 = vadd.f32 %v3667, %v3673
    %v3676 = vadd.f32 %v3668, %v3673
    %v3677 = vadd.f32 %v3669, %v3673
    %3678 = vst.msk [vmem:[#allocation8] sm:$0xff] %vm63, %v3674
    %3679 = vst.msk [vmem:[#allocation8 + $0x8] sm:$0xff] %vm63, %v3675
    %3680 = vst.msk [vmem:[#allocation8 + $0x10] sm:$0xff] %vm63, %v3676
    %3681 = vst.msk [vmem:[#allocation8 + $0x18] sm:$0xff] %vm63, %v3677
    // Predicated region
    $region26: #{tpu_custom_call.1} parent=1 // pred_check
      _
    $region27: #{tpu_custom_call.1} parent=1 // pred_check_branch
      %3683 = sbr.rel (0) target = $region29
    $region28: #{tpu_custom_call.1} parent=1 // pred_region
      %s3685 = ssub.s32 512, 512
      %3686 = vsyncadd [#allocation4], %s3685
      %s3687 = sshll.u32 [#allocation8], 4
      %s3688 = int_to_ptr.vmem [resolvable:$true] %s3687
      %3693 = dma.vmem_to_hbm [thread:$0]  %s3688, 512, %s3, [#allocation4], 128, 128, 8
    $region29: #{tpu_custom_call.1} parent=1 // pred_fallthru
      _
    // Predicated region
    $region30: #{tpu_custom_call.1} parent=1 // pred_check
      _
    $region31: #{tpu_custom_call.1} parent=1 // pred_check_branch
      %3695 = sbr.rel (0) target = $region33
    $region32: #{tpu_custom_call.1} parent=1 // pred_region
      %3696 = dma.done [#allocation4], 512
    $region33: #{tpu_custom_call.1} parent=1 // pred_fallthru
      _
    %3697 = vsyncpa [#allocation3], 1
    %3698 = vsyncpa [#allocation6], 1
    %3699 = vsyncpa [#allocation4], 1

</llo_original>
